<compile_context>
chip_gen: v5e
topology: v5e:2x2
jax: 0.10.0
libtpu: 0.0.40
codegen_flags: <defaults>
</compile_context>

<pallas_src>
import math
import functools

import jax
import jax.numpy as jnp
from jax.experimental import pallas as pl
from jax.experimental.pallas import tpu as pltpu


# --------------------------- in-kernel helpers (VMEM values) -----------------

def _layer_norm(x, g, b, eps=1e-5):
    mu = jnp.mean(x, axis=-1, keepdims=True)
    var = jnp.mean(jnp.square(x - mu), axis=-1, keepdims=True)   # biased, like nn.LayerNorm
    return (x - mu) * jax.lax.rsqrt(var + eps) * g + b


def _attention_project(q, k, v, mask, wo, bo, num_heads):
    """Multi-head attention + output projection, fully on VMEM-resident values.

    q: (Sq, D), k/v: (Sk, D), mask: (1 or Sq, Sk) f32 (1.0 keep / 0.0 masked),
    wo: (D, D), bo: (1, D). Heads are unrolled (small H); per-head output is folded
    directly into the output projection via sublane-aligned row slices of wo, which
    avoids an in-kernel lane concatenation of narrow (Sq, dk) head outputs.
    """
    Sq, D = q.shape
    dk = D // num_heads
    scale = 1.0 / math.sqrt(dk)
    out = jnp.zeros((Sq, D), jnp.float32)
    for h in range(num_heads):
        lo, hi = h * dk, (h + 1) * dk
        qh = q[:, lo:hi]
        kh = k[:, lo:hi]
        vh = v[:, lo:hi]
        # scores = qh @ kh^T without an explicit transpose (contract the dk axes).
        s = jax.lax.dot_general(qh, kh, (((1,), (1,)), ((), ())),
                                preferred_element_type=jnp.float32) * scale
        s = jnp.where(mask > 0.0, s, -1e9)        # matches masked_fill(mask == 0, -1e9)
        s = s - jnp.max(s, axis=-1, keepdims=True)
        p = jnp.exp(s)
        p = p * pl.reciprocal(jnp.sum(p, axis=-1, keepdims=True), approx=True)
        oh = jnp.dot(p, vh, preferred_element_type=jnp.float32)          # (Sq, dk)
        out = out + jnp.dot(oh, wo[lo:hi, :], preferred_element_type=jnp.float32)
    return out + bo


# --------------------------- fused per-layer kernels -------------------------

def _self_layer_kernel(x_ref, mask_ref,
                       wqkv_ref, bqkv_ref, wo_ref, bo_ref,
                       ng1_ref, nb1_ref,
                       w1_ref, fb1_ref, w2_ref, fb2_ref,
                       ng2_ref, nb2_ref,
                       o_ref, *, num_heads):
    """self-attention -> add&LN -> FFN -> add&LN (encoder layer / enc-less decoder layer)."""
    x = x_ref[0]                    # (S, D)
    mask = mask_ref[0]              # (1 or S, S)
    D = x.shape[-1]
    qkv = jnp.dot(x, wqkv_ref[...], preferred_element_type=jnp.float32) + bqkv_ref[...]
    attn = _attention_project(qkv[:, :D], qkv[:, D:2 * D], qkv[:, 2 * D:],
                              mask, wo_ref[...], bo_ref[...], num_heads)
    x = _layer_norm(x + attn, ng1_ref[...], nb1_ref[...])
    h = jnp.maximum(
        jnp.dot(x, w1_ref[...], preferred_element_type=jnp.float32) + fb1_ref[...], 0.0)
    ff = jnp.dot(h, w2_ref[...], preferred_element_type=jnp.float32) + fb2_ref[...]
    o_ref[0] = _layer_norm(x + ff, ng2_ref[...], nb2_ref[...])


def _cross_layer_kernel(x_ref, enc_ref, smask_ref, cmask_ref,
                        s_wqkv_ref, s_bqkv_ref, s_wo_ref, s_bo_ref,
                        ng1_ref, nb1_ref,
                        c_wq_ref, c_bq_ref, c_wkv_ref, c_bkv_ref, c_wo_ref, c_bo_ref,
                        ng2_ref, nb2_ref,
                        w1_ref, fb1_ref, w2_ref, fb2_ref,
                        ng3_ref, nb3_ref,
                        o_ref, *, num_heads):
    """Decoder layer: masked self-attn -> add&LN -> cross-attn -> add&LN -> FFN -> add&LN."""
    x = x_ref[0]                    # (St, D)
    enc = enc_ref[0]                # (Ss, D)
    D = x.shape[-1]

    # masked (causal + padding) self-attention
    qkv = jnp.dot(x, s_wqkv_ref[...], preferred_element_type=jnp.float32) + s_bqkv_ref[...]
    attn = _attention_project(qkv[:, :D], qkv[:, D:2 * D], qkv[:, 2 * D:],
                              smask_ref[0], s_wo_ref[...], s_bo_ref[...], num_heads)
    x = _layer_norm(x + attn, ng1_ref[...], nb1_ref[...])

    # cross-attention over the encoder output (key-padding mask only)
    q = jnp.dot(x, c_wq_ref[...], preferred_element_type=jnp.float32) + c_bq_ref[...]
    kv = jnp.dot(enc, c_wkv_ref[...], preferred_element_type=jnp.float32) + c_bkv_ref[...]
    attn = _attention_project(q, kv[:, :D], kv[:, D:],
                              cmask_ref[0], c_wo_ref[...], c_bo_ref[...], num_heads)
    x = _layer_norm(x + attn, ng2_ref[...], nb2_ref[...])

    # feed-forward
    h = jnp.maximum(
        jnp.dot(x, w1_ref[...], preferred_element_type=jnp.float32) + fb1_ref[...], 0.0)
    ff = jnp.dot(h, w2_ref[...], preferred_element_type=jnp.float32) + fb2_ref[...]
    o_ref[0] = _layer_norm(x + ff, ng3_ref[...], nb3_ref[...])


def _linear_kernel(x_ref, w_ref, b_ref, o_ref):
    o_ref[...] = (jnp.dot(x_ref[...], w_ref[...], preferred_element_type=jnp.float32)
                  + b_ref[...])


# --------------------------- pallas_call wrappers ----------------------------

def _bcast_spec(shape):
    """Weight BlockSpec: same (whole-array) block for every grid step -> DMA'd once."""
    n = len(shape)
    return pl.BlockSpec(shape, lambda b, n=n: (0,) * n)


def self_attn_layer(x, mask, p, *, num_heads):
    """One fused pallas_call per layer. x: (B,S,D); mask: (B, 1 or S, S) f32."""
    B, S, D = x.shape
    Mq, Sk = mask.shape[1], mask.shape[2]
    weights = [p["wqkv"], p["bqkv"], p["wo"], p["bo"],
               p["norm1_g"], p["norm1_b"],
               p["ff_w1"], p["ff_b1"], p["ff_w2"], p["ff_b2"],
               p["norm2_g"], p["norm2_b"]]
    kern = functools.partial(_self_layer_kernel, num_heads=num_heads)
    return pl.pallas_call(
        kern,
        out_shape=jax.ShapeDtypeStruct((B, S, D), jnp.float32),
        grid=(B,),
        in_specs=[pl.BlockSpec((1, S, D), lambda b: (b, 0, 0)),
                  pl.BlockSpec((1, Mq, Sk), lambda b: (b, 0, 0))]
                 + [_bcast_spec(w.shape) for w in weights],
        out_specs=pl.BlockSpec((1, S, D), lambda b: (b, 0, 0)),
        compiler_params=pltpu.CompilerParams(dimension_semantics=("parallel",)),
    )(x, mask, *weights)


def cross_attn_layer(x, enc_out, self_mask, cross_mask, p, *, num_heads):
    """One fused pallas_call per decoder layer (self-attn + cross-attn + FFN)."""
    B, St, D = x.shape
    Ss = enc_out.shape[1]
    sa, ca = p["self_attn"], p["cross_attn"]
    weights = [sa["wqkv"], sa["bqkv"], sa["wo"], sa["bo"],
               p["norm1_g"], p["norm1_b"],
               ca["wq"], ca["bq"], ca["wkv"], ca["bkv"], ca["wo"], ca["bo"],
               p["norm2_g"], p["norm2_b"],
               p["ff_w1"], p["ff_b1"], p["ff_w2"], p["ff_b2"],
               p["norm3_g"], p["norm3_b"]]
    kern = functools.partial(_cross_layer_kernel, num_heads=num_heads)
    return pl.pallas_call(
        kern,
        out_shape=jax.ShapeDtypeStruct((B, St, D), jnp.float32),
        grid=(B,),
        in_specs=[pl.BlockSpec((1, St, D), lambda b: (b, 0, 0)),
                  pl.BlockSpec((1, Ss, D), lambda b: (b, 0, 0)),
                  pl.BlockSpec((1, St, St), lambda b: (b, 0, 0)),
                  pl.BlockSpec((1, 1, Ss), lambda b: (b, 0, 0))]
                 + [_bcast_spec(w.shape) for w in weights],
        out_specs=pl.BlockSpec((1, St, D), lambda b: (b, 0, 0)),
        compiler_params=pltpu.CompilerParams(dimension_semantics=("parallel",)),
    )(x, enc_out, self_mask, cross_mask, *weights)


def output_linear(x2d, w, b):
    """Final vocab projection: single whole-array pallas_call ((B*S) x D x V is tiny)."""
    M, _ = x2d.shape
    N = w.shape[1]
    return pl.pallas_call(
        _linear_kernel,
        out_shape=jax.ShapeDtypeStruct((M, N), jnp.float32),
    )(x2d, w, b)


# --------------------------- model glue (plain JAX) --------------------------

def positional_encoding_table(max_len, d_model):
    pos = jnp.arange(max_len, dtype=jnp.float32)[:, None]
    div = jnp.exp(jnp.arange(0, d_model, 2, dtype=jnp.float32)
                  * (-math.log(10000.0) / d_model))
    pe = jnp.zeros((max_len, d_model), dtype=jnp.float32)
    pe = pe.at[:, 0::2].set(jnp.sin(pos * div))
    pe = pe.at[:, 1::2].set(jnp.cos(pos * div))
    return pe


def transformer_forward(params, decoder_input, encoder_input, *, num_heads,
                        use_encoder_layers):
    pe = params["pe"]
    enc_out, enc_key_mask = None, None

    if use_encoder_layers:
        B, Ss = encoder_input.shape
        # key-padding mask (B,1,Ss): broadcast over query rows inside the kernel
        enc_key_mask = (encoder_input != 0).astype(jnp.float32)[:, None, :]
        x = jnp.take(params["enc_emb"], encoder_input, axis=0) + pe[None, :Ss, :]
        # dropout(p=0.0) == identity
        for lp in params["encoder_layers"]:
            x = self_attn_layer(x, enc_key_mask, lp, num_heads=num_heads)
        enc_out = x

    B, St = decoder_input.shape
    # causal + padding mask (B, St, St): [b,i,j] = (dec[b,i] != 0) & (j <= i)
    pad = (decoder_input != 0)[:, :, None]                       # (B, St, 1)
    nopeak = jnp.tril(jnp.ones((1, St, St), dtype=bool))         # (1, St, St)
    tgt_mask = (pad & nopeak).astype(jnp.float32)                # (B, St, St)

    y = jnp.take(params["dec_emb"], decoder_input, axis=0) + pe[None, :St, :]
    for lp in params["decoder_layers"]:
        if use_encoder_layers:
            y = cross_attn_layer(y, enc_out, tgt_mask, enc_key_mask, lp,
                                 num_heads=num_heads)
        else:
            # no cross-attention: same structure as an encoder layer (norm3 closes the FFN)
            flat = {"wqkv": lp["self_attn"]["wqkv"], "bqkv": lp["self_attn"]["bqkv"],
                    "wo": lp["self_attn"]["wo"], "bo": lp["self_attn"]["bo"],
                    "norm1_g": lp["norm1_g"], "norm1_b": lp["norm1_b"],
                    "ff_w1": lp["ff_w1"], "ff_b1": lp["ff_b1"],
                    "ff_w2": lp["ff_w2"], "ff_b2": lp["ff_b2"],
                    "norm2_g": lp["norm3_g"], "norm2_b": lp["norm3_b"]}
            y = self_attn_layer(y, tgt_mask, flat, num_heads=num_heads)

    D = y.shape[-1]
    out = output_linear(y.reshape(B * St, D), params["out_w"], params["out_b"])
    return out.reshape(B, St, -1)


# --------------------------- deterministic parameter init --------------------

def init_params(key, input_vocab, output_vocab, d_model, num_heads, num_layers,
                d_ff, max_len, use_encoder_layers):
    keys = iter(jax.random.split(key, 1024))

    def dense(k_in, k_out):
        w = 0.02 * jax.random.normal(next(keys), (k_in, k_out), jnp.float32)
        b = jnp.zeros((1, k_out), jnp.float32)
        return w, b

    def fused_self_attn():
        wqkv, bqkv = dense(d_model, 3 * d_model)     # Q/K/V merged into one matmul
        wo, bo = dense(d_model, d_model)
        return {"wqkv": wqkv, "bqkv": bqkv, "wo": wo, "bo": bo}

    def cross_attn():
        wq, bq = dense(d_model, d_model)
        wkv, bkv = dense(d_model, 2 * d_model)       # K/V merged into one matmul
        wo, bo = dense(d_model, d_model)
        return {"wq": wq, "bq": bq, "wkv": wkv, "bkv": bkv, "wo": wo, "bo": bo}

    def norm():
        return jnp.ones((1, d_model), jnp.float32), jnp.zeros((1, d_model), jnp.float32)

    def encoder_layer_params():
        p = fused_self_attn()
        p["ff_w1"], p["ff_b1"] = dense(d_model, d_ff)
        p["ff_w2"], p["ff_b2"] = dense(d_ff, d_model)
        p["norm1_g"], p["norm1_b"] = norm()
        p["norm2_g"], p["norm2_b"] = norm()
        return p

    def decoder_layer_params():
        p = {"self_attn": fused_self_attn()}
        if use_encoder_layers:
            p["cross_attn"] = cross_attn()
        p["ff_w1"], p["ff_b1"] = dense(d_model, d_ff)
        p["ff_w2"], p["ff_b2"] = dense(d_ff, d_model)
        p["norm1_g"], p["norm1_b"] = norm()
        p["norm2_g"], p["norm2_b"] = norm()
        p["norm3_g"], p["norm3_b"] = norm()
        return p

    params = {
        "dec_emb": 0.02 * jax.random.normal(next(keys), (output_vocab, d_model), jnp.float32),
        "decoder_layers": [decoder_layer_params() for _ in range(num_layers)],
        "pe": positional_encoding_table(max_len, d_model),
    }
    params["out_w"], params["out_b"] = dense(d_model, output_vocab)
    if use_encoder_layers:
        params["enc_emb"] = 0.02 * jax.random.normal(
            next(keys), (input_vocab, d_model), jnp.float32)
        params["encoder_layers"] = [encoder_layer_params() for _ in range(num_layers)]
    return params


# --------------------------- main ---------------------------------------------

if __name__ == "__main__":
    B, S = 2, 8
    d_model, num_heads, num_layers, d_ff = 32, 4, 2, 64
    input_vocab, output_vocab, max_len = 16, 16, 16
    use_encoder_layers = True
    # dropout = 0.0 -> identity (eval semantics)

    key = jax.random.PRNGKey(0)
    k_params, k_dec, k_enc = jax.random.split(key, 3)
    params = init_params(k_params, input_vocab, output_vocab, d_model, num_heads,
                         num_layers, d_ff, max_len, use_encoder_layers)

    decoder_input = jax.random.randint(k_dec, (B, S), 1, output_vocab, dtype=jnp.int32)
    encoder_input = jax.random.randint(k_enc, (B, S), 1, input_vocab, dtype=jnp.int32)
    # introduce some padding (token id 0) to exercise the masks
    decoder_input = decoder_input.at[1, -2:].set(0)
    encoder_input = encoder_input.at[1, -3:].set(0)

    forward = jax.jit(functools.partial(transformer_forward,
                                        num_heads=num_heads,
                                        use_encoder_layers=use_encoder_layers))
    out = forward(params, decoder_input, encoder_input)
    out = jax.block_until_ready(out)

    assert out.shape == (B, S, output_vocab), out.shape
    assert bool(jnp.all(jnp.isfinite(out)))
    print("KERNEL_OK")
</pallas_src>

<mosaic_0001>
module attributes {stable_mosaic.version = 11 : i64} {
  func.func @_cross_layer_kernel(%arg0: i32, %arg1: memref<1x8x32xf32, #tpu.memory_space<vmem>>, %arg2: memref<1x8x32xf32, #tpu.memory_space<vmem>>, %arg3: memref<1x8x8xf32, #tpu.memory_space<vmem>>, %arg4: memref<1x1x8xf32, #tpu.memory_space<vmem>>, %arg5: memref<32x96xf32, #tpu.memory_space<vmem>>, %arg6: memref<1x96xf32, #tpu.memory_space<vmem>>, %arg7: memref<32x32xf32, #tpu.memory_space<vmem>>, %arg8: memref<1x32xf32, #tpu.memory_space<vmem>>, %arg9: memref<1x32xf32, #tpu.memory_space<vmem>>, %arg10: memref<1x32xf32, #tpu.memory_space<vmem>>, %arg11: memref<32x32xf32, #tpu.memory_space<vmem>>, %arg12: memref<1x32xf32, #tpu.memory_space<vmem>>, %arg13: memref<32x64xf32, #tpu.memory_space<vmem>>, %arg14: memref<1x64xf32, #tpu.memory_space<vmem>>, %arg15: memref<32x32xf32, #tpu.memory_space<vmem>>, %arg16: memref<1x32xf32, #tpu.memory_space<vmem>>, %arg17: memref<1x32xf32, #tpu.memory_space<vmem>>, %arg18: memref<1x32xf32, #tpu.memory_space<vmem>>, %arg19: memref<32x64xf32, #tpu.memory_space<vmem>>, %arg20: memref<1x64xf32, #tpu.memory_space<vmem>>, %arg21: memref<64x32xf32, #tpu.memory_space<vmem>>, %arg22: memref<1x32xf32, #tpu.memory_space<vmem>>, %arg23: memref<1x32xf32, #tpu.memory_space<vmem>>, %arg24: memref<1x32xf32, #tpu.memory_space<vmem>>, %arg25: memref<1x8x32xf32, #tpu.memory_space<vmem>>) attributes {dimension_semantics = [#tpu.dimension_semantics<parallel>], iteration_bounds = array<i64: 2>, scalar_prefetch = 0 : i64, scratch_operands = 0 : i64, tpu.core_type = #tpu.core_type<tc>, window_params = [{transform_indices = @transform_0, window_bounds = array<i64: 1, 8, 32>}, {transform_indices = @transform_1, window_bounds = array<i64: 1, 8, 32>}, {transform_indices = @transform_2, window_bounds = array<i64: 1, 8, 8>}, {transform_indices = @transform_3, window_bounds = array<i64: 1, 1, 8>}, {pipeline_mode = #tpu.pipeline_mode<synchronous>, transform_indices = @transform_4, window_bounds = array<i64: 32, 96>}, {pipeline_mode = #tpu.pipeline_mode<synchronous>, transform_indices = @transform_5, window_bounds = array<i64: 1, 96>}, {pipeline_mode = #tpu.pipeline_mode<synchronous>, transform_indices = @transform_6, window_bounds = array<i64: 32, 32>}, {pipeline_mode = #tpu.pipeline_mode<synchronous>, transform_indices = @transform_7, window_bounds = array<i64: 1, 32>}, {pipeline_mode = #tpu.pipeline_mode<synchronous>, transform_indices = @transform_8, window_bounds = array<i64: 1, 32>}, {pipeline_mode = #tpu.pipeline_mode<synchronous>, transform_indices = @transform_9, window_bounds = array<i64: 1, 32>}, {pipeline_mode = #tpu.pipeline_mode<synchronous>, transform_indices = @transform_10, window_bounds = array<i64: 32, 32>}, {pipeline_mode = #tpu.pipeline_mode<synchronous>, transform_indices = @transform_11, window_bounds = array<i64: 1, 32>}, {pipeline_mode = #tpu.pipeline_mode<synchronous>, transform_indices = @transform_12, window_bounds = array<i64: 32, 64>}, {pipeline_mode = #tpu.pipeline_mode<synchronous>, transform_indices = @transform_13, window_bounds = array<i64: 1, 64>}, {pipeline_mode = #tpu.pipeline_mode<synchronous>, transform_indices = @transform_14, window_bounds = array<i64: 32, 32>}, {pipeline_mode = #tpu.pipeline_mode<synchronous>, transform_indices = @transform_15, window_bounds = array<i64: 1, 32>}, {pipeline_mode = #tpu.pipeline_mode<synchronous>, transform_indices = @transform_16, window_bounds = array<i64: 1, 32>}, {pipeline_mode = #tpu.pipeline_mode<synchronous>, transform_indices = @transform_17, window_bounds = array<i64: 1, 32>}, {pipeline_mode = #tpu.pipeline_mode<synchronous>, transform_indices = @transform_18, window_bounds = array<i64: 32, 64>}, {pipeline_mode = #tpu.pipeline_mode<synchronous>, transform_indices = @transform_19, window_bounds = array<i64: 1, 64>}, {pipeline_mode = #tpu.pipeline_mode<synchronous>, transform_indices = @transform_20, window_bounds = array<i64: 64, 32>}, {pipeline_mode = #tpu.pipeline_mode<synchronous>, transform_indices = @transform_21, window_bounds = array<i64: 1, 32>}, {pipeline_mode = #tpu.pipeline_mode<synchronous>, transform_indices = @transform_22, window_bounds = array<i64: 1, 32>}, {pipeline_mode = #tpu.pipeline_mode<synchronous>, transform_indices = @transform_23, window_bounds = array<i64: 1, 32>}, {transform_indices = @transform_24, window_bounds = array<i64: 1, 8, 32>}]} {
    %c0 = arith.constant 0 : index
    %c0_0 = arith.constant 0 : index
    %c0_1 = arith.constant 0 : index
    %0 = vector.load %arg1[%c0, %c0_0, %c0_1] : memref<1x8x32xf32, #tpu.memory_space<vmem>>, vector<1x8x32xf32>
    %1 = vector.shape_cast %0 : vector<1x8x32xf32> to vector<8x32xf32>
    %c0_2 = arith.constant 0 : index
    %c0_3 = arith.constant 0 : index
    %c0_4 = arith.constant 0 : index
    %2 = vector.load %arg2[%c0_2, %c0_3, %c0_4] : memref<1x8x32xf32, #tpu.memory_space<vmem>>, vector<1x8x32xf32>
    %3 = vector.shape_cast %2 : vector<1x8x32xf32> to vector<8x32xf32>
    %c0_5 = arith.constant 0 : index
    %c0_6 = arith.constant 0 : index
    %4 = vector.load %arg5[%c0_5, %c0_6] : memref<32x96xf32, #tpu.memory_space<vmem>>, vector<32x96xf32>
    %cst = arith.constant dense<0.000000e+00> : vector<8x96xf32>
    %5 = tpu.matmul %1, %4, %cst {dimension_numbers = #tpu.dot_dimension_numbers<[1], [0], [0], [1], [0, 0, 1, 1], [], []>} : vector<8x32xf32>, vector<32x96xf32>, vector<8x96xf32> -> vector<8x96xf32>
    %c0_7 = arith.constant 0 : index
    %c0_8 = arith.constant 0 : index
    %6 = vector.load %arg6[%c0_7, %c0_8] : memref<1x96xf32, #tpu.memory_space<vmem>>, vector<1x96xf32>
    %7 = vector.broadcast %6 : vector<1x96xf32> to vector<8x96xf32>
    %8 = arith.addf %5, %7 : vector<8x96xf32>
    %9 = vector.extract_strided_slice %8 {offsets = [0, 0], sizes = [8, 32], strides = [1, 1]} : vector<8x96xf32> to vector<8x32xf32>
    %10 = vector.extract_strided_slice %8 {offsets = [0, 32], sizes = [8, 32], strides = [1, 1]} : vector<8x96xf32> to vector<8x32xf32>
    %11 = vector.extract_strided_slice %8 {offsets = [0, 64], sizes = [8, 32], strides = [1, 1]} : vector<8x96xf32> to vector<8x32xf32>
    %c0_9 = arith.constant 0 : index
    %c0_10 = arith.constant 0 : index
    %c0_11 = arith.constant 0 : index
    %12 = vector.load %arg3[%c0_9, %c0_10, %c0_11] : memref<1x8x8xf32, #tpu.memory_space<vmem>>, vector<1x8x8xf32>
    %13 = vector.shape_cast %12 : vector<1x8x8xf32> to vector<8x8xf32>
    %c0_12 = arith.constant 0 : index
    %c0_13 = arith.constant 0 : index
    %14 = vector.load %arg7[%c0_12, %c0_13] : memref<32x32xf32, #tpu.memory_space<vmem>>, vector<32x32xf32>
    %c0_14 = arith.constant 0 : index
    %c0_15 = arith.constant 0 : index
    %15 = vector.load %arg8[%c0_14, %c0_15] : memref<1x32xf32, #tpu.memory_space<vmem>>, vector<1x32xf32>
    %cst_16 = arith.constant 0.000000e+00 : f32
    %16 = vector.broadcast %cst_16 : f32 to vector<8x32xf32>
    %17 = vector.extract_strided_slice %9 {offsets = [0, 0], sizes = [8, 8], strides = [1, 1]} : vector<8x32xf32> to vector<8x8xf32>
    %18 = vector.extract_strided_slice %10 {offsets = [0, 0], sizes = [8, 8], strides = [1, 1]} : vector<8x32xf32> to vector<8x8xf32>
    %19 = vector.extract_strided_slice %11 {offsets = [0, 0], sizes = [8, 8], strides = [1, 1]} : vector<8x32xf32> to vector<8x8xf32>
    %cst_17 = arith.constant dense<0.000000e+00> : vector<8x8xf32>
    %20 = tpu.matmul %17, %18, %cst_17 {dimension_numbers = #tpu.dot_dimension_numbers<[1], [1], [0], [0], [0, 0, 1, 0], [], []>} : vector<8x8xf32>, vector<8x8xf32>, vector<8x8xf32> -> vector<8x8xf32>
    %cst_18 = arith.constant 0.353553385 : f32
    %21 = vector.broadcast %cst_18 : f32 to vector<8x8xf32>
    %22 = arith.mulf %20, %21 : vector<8x8xf32>
    %cst_19 = arith.constant 0.000000e+00 : f32
    %23 = vector.broadcast %cst_19 : f32 to vector<8x8xf32>
    %24 = arith.cmpf ogt, %13, %23 : vector<8x8xf32>
    %cst_20 = arith.constant -1.000000e+09 : f32
    %25 = vector.broadcast %cst_20 : f32 to vector<8x8xf32>
    %26 = arith.select %24, %22, %25 : vector<8x8xi1>, vector<8x8xf32>
    %cst_21 = arith.constant dense<0xFF800000> : vector<8xf32>
    %27 = vector.multi_reduction <maximumf>, %26, %cst_21 [1] : vector<8x8xf32> to vector<8xf32>
    %28 = vector.shape_cast %27 : vector<8xf32> to vector<8x1xf32>
    %29 = vector.broadcast %28 : vector<8x1xf32> to vector<8x8xf32>
    %30 = arith.subf %26, %29 : vector<8x8xf32>
    %31 = math.exp %30 : vector<8x8xf32>
    %cst_22 = arith.constant dense<0.000000e+00> : vector<8xf32>
    %32 = vector.multi_reduction <add>, %31, %cst_22 [1] : vector<8x8xf32> to vector<8xf32>
    %33 = vector.shape_cast %32 : vector<8xf32> to vector<8x1xf32>
    %34 = tpu.reciprocal %33 {approx = true} : vector<8x1xf32> -> vector<8x1xf32>
    %35 = vector.broadcast %34 : vector<8x1xf32> to vector<8x8xf32>
    %36 = arith.mulf %31, %35 : vector<8x8xf32>
    %cst_23 = arith.constant dense<0.000000e+00> : vector<8x8xf32>
    %37 = tpu.matmul %36, %19, %cst_23 {dimension_numbers = #tpu.dot_dimension_numbers<[1], [0], [0], [1], [0, 0, 1, 1], [], []>} : vector<8x8xf32>, vector<8x8xf32>, vector<8x8xf32> -> vector<8x8xf32>
    %38 = vector.extract_strided_slice %14 {offsets = [0, 0], sizes = [8, 32], strides = [1, 1]} : vector<32x32xf32> to vector<8x32xf32>
    %cst_24 = arith.constant dense<0.000000e+00> : vector<8x32xf32>
    %39 = tpu.matmul %37, %38, %cst_24 {dimension_numbers = #tpu.dot_dimension_numbers<[1], [0], [0], [1], [0, 0, 1, 1], [], []>} : vector<8x8xf32>, vector<8x32xf32>, vector<8x32xf32> -> vector<8x32xf32>
    %40 = arith.addf %16, %39 : vector<8x32xf32>
    %41 = vector.extract_strided_slice %9 {offsets = [0, 8], sizes = [8, 8], strides = [1, 1]} : vector<8x32xf32> to vector<8x8xf32>
    %42 = vector.extract_strided_slice %10 {offsets = [0, 8], sizes = [8, 8], strides = [1, 1]} : vector<8x32xf32> to vector<8x8xf32>
    %43 = vector.extract_strided_slice %11 {offsets = [0, 8], sizes = [8, 8], strides = [1, 1]} : vector<8x32xf32> to vector<8x8xf32>
    %cst_25 = arith.constant dense<0.000000e+00> : vector<8x8xf32>
    %44 = tpu.matmul %41, %42, %cst_25 {dimension_numbers = #tpu.dot_dimension_numbers<[1], [1], [0], [0], [0, 0, 1, 0], [], []>} : vector<8x8xf32>, vector<8x8xf32>, vector<8x8xf32> -> vector<8x8xf32>
    %cst_26 = arith.constant 0.353553385 : f32
    %45 = vector.broadcast %cst_26 : f32 to vector<8x8xf32>
    %46 = arith.mulf %44, %45 : vector<8x8xf32>
    %cst_27 = arith.constant 0.000000e+00 : f32
    %47 = vector.broadcast %cst_27 : f32 to vector<8x8xf32>
    %48 = arith.cmpf ogt, %13, %47 : vector<8x8xf32>
    %cst_28 = arith.constant -1.000000e+09 : f32
    %49 = vector.broadcast %cst_28 : f32 to vector<8x8xf32>
    %50 = arith.select %48, %46, %49 : vector<8x8xi1>, vector<8x8xf32>
    %cst_29 = arith.constant dense<0xFF800000> : vector<8xf32>
    %51 = vector.multi_reduction <maximumf>, %50, %cst_29 [1] : vector<8x8xf32> to vector<8xf32>
    %52 = vector.shape_cast %51 : vector<8xf32> to vector<8x1xf32>
    %53 = vector.broadcast %52 : vector<8x1xf32> to vector<8x8xf32>
    %54 = arith.subf %50, %53 : vector<8x8xf32>
    %55 = math.exp %54 : vector<8x8xf32>
    %cst_30 = arith.constant dense<0.000000e+00> : vector<8xf32>
    %56 = vector.multi_reduction <add>, %55, %cst_30 [1] : vector<8x8xf32> to vector<8xf32>
    %57 = vector.shape_cast %56 : vector<8xf32> to vector<8x1xf32>
    %58 = tpu.reciprocal %57 {approx = true} : vector<8x1xf32> -> vector<8x1xf32>
    %59 = vector.broadcast %58 : vector<8x1xf32> to vector<8x8xf32>
    %60 = arith.mulf %55, %59 : vector<8x8xf32>
    %cst_31 = arith.constant dense<0.000000e+00> : vector<8x8xf32>
    %61 = tpu.matmul %60, %43, %cst_31 {dimension_numbers = #tpu.dot_dimension_numbers<[1], [0], [0], [1], [0, 0, 1, 1], [], []>} : vector<8x8xf32>, vector<8x8xf32>, vector<8x8xf32> -> vector<8x8xf32>
    %62 = vector.extract_strided_slice %14 {offsets = [8, 0], sizes = [8, 32], strides = [1, 1]} : vector<32x32xf32> to vector<8x32xf32>
    %cst_32 = arith.constant dense<0.000000e+00> : vector<8x32xf32>
    %63 = tpu.matmul %61, %62, %cst_32 {dimension_numbers = #tpu.dot_dimension_numbers<[1], [0], [0], [1], [0, 0, 1, 1], [], []>} : vector<8x8xf32>, vector<8x32xf32>, vector<8x32xf32> -> vector<8x32xf32>
    %64 = arith.addf %40, %63 : vector<8x32xf32>
    %65 = vector.extract_strided_slice %9 {offsets = [0, 16], sizes = [8, 8], strides = [1, 1]} : vector<8x32xf32> to vector<8x8xf32>
    %66 = vector.extract_strided_slice %10 {offsets = [0, 16], sizes = [8, 8], strides = [1, 1]} : vector<8x32xf32> to vector<8x8xf32>
    %67 = vector.extract_strided_slice %11 {offsets = [0, 16], sizes = [8, 8], strides = [1, 1]} : vector<8x32xf32> to vector<8x8xf32>
    %cst_33 = arith.constant dense<0.000000e+00> : vector<8x8xf32>
    %68 = tpu.matmul %65, %66, %cst_33 {dimension_numbers = #tpu.dot_dimension_numbers<[1], [1], [0], [0], [0, 0, 1, 0], [], []>} : vector<8x8xf32>, vector<8x8xf32>, vector<8x8xf32> -> vector<8x8xf32>
    %cst_34 = arith.constant 0.353553385 : f32
    %69 = vector.broadcast %cst_34 : f32 to vector<8x8xf32>
    %70 = arith.mulf %68, %69 : vector<8x8xf32>
    %cst_35 = arith.constant 0.000000e+00 : f32
    %71 = vector.broadcast %cst_35 : f32 to vector<8x8xf32>
    %72 = arith.cmpf ogt, %13, %71 : vector<8x8xf32>
    %cst_36 = arith.constant -1.000000e+09 : f32
    %73 = vector.broadcast %cst_36 : f32 to vector<8x8xf32>
    %74 = arith.select %72, %70, %73 : vector<8x8xi1>, vector<8x8xf32>
    %cst_37 = arith.constant dense<0xFF800000> : vector<8xf32>
    %75 = vector.multi_reduction <maximumf>, %74, %cst_37 [1] : vector<8x8xf32> to vector<8xf32>
    %76 = vector.shape_cast %75 : vector<8xf32> to vector<8x1xf32>
    %77 = vector.broadcast %76 : vector<8x1xf32> to vector<8x8xf32>
    %78 = arith.subf %74, %77 : vector<8x8xf32>
    %79 = math.exp %78 : vector<8x8xf32>
    %cst_38 = arith.constant dense<0.000000e+00> : vector<8xf32>
    %80 = vector.multi_reduction <add>, %79, %cst_38 [1] : vector<8x8xf32> to vector<8xf32>
    %81 = vector.shape_cast %80 : vector<8xf32> to vector<8x1xf32>
    %82 = tpu.reciprocal %81 {approx = true} : vector<8x1xf32> -> vector<8x1xf32>
    %83 = vector.broadcast %82 : vector<8x1xf32> to vector<8x8xf32>
    %84 = arith.mulf %79, %83 : vector<8x8xf32>
    %cst_39 = arith.constant dense<0.000000e+00> : vector<8x8xf32>
    %85 = tpu.matmul %84, %67, %cst_39 {dimension_numbers = #tpu.dot_dimension_numbers<[1], [0], [0], [1], [0, 0, 1, 1], [], []>} : vector<8x8xf32>, vector<8x8xf32>, vector<8x8xf32> -> vector<8x8xf32>
    %86 = vector.extract_strided_slice %14 {offsets = [16, 0], sizes = [8, 32], strides = [1, 1]} : vector<32x32xf32> to vector<8x32xf32>
    %cst_40 = arith.constant dense<0.000000e+00> : vector<8x32xf32>
    %87 = tpu.matmul %85, %86, %cst_40 {dimension_numbers = #tpu.dot_dimension_numbers<[1], [0], [0], [1], [0, 0, 1, 1], [], []>} : vector<8x8xf32>, vector<8x32xf32>, vector<8x32xf32> -> vector<8x32xf32>
    %88 = arith.addf %64, %87 : vector<8x32xf32>
    %89 = vector.extract_strided_slice %9 {offsets = [0, 24], sizes = [8, 8], strides = [1, 1]} : vector<8x32xf32> to vector<8x8xf32>
    %90 = vector.extract_strided_slice %10 {offsets = [0, 24], sizes = [8, 8], strides = [1, 1]} : vector<8x32xf32> to vector<8x8xf32>
    %91 = vector.extract_strided_slice %11 {offsets = [0, 24], sizes = [8, 8], strides = [1, 1]} : vector<8x32xf32> to vector<8x8xf32>
    %cst_41 = arith.constant dense<0.000000e+00> : vector<8x8xf32>
    %92 = tpu.matmul %89, %90, %cst_41 {dimension_numbers = #tpu.dot_dimension_numbers<[1], [1], [0], [0], [0, 0, 1, 0], [], []>} : vector<8x8xf32>, vector<8x8xf32>, vector<8x8xf32> -> vector<8x8xf32>
    %cst_42 = arith.constant 0.353553385 : f32
    %93 = vector.broadcast %cst_42 : f32 to vector<8x8xf32>
    %94 = arith.mulf %92, %93 : vector<8x8xf32>
    %cst_43 = arith.constant 0.000000e+00 : f32
    %95 = vector.broadcast %cst_43 : f32 to vector<8x8xf32>
    %96 = arith.cmpf ogt, %13, %95 : vector<8x8xf32>
    %cst_44 = arith.constant -1.000000e+09 : f32
    %97 = vector.broadcast %cst_44 : f32 to vector<8x8xf32>
    %98 = arith.select %96, %94, %97 : vector<8x8xi1>, vector<8x8xf32>
    %cst_45 = arith.constant dense<0xFF800000> : vector<8xf32>
    %99 = vector.multi_reduction <maximumf>, %98, %cst_45 [1] : vector<8x8xf32> to vector<8xf32>
    %100 = vector.shape_cast %99 : vector<8xf32> to vector<8x1xf32>
    %101 = vector.broadcast %100 : vector<8x1xf32> to vector<8x8xf32>
    %102 = arith.subf %98, %101 : vector<8x8xf32>
    %103 = math.exp %102 : vector<8x8xf32>
    %cst_46 = arith.constant dense<0.000000e+00> : vector<8xf32>
    %104 = vector.multi_reduction <add>, %103, %cst_46 [1] : vector<8x8xf32> to vector<8xf32>
    %105 = vector.shape_cast %104 : vector<8xf32> to vector<8x1xf32>
    %106 = tpu.reciprocal %105 {approx = true} : vector<8x1xf32> -> vector<8x1xf32>
    %107 = vector.broadcast %106 : vector<8x1xf32> to vector<8x8xf32>
    %108 = arith.mulf %103, %107 : vector<8x8xf32>
    %cst_47 = arith.constant dense<0.000000e+00> : vector<8x8xf32>
    %109 = tpu.matmul %108, %91, %cst_47 {dimension_numbers = #tpu.dot_dimension_numbers<[1], [0], [0], [1], [0, 0, 1, 1], [], []>} : vector<8x8xf32>, vector<8x8xf32>, vector<8x8xf32> -> vector<8x8xf32>
    %110 = vector.extract_strided_slice %14 {offsets = [24, 0], sizes = [8, 32], strides = [1, 1]} : vector<32x32xf32> to vector<8x32xf32>
    %cst_48 = arith.constant dense<0.000000e+00> : vector<8x32xf32>
    %111 = tpu.matmul %109, %110, %cst_48 {dimension_numbers = #tpu.dot_dimension_numbers<[1], [0], [0], [1], [0, 0, 1, 1], [], []>} : vector<8x8xf32>, vector<8x32xf32>, vector<8x32xf32> -> vector<8x32xf32>
    %112 = arith.addf %88, %111 : vector<8x32xf32>
    %113 = vector.broadcast %15 : vector<1x32xf32> to vector<8x32xf32>
    %114 = arith.addf %112, %113 : vector<8x32xf32>
    %115 = arith.addf %1, %114 : vector<8x32xf32>
    %c0_49 = arith.constant 0 : index
    %c0_50 = arith.constant 0 : index
    %116 = vector.load %arg9[%c0_49, %c0_50] : memref<1x32xf32, #tpu.memory_space<vmem>>, vector<1x32xf32>
    %c0_51 = arith.constant 0 : index
    %c0_52 = arith.constant 0 : index
    %117 = vector.load %arg10[%c0_51, %c0_52] : memref<1x32xf32, #tpu.memory_space<vmem>>, vector<1x32xf32>
    %cst_53 = arith.constant dense<0.000000e+00> : vector<8xf32>
    %118 = vector.multi_reduction <add>, %115, %cst_53 [1] : vector<8x32xf32> to vector<8xf32>
    %119 = vector.shape_cast %118 : vector<8xf32> to vector<8x1xf32>
    %cst_54 = arith.constant 3.200000e+01 : f32
    %120 = vector.broadcast %cst_54 : f32 to vector<8x1xf32>
    %121 = arith.divf %119, %120 : vector<8x1xf32>
    %122 = vector.broadcast %121 : vector<8x1xf32> to vector<8x32xf32>
    %123 = arith.subf %115, %122 : vector<8x32xf32>
    %124 = arith.mulf %123, %123 : vector<8x32xf32>
    %cst_55 = arith.constant dense<0.000000e+00> : vector<8xf32>
    %125 = vector.multi_reduction <add>, %124, %cst_55 [1] : vector<8x32xf32> to vector<8xf32>
    %126 = vector.shape_cast %125 : vector<8xf32> to vector<8x1xf32>
    %cst_56 = arith.constant 3.200000e+01 : f32
    %127 = vector.broadcast %cst_56 : f32 to vector<8x1xf32>
    %128 = arith.divf %126, %127 : vector<8x1xf32>
    %129 = vector.broadcast %121 : vector<8x1xf32> to vector<8x32xf32>
    %130 = arith.subf %115, %129 : vector<8x32xf32>
    %cst_57 = arith.constant 9.99999974E-6 : f32
    %131 = vector.broadcast %cst_57 : f32 to vector<8x1xf32>
    %132 = arith.addf %128, %131 : vector<8x1xf32>
    %133 = math.rsqrt %132 : vector<8x1xf32>
    %134 = vector.broadcast %133 : vector<8x1xf32> to vector<8x32xf32>
    %135 = arith.mulf %130, %134 : vector<8x32xf32>
    %136 = vector.broadcast %116 : vector<1x32xf32> to vector<8x32xf32>
    %137 = arith.mulf %135, %136 : vector<8x32xf32>
    %138 = vector.broadcast %117 : vector<1x32xf32> to vector<8x32xf32>
    %139 = arith.addf %137, %138 : vector<8x32xf32>
    %c0_58 = arith.constant 0 : index
    %c0_59 = arith.constant 0 : index
    %140 = vector.load %arg11[%c0_58, %c0_59] : memref<32x32xf32, #tpu.memory_space<vmem>>, vector<32x32xf32>
    %cst_60 = arith.constant dense<0.000000e+00> : vector<8x32xf32>
    %141 = tpu.matmul %139, %140, %cst_60 {dimension_numbers = #tpu.dot_dimension_numbers<[1], [0], [0], [1], [0, 0, 1, 1], [], []>} : vector<8x32xf32>, vector<32x32xf32>, vector<8x32xf32> -> vector<8x32xf32>
    %c0_61 = arith.constant 0 : index
    %c0_62 = arith.constant 0 : index
    %142 = vector.load %arg12[%c0_61, %c0_62] : memref<1x32xf32, #tpu.memory_space<vmem>>, vector<1x32xf32>
    %143 = vector.broadcast %142 : vector<1x32xf32> to vector<8x32xf32>
    %144 = arith.addf %141, %143 : vector<8x32xf32>
    %c0_63 = arith.constant 0 : index
    %c0_64 = arith.constant 0 : index
    %145 = vector.load %arg13[%c0_63, %c0_64] : memref<32x64xf32, #tpu.memory_space<vmem>>, vector<32x64xf32>
    %cst_65 = arith.constant dense<0.000000e+00> : vector<8x64xf32>
    %146 = tpu.matmul %3, %145, %cst_65 {dimension_numbers = #tpu.dot_dimension_numbers<[1], [0], [0], [1], [0, 0, 1, 1], [], []>} : vector<8x32xf32>, vector<32x64xf32>, vector<8x64xf32> -> vector<8x64xf32>
    %c0_66 = arith.constant 0 : index
    %c0_67 = arith.constant 0 : index
    %147 = vector.load %arg14[%c0_66, %c0_67] : memref<1x64xf32, #tpu.memory_space<vmem>>, vector<1x64xf32>
    %148 = vector.broadcast %147 : vector<1x64xf32> to vector<8x64xf32>
    %149 = arith.addf %146, %148 : vector<8x64xf32>
    %150 = vector.extract_strided_slice %149 {offsets = [0, 0], sizes = [8, 32], strides = [1, 1]} : vector<8x64xf32> to vector<8x32xf32>
    %151 = vector.extract_strided_slice %149 {offsets = [0, 32], sizes = [8, 32], strides = [1, 1]} : vector<8x64xf32> to vector<8x32xf32>
    %c0_68 = arith.constant 0 : index
    %c0_69 = arith.constant 0 : index
    %c0_70 = arith.constant 0 : index
    %152 = vector.load %arg4[%c0_68, %c0_69, %c0_70] : memref<1x1x8xf32, #tpu.memory_space<vmem>>, vector<1x1x8xf32>
    %153 = vector.shape_cast %152 : vector<1x1x8xf32> to vector<1x8xf32>
    %c0_71 = arith.constant 0 : index
    %c0_72 = arith.constant 0 : index
    %154 = vector.load %arg15[%c0_71, %c0_72] : memref<32x32xf32, #tpu.memory_space<vmem>>, vector<32x32xf32>
    %c0_73 = arith.constant 0 : index
    %c0_74 = arith.constant 0 : index
    %155 = vector.load %arg16[%c0_73, %c0_74] : memref<1x32xf32, #tpu.memory_space<vmem>>, vector<1x32xf32>
    %cst_75 = arith.constant 0.000000e+00 : f32
    %156 = vector.broadcast %cst_75 : f32 to vector<8x32xf32>
    %157 = vector.extract_strided_slice %144 {offsets = [0, 0], sizes = [8, 8], strides = [1, 1]} : vector<8x32xf32> to vector<8x8xf32>
    %158 = vector.extract_strided_slice %150 {offsets = [0, 0], sizes = [8, 8], strides = [1, 1]} : vector<8x32xf32> to vector<8x8xf32>
    %159 = vector.extract_strided_slice %151 {offsets = [0, 0], sizes = [8, 8], strides = [1, 1]} : vector<8x32xf32> to vector<8x8xf32>
    %cst_76 = arith.constant dense<0.000000e+00> : vector<8x8xf32>
    %160 = tpu.matmul %157, %158, %cst_76 {dimension_numbers = #tpu.dot_dimension_numbers<[1], [1], [0], [0], [0, 0, 1, 0], [], []>} : vector<8x8xf32>, vector<8x8xf32>, vector<8x8xf32> -> vector<8x8xf32>
    %cst_77 = arith.constant 0.353553385 : f32
    %161 = vector.broadcast %cst_77 : f32 to vector<8x8xf32>
    %162 = arith.mulf %160, %161 : vector<8x8xf32>
    %cst_78 = arith.constant 0.000000e+00 : f32
    %163 = vector.broadcast %cst_78 : f32 to vector<1x8xf32>
    %164 = arith.cmpf ogt, %153, %163 : vector<1x8xf32>
    %cst_79 = arith.constant -1.000000e+09 : f32
    %165 = vector.shape_cast %164 : vector<1x8xi1> to vector<1x8xi1>
    %166 = vector.broadcast %165 : vector<1x8xi1> to vector<8x8xi1>
    %167 = vector.broadcast %cst_79 : f32 to vector<8x8xf32>
    %168 = arith.select %166, %162, %167 : vector<8x8xi1>, vector<8x8xf32>
    %cst_80 = arith.constant dense<0xFF800000> : vector<8xf32>
    %169 = vector.multi_reduction <maximumf>, %168, %cst_80 [1] : vector<8x8xf32> to vector<8xf32>
    %170 = vector.shape_cast %169 : vector<8xf32> to vector<8x1xf32>
    %171 = vector.broadcast %170 : vector<8x1xf32> to vector<8x8xf32>
    %172 = arith.subf %168, %171 : vector<8x8xf32>
    %173 = math.exp %172 : vector<8x8xf32>
    %cst_81 = arith.constant dense<0.000000e+00> : vector<8xf32>
    %174 = vector.multi_reduction <add>, %173, %cst_81 [1] : vector<8x8xf32> to vector<8xf32>
    %175 = vector.shape_cast %174 : vector<8xf32> to vector<8x1xf32>
    %176 = tpu.reciprocal %175 {approx = true} : vector<8x1xf32> -> vector<8x1xf32>
    %177 = vector.broadcast %176 : vector<8x1xf32> to vector<8x8xf32>
    %178 = arith.mulf %173, %177 : vector<8x8xf32>
    %cst_82 = arith.constant dense<0.000000e+00> : vector<8x8xf32>
    %179 = tpu.matmul %178, %159, %cst_82 {dimension_numbers = #tpu.dot_dimension_numbers<[1], [0], [0], [1], [0, 0, 1, 1], [], []>} : vector<8x8xf32>, vector<8x8xf32>, vector<8x8xf32> -> vector<8x8xf32>
    %180 = vector.extract_strided_slice %154 {offsets = [0, 0], sizes = [8, 32], strides = [1, 1]} : vector<32x32xf32> to vector<8x32xf32>
    %cst_83 = arith.constant dense<0.000000e+00> : vector<8x32xf32>
    %181 = tpu.matmul %179, %180, %cst_83 {dimension_numbers = #tpu.dot_dimension_numbers<[1], [0], [0], [1], [0, 0, 1, 1], [], []>} : vector<8x8xf32>, vector<8x32xf32>, vector<8x32xf32> -> vector<8x32xf32>
    %182 = arith.addf %156, %181 : vector<8x32xf32>
    %183 = vector.extract_strided_slice %144 {offsets = [0, 8], sizes = [8, 8], strides = [1, 1]} : vector<8x32xf32> to vector<8x8xf32>
    %184 = vector.extract_strided_slice %150 {offsets = [0, 8], sizes = [8, 8], strides = [1, 1]} : vector<8x32xf32> to vector<8x8xf32>
    %185 = vector.extract_strided_slice %151 {offsets = [0, 8], sizes = [8, 8], strides = [1, 1]} : vector<8x32xf32> to vector<8x8xf32>
    %cst_84 = arith.constant dense<0.000000e+00> : vector<8x8xf32>
    %186 = tpu.matmul %183, %184, %cst_84 {dimension_numbers = #tpu.dot_dimension_numbers<[1], [1], [0], [0], [0, 0, 1, 0], [], []>} : vector<8x8xf32>, vector<8x8xf32>, vector<8x8xf32> -> vector<8x8xf32>
    %cst_85 = arith.constant 0.353553385 : f32
    %187 = vector.broadcast %cst_85 : f32 to vector<8x8xf32>
    %188 = arith.mulf %186, %187 : vector<8x8xf32>
    %cst_86 = arith.constant 0.000000e+00 : f32
    %189 = vector.broadcast %cst_86 : f32 to vector<1x8xf32>
    %190 = arith.cmpf ogt, %153, %189 : vector<1x8xf32>
    %cst_87 = arith.constant -1.000000e+09 : f32
    %191 = vector.shape_cast %190 : vector<1x8xi1> to vector<1x8xi1>
    %192 = vector.broadcast %191 : vector<1x8xi1> to vector<8x8xi1>
    %193 = vector.broadcast %cst_87 : f32 to vector<8x8xf32>
    %194 = arith.select %192, %188, %193 : vector<8x8xi1>, vector<8x8xf32>
    %cst_88 = arith.constant dense<0xFF800000> : vector<8xf32>
    %195 = vector.multi_reduction <maximumf>, %194, %cst_88 [1] : vector<8x8xf32> to vector<8xf32>
    %196 = vector.shape_cast %195 : vector<8xf32> to vector<8x1xf32>
    %197 = vector.broadcast %196 : vector<8x1xf32> to vector<8x8xf32>
    %198 = arith.subf %194, %197 : vector<8x8xf32>
    %199 = math.exp %198 : vector<8x8xf32>
    %cst_89 = arith.constant dense<0.000000e+00> : vector<8xf32>
    %200 = vector.multi_reduction <add>, %199, %cst_89 [1] : vector<8x8xf32> to vector<8xf32>
    %201 = vector.shape_cast %200 : vector<8xf32> to vector<8x1xf32>
    %202 = tpu.reciprocal %201 {approx = true} : vector<8x1xf32> -> vector<8x1xf32>
    %203 = vector.broadcast %202 : vector<8x1xf32> to vector<8x8xf32>
    %204 = arith.mulf %199, %203 : vector<8x8xf32>
    %cst_90 = arith.constant dense<0.000000e+00> : vector<8x8xf32>
    %205 = tpu.matmul %204, %185, %cst_90 {dimension_numbers = #tpu.dot_dimension_numbers<[1], [0], [0], [1], [0, 0, 1, 1], [], []>} : vector<8x8xf32>, vector<8x8xf32>, vector<8x8xf32> -> vector<8x8xf32>
    %206 = vector.extract_strided_slice %154 {offsets = [8, 0], sizes = [8, 32], strides = [1, 1]} : vector<32x32xf32> to vector<8x32xf32>
    %cst_91 = arith.constant dense<0.000000e+00> : vector<8x32xf32>
    %207 = tpu.matmul %205, %206, %cst_91 {dimension_numbers = #tpu.dot_dimension_numbers<[1], [0], [0], [1], [0, 0, 1, 1], [], []>} : vector<8x8xf32>, vector<8x32xf32>, vector<8x32xf32> -> vector<8x32xf32>
    %208 = arith.addf %182, %207 : vector<8x32xf32>
    %209 = vector.extract_strided_slice %144 {offsets = [0, 16], sizes = [8, 8], strides = [1, 1]} : vector<8x32xf32> to vector<8x8xf32>
    %210 = vector.extract_strided_slice %150 {offsets = [0, 16], sizes = [8, 8], strides = [1, 1]} : vector<8x32xf32> to vector<8x8xf32>
    %211 = vector.extract_strided_slice %151 {offsets = [0, 16], sizes = [8, 8], strides = [1, 1]} : vector<8x32xf32> to vector<8x8xf32>
    %cst_92 = arith.constant dense<0.000000e+00> : vector<8x8xf32>
    %212 = tpu.matmul %209, %210, %cst_92 {dimension_numbers = #tpu.dot_dimension_numbers<[1], [1], [0], [0], [0, 0, 1, 0], [], []>} : vector<8x8xf32>, vector<8x8xf32>, vector<8x8xf32> -> vector<8x8xf32>
    %cst_93 = arith.constant 0.353553385 : f32
    %213 = vector.broadcast %cst_93 : f32 to vector<8x8xf32>
    %214 = arith.mulf %212, %213 : vector<8x8xf32>
    %cst_94 = arith.constant 0.000000e+00 : f32
    %215 = vector.broadcast %cst_94 : f32 to vector<1x8xf32>
    %216 = arith.cmpf ogt, %153, %215 : vector<1x8xf32>
    %cst_95 = arith.constant -1.000000e+09 : f32
    %217 = vector.shape_cast %216 : vector<1x8xi1> to vector<1x8xi1>
    %218 = vector.broadcast %217 : vector<1x8xi1> to vector<8x8xi1>
    %219 = vector.broadcast %cst_95 : f32 to vector<8x8xf32>
    %220 = arith.select %218, %214, %219 : vector<8x8xi1>, vector<8x8xf32>
    %cst_96 = arith.constant dense<0xFF800000> : vector<8xf32>
    %221 = vector.multi_reduction <maximumf>, %220, %cst_96 [1] : vector<8x8xf32> to vector<8xf32>
    %222 = vector.shape_cast %221 : vector<8xf32> to vector<8x1xf32>
    %223 = vector.broadcast %222 : vector<8x1xf32> to vector<8x8xf32>
    %224 = arith.subf %220, %223 : vector<8x8xf32>
    %225 = math.exp %224 : vector<8x8xf32>
    %cst_97 = arith.constant dense<0.000000e+00> : vector<8xf32>
    %226 = vector.multi_reduction <add>, %225, %cst_97 [1] : vector<8x8xf32> to vector<8xf32>
    %227 = vector.shape_cast %226 : vector<8xf32> to vector<8x1xf32>
    %228 = tpu.reciprocal %227 {approx = true} : vector<8x1xf32> -> vector<8x1xf32>
    %229 = vector.broadcast %228 : vector<8x1xf32> to vector<8x8xf32>
    %230 = arith.mulf %225, %229 : vector<8x8xf32>
    %cst_98 = arith.constant dense<0.000000e+00> : vector<8x8xf32>
    %231 = tpu.matmul %230, %211, %cst_98 {dimension_numbers = #tpu.dot_dimension_numbers<[1], [0], [0], [1], [0, 0, 1, 1], [], []>} : vector<8x8xf32>, vector<8x8xf32>, vector<8x8xf32> -> vector<8x8xf32>
    %232 = vector.extract_strided_slice %154 {offsets = [16, 0], sizes = [8, 32], strides = [1, 1]} : vector<32x32xf32> to vector<8x32xf32>
    %cst_99 = arith.constant dense<0.000000e+00> : vector<8x32xf32>
    %233 = tpu.matmul %231, %232, %cst_99 {dimension_numbers = #tpu.dot_dimension_numbers<[1], [0], [0], [1], [0, 0, 1, 1], [], []>} : vector<8x8xf32>, vector<8x32xf32>, vector<8x32xf32> -> vector<8x32xf32>
    %234 = arith.addf %208, %233 : vector<8x32xf32>
    %235 = vector.extract_strided_slice %144 {offsets = [0, 24], sizes = [8, 8], strides = [1, 1]} : vector<8x32xf32> to vector<8x8xf32>
    %236 = vector.extract_strided_slice %150 {offsets = [0, 24], sizes = [8, 8], strides = [1, 1]} : vector<8x32xf32> to vector<8x8xf32>
    %237 = vector.extract_strided_slice %151 {offsets = [0, 24], sizes = [8, 8], strides = [1, 1]} : vector<8x32xf32> to vector<8x8xf32>
    %cst_100 = arith.constant dense<0.000000e+00> : vector<8x8xf32>
    %238 = tpu.matmul %235, %236, %cst_100 {dimension_numbers = #tpu.dot_dimension_numbers<[1], [1], [0], [0], [0, 0, 1, 0], [], []>} : vector<8x8xf32>, vector<8x8xf32>, vector<8x8xf32> -> vector<8x8xf32>
    %cst_101 = arith.constant 0.353553385 : f32
    %239 = vector.broadcast %cst_101 : f32 to vector<8x8xf32>
    %240 = arith.mulf %238, %239 : vector<8x8xf32>
    %cst_102 = arith.constant 0.000000e+00 : f32
    %241 = vector.broadcast %cst_102 : f32 to vector<1x8xf32>
    %242 = arith.cmpf ogt, %153, %241 : vector<1x8xf32>
    %cst_103 = arith.constant -1.000000e+09 : f32
    %243 = vector.shape_cast %242 : vector<1x8xi1> to vector<1x8xi1>
    %244 = vector.broadcast %243 : vector<1x8xi1> to vector<8x8xi1>
    %245 = vector.broadcast %cst_103 : f32 to vector<8x8xf32>
    %246 = arith.select %244, %240, %245 : vector<8x8xi1>, vector<8x8xf32>
    %cst_104 = arith.constant dense<0xFF800000> : vector<8xf32>
    %247 = vector.multi_reduction <maximumf>, %246, %cst_104 [1] : vector<8x8xf32> to vector<8xf32>
    %248 = vector.shape_cast %247 : vector<8xf32> to vector<8x1xf32>
    %249 = vector.broadcast %248 : vector<8x1xf32> to vector<8x8xf32>
    %250 = arith.subf %246, %249 : vector<8x8xf32>
    %251 = math.exp %250 : vector<8x8xf32>
    %cst_105 = arith.constant dense<0.000000e+00> : vector<8xf32>
    %252 = vector.multi_reduction <add>, %251, %cst_105 [1] : vector<8x8xf32> to vector<8xf32>
    %253 = vector.shape_cast %252 : vector<8xf32> to vector<8x1xf32>
    %254 = tpu.reciprocal %253 {approx = true} : vector<8x1xf32> -> vector<8x1xf32>
    %255 = vector.broadcast %254 : vector<8x1xf32> to vector<8x8xf32>
    %256 = arith.mulf %251, %255 : vector<8x8xf32>
    %cst_106 = arith.constant dense<0.000000e+00> : vector<8x8xf32>
    %257 = tpu.matmul %256, %237, %cst_106 {dimension_numbers = #tpu.dot_dimension_numbers<[1], [0], [0], [1], [0, 0, 1, 1], [], []>} : vector<8x8xf32>, vector<8x8xf32>, vector<8x8xf32> -> vector<8x8xf32>
    %258 = vector.extract_strided_slice %154 {offsets = [24, 0], sizes = [8, 32], strides = [1, 1]} : vector<32x32xf32> to vector<8x32xf32>
    %cst_107 = arith.constant dense<0.000000e+00> : vector<8x32xf32>
    %259 = tpu.matmul %257, %258, %cst_107 {dimension_numbers = #tpu.dot_dimension_numbers<[1], [0], [0], [1], [0, 0, 1, 1], [], []>} : vector<8x8xf32>, vector<8x32xf32>, vector<8x32xf32> -> vector<8x32xf32>
    %260 = arith.addf %234, %259 : vector<8x32xf32>
    %261 = vector.broadcast %155 : vector<1x32xf32> to vector<8x32xf32>
    %262 = arith.addf %260, %261 : vector<8x32xf32>
    %263 = arith.addf %139, %262 : vector<8x32xf32>
    %c0_108 = arith.constant 0 : index
    %c0_109 = arith.constant 0 : index
    %264 = vector.load %arg17[%c0_108, %c0_109] : memref<1x32xf32, #tpu.memory_space<vmem>>, vector<1x32xf32>
    %c0_110 = arith.constant 0 : index
    %c0_111 = arith.constant 0 : index
    %265 = vector.load %arg18[%c0_110, %c0_111] : memref<1x32xf32, #tpu.memory_space<vmem>>, vector<1x32xf32>
    %cst_112 = arith.constant dense<0.000000e+00> : vector<8xf32>
    %266 = vector.multi_reduction <add>, %263, %cst_112 [1] : vector<8x32xf32> to vector<8xf32>
    %267 = vector.shape_cast %266 : vector<8xf32> to vector<8x1xf32>
    %cst_113 = arith.constant 3.200000e+01 : f32
    %268 = vector.broadcast %cst_113 : f32 to vector<8x1xf32>
    %269 = arith.divf %267, %268 : vector<8x1xf32>
    %270 = vector.broadcast %269 : vector<8x1xf32> to vector<8x32xf32>
    %271 = arith.subf %263, %270 : vector<8x32xf32>
    %272 = arith.mulf %271, %271 : vector<8x32xf32>
    %cst_114 = arith.constant dense<0.000000e+00> : vector<8xf32>
    %273 = vector.multi_reduction <add>, %272, %cst_114 [1] : vector<8x32xf32> to vector<8xf32>
    %274 = vector.shape_cast %273 : vector<8xf32> to vector<8x1xf32>
    %cst_115 = arith.constant 3.200000e+01 : f32
    %275 = vector.broadcast %cst_115 : f32 to vector<8x1xf32>
    %276 = arith.divf %274, %275 : vector<8x1xf32>
    %277 = vector.broadcast %269 : vector<8x1xf32> to vector<8x32xf32>
    %278 = arith.subf %263, %277 : vector<8x32xf32>
    %cst_116 = arith.constant 9.99999974E-6 : f32
    %279 = vector.broadcast %cst_116 : f32 to vector<8x1xf32>
    %280 = arith.addf %276, %279 : vector<8x1xf32>
    %281 = math.rsqrt %280 : vector<8x1xf32>
    %282 = vector.broadcast %281 : vector<8x1xf32> to vector<8x32xf32>
    %283 = arith.mulf %278, %282 : vector<8x32xf32>
    %284 = vector.broadcast %264 : vector<1x32xf32> to vector<8x32xf32>
    %285 = arith.mulf %283, %284 : vector<8x32xf32>
    %286 = vector.broadcast %265 : vector<1x32xf32> to vector<8x32xf32>
    %287 = arith.addf %285, %286 : vector<8x32xf32>
    %c0_117 = arith.constant 0 : index
    %c0_118 = arith.constant 0 : index
    %288 = vector.load %arg19[%c0_117, %c0_118] : memref<32x64xf32, #tpu.memory_space<vmem>>, vector<32x64xf32>
    %cst_119 = arith.constant dense<0.000000e+00> : vector<8x64xf32>
    %289 = tpu.matmul %287, %288, %cst_119 {dimension_numbers = #tpu.dot_dimension_numbers<[1], [0], [0], [1], [0, 0, 1, 1], [], []>} : vector<8x32xf32>, vector<32x64xf32>, vector<8x64xf32> -> vector<8x64xf32>
    %c0_120 = arith.constant 0 : index
    %c0_121 = arith.constant 0 : index
    %290 = vector.load %arg20[%c0_120, %c0_121] : memref<1x64xf32, #tpu.memory_space<vmem>>, vector<1x64xf32>
    %291 = vector.broadcast %290 : vector<1x64xf32> to vector<8x64xf32>
    %292 = arith.addf %289, %291 : vector<8x64xf32>
    %cst_122 = arith.constant 0.000000e+00 : f32
    %293 = vector.broadcast %cst_122 : f32 to vector<8x64xf32>
    %294 = arith.maximumf %292, %293 : vector<8x64xf32>
    %c0_123 = arith.constant 0 : index
    %c0_124 = arith.constant 0 : index
    %295 = vector.load %arg21[%c0_123, %c0_124] : memref<64x32xf32, #tpu.memory_space<vmem>>, vector<64x32xf32>
    %cst_125 = arith.constant dense<0.000000e+00> : vector<8x32xf32>
    %296 = tpu.matmul %294, %295, %cst_125 {dimension_numbers = #tpu.dot_dimension_numbers<[1], [0], [0], [1], [0, 0, 1, 1], [], []>} : vector<8x64xf32>, vector<64x32xf32>, vector<8x32xf32> -> vector<8x32xf32>
    %c0_126 = arith.constant 0 : index
    %c0_127 = arith.constant 0 : index
    %297 = vector.load %arg22[%c0_126, %c0_127] : memref<1x32xf32, #tpu.memory_space<vmem>>, vector<1x32xf32>
    %298 = vector.broadcast %297 : vector<1x32xf32> to vector<8x32xf32>
    %299 = arith.addf %296, %298 : vector<8x32xf32>
    %300 = arith.addf %287, %299 : vector<8x32xf32>
    %c0_128 = arith.constant 0 : index
    %c0_129 = arith.constant 0 : index
    %301 = vector.load %arg23[%c0_128, %c0_129] : memref<1x32xf32, #tpu.memory_space<vmem>>, vector<1x32xf32>
    %c0_130 = arith.constant 0 : index
    %c0_131 = arith.constant 0 : index
    %302 = vector.load %arg24[%c0_130, %c0_131] : memref<1x32xf32, #tpu.memory_space<vmem>>, vector<1x32xf32>
    %cst_132 = arith.constant dense<0.000000e+00> : vector<8xf32>
    %303 = vector.multi_reduction <add>, %300, %cst_132 [1] : vector<8x32xf32> to vector<8xf32>
    %304 = vector.shape_cast %303 : vector<8xf32> to vector<8x1xf32>
    %cst_133 = arith.constant 3.200000e+01 : f32
    %305 = vector.broadcast %cst_133 : f32 to vector<8x1xf32>
    %306 = arith.divf %304, %305 : vector<8x1xf32>
    %307 = vector.broadcast %306 : vector<8x1xf32> to vector<8x32xf32>
    %308 = arith.subf %300, %307 : vector<8x32xf32>
    %309 = arith.mulf %308, %308 : vector<8x32xf32>
    %cst_134 = arith.constant dense<0.000000e+00> : vector<8xf32>
    %310 = vector.multi_reduction <add>, %309, %cst_134 [1] : vector<8x32xf32> to vector<8xf32>
    %311 = vector.shape_cast %310 : vector<8xf32> to vector<8x1xf32>
    %cst_135 = arith.constant 3.200000e+01 : f32
    %312 = vector.broadcast %cst_135 : f32 to vector<8x1xf32>
    %313 = arith.divf %311, %312 : vector<8x1xf32>
    %314 = vector.broadcast %306 : vector<8x1xf32> to vector<8x32xf32>
    %315 = arith.subf %300, %314 : vector<8x32xf32>
    %cst_136 = arith.constant 9.99999974E-6 : f32
    %316 = vector.broadcast %cst_136 : f32 to vector<8x1xf32>
    %317 = arith.addf %313, %316 : vector<8x1xf32>
    %318 = math.rsqrt %317 : vector<8x1xf32>
    %319 = vector.broadcast %318 : vector<8x1xf32> to vector<8x32xf32>
    %320 = arith.mulf %315, %319 : vector<8x32xf32>
    %321 = vector.broadcast %301 : vector<1x32xf32> to vector<8x32xf32>
    %322 = arith.mulf %320, %321 : vector<8x32xf32>
    %323 = vector.broadcast %302 : vector<1x32xf32> to vector<8x32xf32>
    %324 = arith.addf %322, %323 : vector<8x32xf32>
    %c0_137 = arith.constant 0 : index
    %c0_138 = arith.constant 0 : index
    %c0_139 = arith.constant 0 : index
    %325 = vector.load %arg25[%c0_137, %c0_138, %c0_139] : memref<1x8x32xf32, #tpu.memory_space<vmem>>, vector<1x8x32xf32>
    %326 = vector.shape_cast %325 : vector<1x8x32xf32> to vector<8x32xf32>
    %327 = vector.shape_cast %324 : vector<8x32xf32> to vector<1x8x32xf32>
    tpu.vector_store %arg25[%c0_137, %c0_138, %c0_139], %327 {strides = array<i32>} : memref<1x8x32xf32, #tpu.memory_space<vmem>>, vector<1x8x32xf32>,
    return
  }
  func.func @transform_0(%arg0: i32) -> (i32, i32, i32) {
    %c0_i32 = arith.constant 0 : i32
    %c0_i32_0 = arith.constant 0 : i32
    %c0_i32_1 = arith.constant 0 : i32
    return %arg0, %c0_i32, %c0_i32_0 : i32, i32, i32
  }
  func.func @transform_1(%arg0: i32) -> (i32, i32, i32) {
    %c0_i32 = arith.constant 0 : i32
    %c0_i32_0 = arith.constant 0 : i32
    %c0_i32_1 = arith.constant 0 : i32
    return %arg0, %c0_i32, %c0_i32_0 : i32, i32, i32
  }
  func.func @transform_2(%arg0: i32) -> (i32, i32, i32) {
    %c0_i32 = arith.constant 0 : i32
    %c0_i32_0 = arith.constant 0 : i32
    %c0_i32_1 = arith.constant 0 : i32
    return %arg0, %c0_i32, %c0_i32_0 : i32, i32, i32
  }
  func.func @transform_3(%arg0: i32) -> (i32, i32, i32) {
    %c0_i32 = arith.constant 0 : i32
    %c0_i32_0 = arith.constant 0 : i32
    %c0_i32_1 = arith.constant 0 : i32
    return %arg0, %c0_i32, %c0_i32_0 : i32, i32, i32
  }
  func.func @transform_4(%arg0: i32) -> (i32, i32) {
    %c0_i32 = arith.constant 0 : i32
    %c0_i32_0 = arith.constant 0 : i32
    %c0_i32_1 = arith.constant 0 : i32
    return %c0_i32, %c0_i32_0 : i32, i32
  }
  func.func @transform_5(%arg0: i32) -> (i32, i32) {
    %c0_i32 = arith.constant 0 : i32
    %c0_i32_0 = arith.constant 0 : i32
    %c0_i32_1 = arith.constant 0 : i32
    return %c0_i32, %c0_i32_0 : i32, i32
  }
  func.func @transform_6(%arg0: i32) -> (i32, i32) {
    %c0_i32 = arith.constant 0 : i32
    %c0_i32_0 = arith.constant 0 : i32
    %c0_i32_1 = arith.constant 0 : i32
    return %c0_i32, %c0_i32_0 : i32, i32
  }
  func.func @transform_7(%arg0: i32) -> (i32, i32) {
    %c0_i32 = arith.constant 0 : i32
    %c0_i32_0 = arith.constant 0 : i32
    %c0_i32_1 = arith.constant 0 : i32
    return %c0_i32, %c0_i32_0 : i32, i32
  }
  func.func @transform_8(%arg0: i32) -> (i32, i32) {
    %c0_i32 = arith.constant 0 : i32
    %c0_i32_0 = arith.constant 0 : i32
    %c0_i32_1 = arith.constant 0 : i32
    return %c0_i32, %c0_i32_0 : i32, i32
  }
  func.func @transform_9(%arg0: i32) -> (i32, i32) {
    %c0_i32 = arith.constant 0 : i32
    %c0_i32_0 = arith.constant 0 : i32
    %c0_i32_1 = arith.constant 0 : i32
    return %c0_i32, %c0_i32_0 : i32, i32
  }
  func.func @transform_10(%arg0: i32) -> (i32, i32) {
    %c0_i32 = arith.constant 0 : i32
    %c0_i32_0 = arith.constant 0 : i32
    %c0_i32_1 = arith.constant 0 : i32
    return %c0_i32, %c0_i32_0 : i32, i32
  }
  func.func @transform_11(%arg0: i32) -> (i32, i32) {
    %c0_i32 = arith.constant 0 : i32
    %c0_i32_0 = arith.constant 0 : i32
    %c0_i32_1 = arith.constant 0 : i32
    return %c0_i32, %c0_i32_0 : i32, i32
  }
  func.func @transform_12(%arg0: i32) -> (i32, i32) {
    %c0_i32 = arith.constant 0 : i32
    %c0_i32_0 = arith.constant 0 : i32
    %c0_i32_1 = arith.constant 0 : i32
    return %c0_i32, %c0_i32_0 : i32, i32
  }
  func.func @transform_13(%arg0: i32) -> (i32, i32) {
    %c0_i32 = arith.constant 0 : i32
    %c0_i32_0 = arith.constant 0 : i32
    %c0_i32_1 = arith.constant 0 : i32
    return %c0_i32, %c0_i32_0 : i32, i32
  }
  func.func @transform_14(%arg0: i32) -> (i32, i32) {
    %c0_i32 = arith.constant 0 : i32
    %c0_i32_0 = arith.constant 0 : i32
    %c0_i32_1 = arith.constant 0 : i32
    return %c0_i32, %c0_i32_0 : i32, i32
  }
  func.func @transform_15(%arg0: i32) -> (i32, i32) {
    %c0_i32 = arith.constant 0 : i32
    %c0_i32_0 = arith.constant 0 : i32
    %c0_i32_1 = arith.constant 0 : i32
    return %c0_i32, %c0_i32_0 : i32, i32
  }
  func.func @transform_16(%arg0: i32) -> (i32, i32) {
    %c0_i32 = arith.constant 0 : i32
    %c0_i32_0 = arith.constant 0 : i32
    %c0_i32_1 = arith.constant 0 : i32
    return %c0_i32, %c0_i32_0 : i32, i32
  }
  func.func @transform_17(%arg0: i32) -> (i32, i32) {
    %c0_i32 = arith.constant 0 : i32
    %c0_i32_0 = arith.constant 0 : i32
    %c0_i32_1 = arith.constant 0 : i32
    return %c0_i32, %c0_i32_0 : i32, i32
  }
  func.func @transform_18(%arg0: i32) -> (i32, i32) {
    %c0_i32 = arith.constant 0 : i32
    %c0_i32_0 = arith.constant 0 : i32
    %c0_i32_1 = arith.constant 0 : i32
    return %c0_i32, %c0_i32_0 : i32, i32
  }
  func.func @transform_19(%arg0: i32) -> (i32, i32) {
    %c0_i32 = arith.constant 0 : i32
    %c0_i32_0 = arith.constant 0 : i32
    %c0_i32_1 = arith.constant 0 : i32
    return %c0_i32, %c0_i32_0 : i32, i32
  }
  func.func @transform_20(%arg0: i32) -> (i32, i32) {
    %c0_i32 = arith.constant 0 : i32
    %c0_i32_0 = arith.constant 0 : i32
    %c0_i32_1 = arith.constant 0 : i32
    return %c0_i32, %c0_i32_0 : i32, i32
  }
  func.func @transform_21(%arg0: i32) -> (i32, i32) {
    %c0_i32 = arith.constant 0 : i32
    %c0_i32_0 = arith.constant 0 : i32
    %c0_i32_1 = arith.constant 0 : i32
    return %c0_i32, %c0_i32_0 : i32, i32
  }
  func.func @transform_22(%arg0: i32) -> (i32, i32) {
    %c0_i32 = arith.constant 0 : i32
    %c0_i32_0 = arith.constant 0 : i32
    %c0_i32_1 = arith.constant 0 : i32
    return %c0_i32, %c0_i32_0 : i32, i32
  }
  func.func @transform_23(%arg0: i32) -> (i32, i32) {
    %c0_i32 = arith.constant 0 : i32
    %c0_i32_0 = arith.constant 0 : i32
    %c0_i32_1 = arith.constant 0 : i32
    return %c0_i32, %c0_i32_0 : i32, i32
  }
  func.func @transform_24(%arg0: i32) -> (i32, i32, i32) {
    %c0_i32 = arith.constant 0 : i32
    %c0_i32_0 = arith.constant 0 : i32
    %c0_i32_1 = arith.constant 0 : i32
    return %arg0, %c0_i32, %c0_i32_0 : i32, i32, i32
  }
}

module attributes {stable_mosaic.version = 11 : i64} {
  func.func @_linear_kernel(%arg0: memref<16x32xf32, #tpu.memory_space<vmem>>, %arg1: memref<32x16xf32, #tpu.memory_space<vmem>>, %arg2: memref<1x16xf32, #tpu.memory_space<vmem>>, %arg3: memref<16x16xf32, #tpu.memory_space<vmem>>) attributes {dimension_semantics = [], scalar_prefetch = 0 : i64, scratch_operands = 0 : i64, tpu.core_type = #tpu.core_type<tc>} {
    %c0 = arith.constant 0 : index
    %c0_0 = arith.constant 0 : index
    %0 = vector.load %arg0[%c0, %c0_0] : memref<16x32xf32, #tpu.memory_space<vmem>>, vector<16x32xf32>
    %c0_1 = arith.constant 0 : index
    %c0_2 = arith.constant 0 : index
    %1 = vector.load %arg1[%c0_1, %c0_2] : memref<32x16xf32, #tpu.memory_space<vmem>>, vector<32x16xf32>
    %cst = arith.constant dense<0.000000e+00> : vector<16x16xf32>
    %2 = tpu.matmul %0, %1, %cst {dimension_numbers = #tpu.dot_dimension_numbers<[1], [0], [0], [1], [0, 0, 1, 1], [], []>} : vector<16x32xf32>, vector<32x16xf32>, vector<16x16xf32> -> vector<16x16xf32>
    %c0_3 = arith.constant 0 : index
    %c0_4 = arith.constant 0 : index
    %3 = vector.load %arg2[%c0_3, %c0_4] : memref<1x16xf32, #tpu.memory_space<vmem>>, vector<1x16xf32>
    %4 = vector.broadcast %3 : vector<1x16xf32> to vector<16x16xf32>
    %5 = arith.addf %2, %4 : vector<16x16xf32>
    %c0_5 = arith.constant 0 : index
    %c0_6 = arith.constant 0 : index
    %6 = vector.load %arg3[%c0_5, %c0_6] : memref<16x16xf32, #tpu.memory_space<vmem>>, vector<16x16xf32>
    tpu.vector_store %arg3[%c0_5, %c0_6], %5 {strides = array<i32>} : memref<16x16xf32, #tpu.memory_space<vmem>>, vector<16x16xf32>,
    return
  }
}

module attributes {stable_mosaic.version = 11 : i64} {
  func.func @_self_layer_kernel(%arg0: i32, %arg1: memref<1x8x32xf32, #tpu.memory_space<vmem>>, %arg2: memref<1x1x8xf32, #tpu.memory_space<vmem>>, %arg3: memref<32x96xf32, #tpu.memory_space<vmem>>, %arg4: memref<1x96xf32, #tpu.memory_space<vmem>>, %arg5: memref<32x32xf32, #tpu.memory_space<vmem>>, %arg6: memref<1x32xf32, #tpu.memory_space<vmem>>, %arg7: memref<1x32xf32, #tpu.memory_space<vmem>>, %arg8: memref<1x32xf32, #tpu.memory_space<vmem>>, %arg9: memref<32x64xf32, #tpu.memory_space<vmem>>, %arg10: memref<1x64xf32, #tpu.memory_space<vmem>>, %arg11: memref<64x32xf32, #tpu.memory_space<vmem>>, %arg12: memref<1x32xf32, #tpu.memory_space<vmem>>, %arg13: memref<1x32xf32, #tpu.memory_space<vmem>>, %arg14: memref<1x32xf32, #tpu.memory_space<vmem>>, %arg15: memref<1x8x32xf32, #tpu.memory_space<vmem>>) attributes {dimension_semantics = [#tpu.dimension_semantics<parallel>], iteration_bounds = array<i64: 2>, scalar_prefetch = 0 : i64, scratch_operands = 0 : i64, tpu.core_type = #tpu.core_type<tc>, window_params = [{transform_indices = @transform_0, window_bounds = array<i64: 1, 8, 32>}, {transform_indices = @transform_1, window_bounds = array<i64: 1, 1, 8>}, {pipeline_mode = #tpu.pipeline_mode<synchronous>, transform_indices = @transform_2, window_bounds = array<i64: 32, 96>}, {pipeline_mode = #tpu.pipeline_mode<synchronous>, transform_indices = @transform_3, window_bounds = array<i64: 1, 96>}, {pipeline_mode = #tpu.pipeline_mode<synchronous>, transform_indices = @transform_4, window_bounds = array<i64: 32, 32>}, {pipeline_mode = #tpu.pipeline_mode<synchronous>, transform_indices = @transform_5, window_bounds = array<i64: 1, 32>}, {pipeline_mode = #tpu.pipeline_mode<synchronous>, transform_indices = @transform_6, window_bounds = array<i64: 1, 32>}, {pipeline_mode = #tpu.pipeline_mode<synchronous>, transform_indices = @transform_7, window_bounds = array<i64: 1, 32>}, {pipeline_mode = #tpu.pipeline_mode<synchronous>, transform_indices = @transform_8, window_bounds = array<i64: 32, 64>}, {pipeline_mode = #tpu.pipeline_mode<synchronous>, transform_indices = @transform_9, window_bounds = array<i64: 1, 64>}, {pipeline_mode = #tpu.pipeline_mode<synchronous>, transform_indices = @transform_10, window_bounds = array<i64: 64, 32>}, {pipeline_mode = #tpu.pipeline_mode<synchronous>, transform_indices = @transform_11, window_bounds = array<i64: 1, 32>}, {pipeline_mode = #tpu.pipeline_mode<synchronous>, transform_indices = @transform_12, window_bounds = array<i64: 1, 32>}, {pipeline_mode = #tpu.pipeline_mode<synchronous>, transform_indices = @transform_13, window_bounds = array<i64: 1, 32>}, {transform_indices = @transform_14, window_bounds = array<i64: 1, 8, 32>}]} {
    %c0 = arith.constant 0 : index
    %c0_0 = arith.constant 0 : index
    %c0_1 = arith.constant 0 : index
    %0 = vector.load %arg1[%c0, %c0_0, %c0_1] : memref<1x8x32xf32, #tpu.memory_space<vmem>>, vector<1x8x32xf32>
    %1 = vector.shape_cast %0 : vector<1x8x32xf32> to vector<8x32xf32>
    %c0_2 = arith.constant 0 : index
    %c0_3 = arith.constant 0 : index
    %c0_4 = arith.constant 0 : index
    %2 = vector.load %arg2[%c0_2, %c0_3, %c0_4] : memref<1x1x8xf32, #tpu.memory_space<vmem>>, vector<1x1x8xf32>
    %3 = vector.shape_cast %2 : vector<1x1x8xf32> to vector<1x8xf32>
    %c0_5 = arith.constant 0 : index
    %c0_6 = arith.constant 0 : index
    %4 = vector.load %arg3[%c0_5, %c0_6] : memref<32x96xf32, #tpu.memory_space<vmem>>, vector<32x96xf32>
    %cst = arith.constant dense<0.000000e+00> : vector<8x96xf32>
    %5 = tpu.matmul %1, %4, %cst {dimension_numbers = #tpu.dot_dimension_numbers<[1], [0], [0], [1], [0, 0, 1, 1], [], []>} : vector<8x32xf32>, vector<32x96xf32>, vector<8x96xf32> -> vector<8x96xf32>
    %c0_7 = arith.constant 0 : index
    %c0_8 = arith.constant 0 : index
    %6 = vector.load %arg4[%c0_7, %c0_8] : memref<1x96xf32, #tpu.memory_space<vmem>>, vector<1x96xf32>
    %7 = vector.broadcast %6 : vector<1x96xf32> to vector<8x96xf32>
    %8 = arith.addf %5, %7 : vector<8x96xf32>
    %9 = vector.extract_strided_slice %8 {offsets = [0, 0], sizes = [8, 32], strides = [1, 1]} : vector<8x96xf32> to vector<8x32xf32>
    %10 = vector.extract_strided_slice %8 {offsets = [0, 32], sizes = [8, 32], strides = [1, 1]} : vector<8x96xf32> to vector<8x32xf32>
    %11 = vector.extract_strided_slice %8 {offsets = [0, 64], sizes = [8, 32], strides = [1, 1]} : vector<8x96xf32> to vector<8x32xf32>
    %c0_9 = arith.constant 0 : index
    %c0_10 = arith.constant 0 : index
    %12 = vector.load %arg5[%c0_9, %c0_10] : memref<32x32xf32, #tpu.memory_space<vmem>>, vector<32x32xf32>
    %c0_11 = arith.constant 0 : index
    %c0_12 = arith.constant 0 : index
    %13 = vector.load %arg6[%c0_11, %c0_12] : memref<1x32xf32, #tpu.memory_space<vmem>>, vector<1x32xf32>
    %cst_13 = arith.constant 0.000000e+00 : f32
    %14 = vector.broadcast %cst_13 : f32 to vector<8x32xf32>
    %15 = vector.extract_strided_slice %9 {offsets = [0, 0], sizes = [8, 8], strides = [1, 1]} : vector<8x32xf32> to vector<8x8xf32>
    %16 = vector.extract_strided_slice %10 {offsets = [0, 0], sizes = [8, 8], strides = [1, 1]} : vector<8x32xf32> to vector<8x8xf32>
    %17 = vector.extract_strided_slice %11 {offsets = [0, 0], sizes = [8, 8], strides = [1, 1]} : vector<8x32xf32> to vector<8x8xf32>
    %cst_14 = arith.constant dense<0.000000e+00> : vector<8x8xf32>
    %18 = tpu.matmul %15, %16, %cst_14 {dimension_numbers = #tpu.dot_dimension_numbers<[1], [1], [0], [0], [0, 0, 1, 0], [], []>} : vector<8x8xf32>, vector<8x8xf32>, vector<8x8xf32> -> vector<8x8xf32>
    %cst_15 = arith.constant 0.353553385 : f32
    %19 = vector.broadcast %cst_15 : f32 to vector<8x8xf32>
    %20 = arith.mulf %18, %19 : vector<8x8xf32>
    %cst_16 = arith.constant 0.000000e+00 : f32
    %21 = vector.broadcast %cst_16 : f32 to vector<1x8xf32>
    %22 = arith.cmpf ogt, %3, %21 : vector<1x8xf32>
    %cst_17 = arith.constant -1.000000e+09 : f32
    %23 = vector.shape_cast %22 : vector<1x8xi1> to vector<1x8xi1>
    %24 = vector.broadcast %23 : vector<1x8xi1> to vector<8x8xi1>
    %25 = vector.broadcast %cst_17 : f32 to vector<8x8xf32>
    %26 = arith.select %24, %20, %25 : vector<8x8xi1>, vector<8x8xf32>
    %cst_18 = arith.constant dense<0xFF800000> : vector<8xf32>
    %27 = vector.multi_reduction <maximumf>, %26, %cst_18 [1] : vector<8x8xf32> to vector<8xf32>
    %28 = vector.shape_cast %27 : vector<8xf32> to vector<8x1xf32>
    %29 = vector.broadcast %28 : vector<8x1xf32> to vector<8x8xf32>
    %30 = arith.subf %26, %29 : vector<8x8xf32>
    %31 = math.exp %30 : vector<8x8xf32>
    %cst_19 = arith.constant dense<0.000000e+00> : vector<8xf32>
    %32 = vector.multi_reduction <add>, %31, %cst_19 [1] : vector<8x8xf32> to vector<8xf32>
    %33 = vector.shape_cast %32 : vector<8xf32> to vector<8x1xf32>
    %34 = tpu.reciprocal %33 {approx = true} : vector<8x1xf32> -> vector<8x1xf32>
    %35 = vector.broadcast %34 : vector<8x1xf32> to vector<8x8xf32>
    %36 = arith.mulf %31, %35 : vector<8x8xf32>
    %cst_20 = arith.constant dense<0.000000e+00> : vector<8x8xf32>
    %37 = tpu.matmul %36, %17, %cst_20 {dimension_numbers = #tpu.dot_dimension_numbers<[1], [0], [0], [1], [0, 0, 1, 1], [], []>} : vector<8x8xf32>, vector<8x8xf32>, vector<8x8xf32> -> vector<8x8xf32>
    %38 = vector.extract_strided_slice %12 {offsets = [0, 0], sizes = [8, 32], strides = [1, 1]} : vector<32x32xf32> to vector<8x32xf32>
    %cst_21 = arith.constant dense<0.000000e+00> : vector<8x32xf32>
    %39 = tpu.matmul %37, %38, %cst_21 {dimension_numbers = #tpu.dot_dimension_numbers<[1], [0], [0], [1], [0, 0, 1, 1], [], []>} : vector<8x8xf32>, vector<8x32xf32>, vector<8x32xf32> -> vector<8x32xf32>
    %40 = arith.addf %14, %39 : vector<8x32xf32>
    %41 = vector.extract_strided_slice %9 {offsets = [0, 8], sizes = [8, 8], strides = [1, 1]} : vector<8x32xf32> to vector<8x8xf32>
    %42 = vector.extract_strided_slice %10 {offsets = [0, 8], sizes = [8, 8], strides = [1, 1]} : vector<8x32xf32> to vector<8x8xf32>
    %43 = vector.extract_strided_slice %11 {offsets = [0, 8], sizes = [8, 8], strides = [1, 1]} : vector<8x32xf32> to vector<8x8xf32>
    %cst_22 = arith.constant dense<0.000000e+00> : vector<8x8xf32>
    %44 = tpu.matmul %41, %42, %cst_22 {dimension_numbers = #tpu.dot_dimension_numbers<[1], [1], [0], [0], [0, 0, 1, 0], [], []>} : vector<8x8xf32>, vector<8x8xf32>, vector<8x8xf32> -> vector<8x8xf32>
    %cst_23 = arith.constant 0.353553385 : f32
    %45 = vector.broadcast %cst_23 : f32 to vector<8x8xf32>
    %46 = arith.mulf %44, %45 : vector<8x8xf32>
    %cst_24 = arith.constant 0.000000e+00 : f32
    %47 = vector.broadcast %cst_24 : f32 to vector<1x8xf32>
    %48 = arith.cmpf ogt, %3, %47 : vector<1x8xf32>
    %cst_25 = arith.constant -1.000000e+09 : f32
    %49 = vector.shape_cast %48 : vector<1x8xi1> to vector<1x8xi1>
    %50 = vector.broadcast %49 : vector<1x8xi1> to vector<8x8xi1>
    %51 = vector.broadcast %cst_25 : f32 to vector<8x8xf32>
    %52 = arith.select %50, %46, %51 : vector<8x8xi1>, vector<8x8xf32>
    %cst_26 = arith.constant dense<0xFF800000> : vector<8xf32>
    %53 = vector.multi_reduction <maximumf>, %52, %cst_26 [1] : vector<8x8xf32> to vector<8xf32>
    %54 = vector.shape_cast %53 : vector<8xf32> to vector<8x1xf32>
    %55 = vector.broadcast %54 : vector<8x1xf32> to vector<8x8xf32>
    %56 = arith.subf %52, %55 : vector<8x8xf32>
    %57 = math.exp %56 : vector<8x8xf32>
    %cst_27 = arith.constant dense<0.000000e+00> : vector<8xf32>
    %58 = vector.multi_reduction <add>, %57, %cst_27 [1] : vector<8x8xf32> to vector<8xf32>
    %59 = vector.shape_cast %58 : vector<8xf32> to vector<8x1xf32>
    %60 = tpu.reciprocal %59 {approx = true} : vector<8x1xf32> -> vector<8x1xf32>
    %61 = vector.broadcast %60 : vector<8x1xf32> to vector<8x8xf32>
    %62 = arith.mulf %57, %61 : vector<8x8xf32>
    %cst_28 = arith.constant dense<0.000000e+00> : vector<8x8xf32>
    %63 = tpu.matmul %62, %43, %cst_28 {dimension_numbers = #tpu.dot_dimension_numbers<[1], [0], [0], [1], [0, 0, 1, 1], [], []>} : vector<8x8xf32>, vector<8x8xf32>, vector<8x8xf32> -> vector<8x8xf32>
    %64 = vector.extract_strided_slice %12 {offsets = [8, 0], sizes = [8, 32], strides = [1, 1]} : vector<32x32xf32> to vector<8x32xf32>
    %cst_29 = arith.constant dense<0.000000e+00> : vector<8x32xf32>
    %65 = tpu.matmul %63, %64, %cst_29 {dimension_numbers = #tpu.dot_dimension_numbers<[1], [0], [0], [1], [0, 0, 1, 1], [], []>} : vector<8x8xf32>, vector<8x32xf32>, vector<8x32xf32> -> vector<8x32xf32>
    %66 = arith.addf %40, %65 : vector<8x32xf32>
    %67 = vector.extract_strided_slice %9 {offsets = [0, 16], sizes = [8, 8], strides = [1, 1]} : vector<8x32xf32> to vector<8x8xf32>
    %68 = vector.extract_strided_slice %10 {offsets = [0, 16], sizes = [8, 8], strides = [1, 1]} : vector<8x32xf32> to vector<8x8xf32>
    %69 = vector.extract_strided_slice %11 {offsets = [0, 16], sizes = [8, 8], strides = [1, 1]} : vector<8x32xf32> to vector<8x8xf32>
    %cst_30 = arith.constant dense<0.000000e+00> : vector<8x8xf32>
    %70 = tpu.matmul %67, %68, %cst_30 {dimension_numbers = #tpu.dot_dimension_numbers<[1], [1], [0], [0], [0, 0, 1, 0], [], []>} : vector<8x8xf32>, vector<8x8xf32>, vector<8x8xf32> -> vector<8x8xf32>
    %cst_31 = arith.constant 0.353553385 : f32
    %71 = vector.broadcast %cst_31 : f32 to vector<8x8xf32>
    %72 = arith.mulf %70, %71 : vector<8x8xf32>
    %cst_32 = arith.constant 0.000000e+00 : f32
    %73 = vector.broadcast %cst_32 : f32 to vector<1x8xf32>
    %74 = arith.cmpf ogt, %3, %73 : vector<1x8xf32>
    %cst_33 = arith.constant -1.000000e+09 : f32
    %75 = vector.shape_cast %74 : vector<1x8xi1> to vector<1x8xi1>
    %76 = vector.broadcast %75 : vector<1x8xi1> to vector<8x8xi1>
    %77 = vector.broadcast %cst_33 : f32 to vector<8x8xf32>
    %78 = arith.select %76, %72, %77 : vector<8x8xi1>, vector<8x8xf32>
    %cst_34 = arith.constant dense<0xFF800000> : vector<8xf32>
    %79 = vector.multi_reduction <maximumf>, %78, %cst_34 [1] : vector<8x8xf32> to vector<8xf32>
    %80 = vector.shape_cast %79 : vector<8xf32> to vector<8x1xf32>
    %81 = vector.broadcast %80 : vector<8x1xf32> to vector<8x8xf32>
    %82 = arith.subf %78, %81 : vector<8x8xf32>
    %83 = math.exp %82 : vector<8x8xf32>
    %cst_35 = arith.constant dense<0.000000e+00> : vector<8xf32>
    %84 = vector.multi_reduction <add>, %83, %cst_35 [1] : vector<8x8xf32> to vector<8xf32>
    %85 = vector.shape_cast %84 : vector<8xf32> to vector<8x1xf32>
    %86 = tpu.reciprocal %85 {approx = true} : vector<8x1xf32> -> vector<8x1xf32>
    %87 = vector.broadcast %86 : vector<8x1xf32> to vector<8x8xf32>
    %88 = arith.mulf %83, %87 : vector<8x8xf32>
    %cst_36 = arith.constant dense<0.000000e+00> : vector<8x8xf32>
    %89 = tpu.matmul %88, %69, %cst_36 {dimension_numbers = #tpu.dot_dimension_numbers<[1], [0], [0], [1], [0, 0, 1, 1], [], []>} : vector<8x8xf32>, vector<8x8xf32>, vector<8x8xf32> -> vector<8x8xf32>
    %90 = vector.extract_strided_slice %12 {offsets = [16, 0], sizes = [8, 32], strides = [1, 1]} : vector<32x32xf32> to vector<8x32xf32>
    %cst_37 = arith.constant dense<0.000000e+00> : vector<8x32xf32>
    %91 = tpu.matmul %89, %90, %cst_37 {dimension_numbers = #tpu.dot_dimension_numbers<[1], [0], [0], [1], [0, 0, 1, 1], [], []>} : vector<8x8xf32>, vector<8x32xf32>, vector<8x32xf32> -> vector<8x32xf32>
    %92 = arith.addf %66, %91 : vector<8x32xf32>
    %93 = vector.extract_strided_slice %9 {offsets = [0, 24], sizes = [8, 8], strides = [1, 1]} : vector<8x32xf32> to vector<8x8xf32>
    %94 = vector.extract_strided_slice %10 {offsets = [0, 24], sizes = [8, 8], strides = [1, 1]} : vector<8x32xf32> to vector<8x8xf32>
    %95 = vector.extract_strided_slice %11 {offsets = [0, 24], sizes = [8, 8], strides = [1, 1]} : vector<8x32xf32> to vector<8x8xf32>
    %cst_38 = arith.constant dense<0.000000e+00> : vector<8x8xf32>
    %96 = tpu.matmul %93, %94, %cst_38 {dimension_numbers = #tpu.dot_dimension_numbers<[1], [1], [0], [0], [0, 0, 1, 0], [], []>} : vector<8x8xf32>, vector<8x8xf32>, vector<8x8xf32> -> vector<8x8xf32>
    %cst_39 = arith.constant 0.353553385 : f32
    %97 = vector.broadcast %cst_39 : f32 to vector<8x8xf32>
    %98 = arith.mulf %96, %97 : vector<8x8xf32>
    %cst_40 = arith.constant 0.000000e+00 : f32
    %99 = vector.broadcast %cst_40 : f32 to vector<1x8xf32>
    %100 = arith.cmpf ogt, %3, %99 : vector<1x8xf32>
    %cst_41 = arith.constant -1.000000e+09 : f32
    %101 = vector.shape_cast %100 : vector<1x8xi1> to vector<1x8xi1>
    %102 = vector.broadcast %101 : vector<1x8xi1> to vector<8x8xi1>
    %103 = vector.broadcast %cst_41 : f32 to vector<8x8xf32>
    %104 = arith.select %102, %98, %103 : vector<8x8xi1>, vector<8x8xf32>
    %cst_42 = arith.constant dense<0xFF800000> : vector<8xf32>
    %105 = vector.multi_reduction <maximumf>, %104, %cst_42 [1] : vector<8x8xf32> to vector<8xf32>
    %106 = vector.shape_cast %105 : vector<8xf32> to vector<8x1xf32>
    %107 = vector.broadcast %106 : vector<8x1xf32> to vector<8x8xf32>
    %108 = arith.subf %104, %107 : vector<8x8xf32>
    %109 = math.exp %108 : vector<8x8xf32>
    %cst_43 = arith.constant dense<0.000000e+00> : vector<8xf32>
    %110 = vector.multi_reduction <add>, %109, %cst_43 [1] : vector<8x8xf32> to vector<8xf32>
    %111 = vector.shape_cast %110 : vector<8xf32> to vector<8x1xf32>
    %112 = tpu.reciprocal %111 {approx = true} : vector<8x1xf32> -> vector<8x1xf32>
    %113 = vector.broadcast %112 : vector<8x1xf32> to vector<8x8xf32>
    %114 = arith.mulf %109, %113 : vector<8x8xf32>
    %cst_44 = arith.constant dense<0.000000e+00> : vector<8x8xf32>
    %115 = tpu.matmul %114, %95, %cst_44 {dimension_numbers = #tpu.dot_dimension_numbers<[1], [0], [0], [1], [0, 0, 1, 1], [], []>} : vector<8x8xf32>, vector<8x8xf32>, vector<8x8xf32> -> vector<8x8xf32>
    %116 = vector.extract_strided_slice %12 {offsets = [24, 0], sizes = [8, 32], strides = [1, 1]} : vector<32x32xf32> to vector<8x32xf32>
    %cst_45 = arith.constant dense<0.000000e+00> : vector<8x32xf32>
    %117 = tpu.matmul %115, %116, %cst_45 {dimension_numbers = #tpu.dot_dimension_numbers<[1], [0], [0], [1], [0, 0, 1, 1], [], []>} : vector<8x8xf32>, vector<8x32xf32>, vector<8x32xf32> -> vector<8x32xf32>
    %118 = arith.addf %92, %117 : vector<8x32xf32>
    %119 = vector.broadcast %13 : vector<1x32xf32> to vector<8x32xf32>
    %120 = arith.addf %118, %119 : vector<8x32xf32>
    %121 = arith.addf %1, %120 : vector<8x32xf32>
    %c0_46 = arith.constant 0 : index
    %c0_47 = arith.constant 0 : index
    %122 = vector.load %arg7[%c0_46, %c0_47] : memref<1x32xf32, #tpu.memory_space<vmem>>, vector<1x32xf32>
    %c0_48 = arith.constant 0 : index
    %c0_49 = arith.constant 0 : index
    %123 = vector.load %arg8[%c0_48, %c0_49] : memref<1x32xf32, #tpu.memory_space<vmem>>, vector<1x32xf32>
    %cst_50 = arith.constant dense<0.000000e+00> : vector<8xf32>
    %124 = vector.multi_reduction <add>, %121, %cst_50 [1] : vector<8x32xf32> to vector<8xf32>
    %125 = vector.shape_cast %124 : vector<8xf32> to vector<8x1xf32>
    %cst_51 = arith.constant 3.200000e+01 : f32
    %126 = vector.broadcast %cst_51 : f32 to vector<8x1xf32>
    %127 = arith.divf %125, %126 : vector<8x1xf32>
    %128 = vector.broadcast %127 : vector<8x1xf32> to vector<8x32xf32>
    %129 = arith.subf %121, %128 : vector<8x32xf32>
    %130 = arith.mulf %129, %129 : vector<8x32xf32>
    %cst_52 = arith.constant dense<0.000000e+00> : vector<8xf32>
    %131 = vector.multi_reduction <add>, %130, %cst_52 [1] : vector<8x32xf32> to vector<8xf32>
    %132 = vector.shape_cast %131 : vector<8xf32> to vector<8x1xf32>
    %cst_53 = arith.constant 3.200000e+01 : f32
    %133 = vector.broadcast %cst_53 : f32 to vector<8x1xf32>
    %134 = arith.divf %132, %133 : vector<8x1xf32>
    %135 = vector.broadcast %127 : vector<8x1xf32> to vector<8x32xf32>
    %136 = arith.subf %121, %135 : vector<8x32xf32>
    %cst_54 = arith.constant 9.99999974E-6 : f32
    %137 = vector.broadcast %cst_54 : f32 to vector<8x1xf32>
    %138 = arith.addf %134, %137 : vector<8x1xf32>
    %139 = math.rsqrt %138 : vector<8x1xf32>
    %140 = vector.broadcast %139 : vector<8x1xf32> to vector<8x32xf32>
    %141 = arith.mulf %136, %140 : vector<8x32xf32>
    %142 = vector.broadcast %122 : vector<1x32xf32> to vector<8x32xf32>
    %143 = arith.mulf %141, %142 : vector<8x32xf32>
    %144 = vector.broadcast %123 : vector<1x32xf32> to vector<8x32xf32>
    %145 = arith.addf %143, %144 : vector<8x32xf32>
    %c0_55 = arith.constant 0 : index
    %c0_56 = arith.constant 0 : index
    %146 = vector.load %arg9[%c0_55, %c0_56] : memref<32x64xf32, #tpu.memory_space<vmem>>, vector<32x64xf32>
    %cst_57 = arith.constant dense<0.000000e+00> : vector<8x64xf32>
    %147 = tpu.matmul %145, %146, %cst_57 {dimension_numbers = #tpu.dot_dimension_numbers<[1], [0], [0], [1], [0, 0, 1, 1], [], []>} : vector<8x32xf32>, vector<32x64xf32>, vector<8x64xf32> -> vector<8x64xf32>
    %c0_58 = arith.constant 0 : index
    %c0_59 = arith.constant 0 : index
    %148 = vector.load %arg10[%c0_58, %c0_59] : memref<1x64xf32, #tpu.memory_space<vmem>>, vector<1x64xf32>
    %149 = vector.broadcast %148 : vector<1x64xf32> to vector<8x64xf32>
    %150 = arith.addf %147, %149 : vector<8x64xf32>
    %cst_60 = arith.constant 0.000000e+00 : f32
    %151 = vector.broadcast %cst_60 : f32 to vector<8x64xf32>
    %152 = arith.maximumf %150, %151 : vector<8x64xf32>
    %c0_61 = arith.constant 0 : index
    %c0_62 = arith.constant 0 : index
    %153 = vector.load %arg11[%c0_61, %c0_62] : memref<64x32xf32, #tpu.memory_space<vmem>>, vector<64x32xf32>
    %cst_63 = arith.constant dense<0.000000e+00> : vector<8x32xf32>
    %154 = tpu.matmul %152, %153, %cst_63 {dimension_numbers = #tpu.dot_dimension_numbers<[1], [0], [0], [1], [0, 0, 1, 1], [], []>} : vector<8x64xf32>, vector<64x32xf32>, vector<8x32xf32> -> vector<8x32xf32>
    %c0_64 = arith.constant 0 : index
    %c0_65 = arith.constant 0 : index
    %155 = vector.load %arg12[%c0_64, %c0_65] : memref<1x32xf32, #tpu.memory_space<vmem>>, vector<1x32xf32>
    %156 = vector.broadcast %155 : vector<1x32xf32> to vector<8x32xf32>
    %157 = arith.addf %154, %156 : vector<8x32xf32>
    %158 = arith.addf %145, %157 : vector<8x32xf32>
    %c0_66 = arith.constant 0 : index
    %c0_67 = arith.constant 0 : index
    %159 = vector.load %arg13[%c0_66, %c0_67] : memref<1x32xf32, #tpu.memory_space<vmem>>, vector<1x32xf32>
    %c0_68 = arith.constant 0 : index
    %c0_69 = arith.constant 0 : index
    %160 = vector.load %arg14[%c0_68, %c0_69] : memref<1x32xf32, #tpu.memory_space<vmem>>, vector<1x32xf32>
    %cst_70 = arith.constant dense<0.000000e+00> : vector<8xf32>
    %161 = vector.multi_reduction <add>, %158, %cst_70 [1] : vector<8x32xf32> to vector<8xf32>
    %162 = vector.shape_cast %161 : vector<8xf32> to vector<8x1xf32>
    %cst_71 = arith.constant 3.200000e+01 : f32
    %163 = vector.broadcast %cst_71 : f32 to vector<8x1xf32>
    %164 = arith.divf %162, %163 : vector<8x1xf32>
    %165 = vector.broadcast %164 : vector<8x1xf32> to vector<8x32xf32>
    %166 = arith.subf %158, %165 : vector<8x32xf32>
    %167 = arith.mulf %166, %166 : vector<8x32xf32>
    %cst_72 = arith.constant dense<0.000000e+00> : vector<8xf32>
    %168 = vector.multi_reduction <add>, %167, %cst_72 [1] : vector<8x32xf32> to vector<8xf32>
    %169 = vector.shape_cast %168 : vector<8xf32> to vector<8x1xf32>
    %cst_73 = arith.constant 3.200000e+01 : f32
    %170 = vector.broadcast %cst_73 : f32 to vector<8x1xf32>
    %171 = arith.divf %169, %170 : vector<8x1xf32>
    %172 = vector.broadcast %164 : vector<8x1xf32> to vector<8x32xf32>
    %173 = arith.subf %158, %172 : vector<8x32xf32>
    %cst_74 = arith.constant 9.99999974E-6 : f32
    %174 = vector.broadcast %cst_74 : f32 to vector<8x1xf32>
    %175 = arith.addf %171, %174 : vector<8x1xf32>
    %176 = math.rsqrt %175 : vector<8x1xf32>
    %177 = vector.broadcast %176 : vector<8x1xf32> to vector<8x32xf32>
    %178 = arith.mulf %173, %177 : vector<8x32xf32>
    %179 = vector.broadcast %159 : vector<1x32xf32> to vector<8x32xf32>
    %180 = arith.mulf %178, %179 : vector<8x32xf32>
    %181 = vector.broadcast %160 : vector<1x32xf32> to vector<8x32xf32>
    %182 = arith.addf %180, %181 : vector<8x32xf32>
    %c0_75 = arith.constant 0 : index
    %c0_76 = arith.constant 0 : index
    %c0_77 = arith.constant 0 : index
    %183 = vector.load %arg15[%c0_75, %c0_76, %c0_77] : memref<1x8x32xf32, #tpu.memory_space<vmem>>, vector<1x8x32xf32>
    %184 = vector.shape_cast %183 : vector<1x8x32xf32> to vector<8x32xf32>
    %185 = vector.shape_cast %182 : vector<8x32xf32> to vector<1x8x32xf32>
    tpu.vector_store %arg15[%c0_75, %c0_76, %c0_77], %185 {strides = array<i32>} : memref<1x8x32xf32, #tpu.memory_space<vmem>>, vector<1x8x32xf32>,
    return
  }
  func.func @transform_0(%arg0: i32) -> (i32, i32, i32) {
    %c0_i32 = arith.constant 0 : i32
    %c0_i32_0 = arith.constant 0 : i32
    %c0_i32_1 = arith.constant 0 : i32
    return %arg0, %c0_i32, %c0_i32_0 : i32, i32, i32
  }
  func.func @transform_1(%arg0: i32) -> (i32, i32, i32) {
    %c0_i32 = arith.constant 0 : i32
    %c0_i32_0 = arith.constant 0 : i32
    %c0_i32_1 = arith.constant 0 : i32
    return %arg0, %c0_i32, %c0_i32_0 : i32, i32, i32
  }
  func.func @transform_2(%arg0: i32) -> (i32, i32) {
    %c0_i32 = arith.constant 0 : i32
    %c0_i32_0 = arith.constant 0 : i32
    %c0_i32_1 = arith.constant 0 : i32
    return %c0_i32, %c0_i32_0 : i32, i32
  }
  func.func @transform_3(%arg0: i32) -> (i32, i32) {
    %c0_i32 = arith.constant 0 : i32
    %c0_i32_0 = arith.constant 0 : i32
    %c0_i32_1 = arith.constant 0 : i32
    return %c0_i32, %c0_i32_0 : i32, i32
  }
  func.func @transform_4(%arg0: i32) -> (i32, i32) {
    %c0_i32 = arith.constant 0 : i32
    %c0_i32_0 = arith.constant 0 : i32
    %c0_i32_1 = arith.constant 0 : i32
    return %c0_i32, %c0_i32_0 : i32, i32
  }
  func.func @transform_5(%arg0: i32) -> (i32, i32) {
    %c0_i32 = arith.constant 0 : i32
    %c0_i32_0 = arith.constant 0 : i32
    %c0_i32_1 = arith.constant 0 : i32
    return %c0_i32, %c0_i32_0 : i32, i32
  }
  func.func @transform_6(%arg0: i32) -> (i32, i32) {
    %c0_i32 = arith.constant 0 : i32
    %c0_i32_0 = arith.constant 0 : i32
    %c0_i32_1 = arith.constant 0 : i32
    return %c0_i32, %c0_i32_0 : i32, i32
  }
  func.func @transform_7(%arg0: i32) -> (i32, i32) {
    %c0_i32 = arith.constant 0 : i32
    %c0_i32_0 = arith.constant 0 : i32
    %c0_i32_1 = arith.constant 0 : i32
    return %c0_i32, %c0_i32_0 : i32, i32
  }
  func.func @transform_8(%arg0: i32) -> (i32, i32) {
    %c0_i32 = arith.constant 0 : i32
    %c0_i32_0 = arith.constant 0 : i32
    %c0_i32_1 = arith.constant 0 : i32
    return %c0_i32, %c0_i32_0 : i32, i32
  }
  func.func @transform_9(%arg0: i32) -> (i32, i32) {
    %c0_i32 = arith.constant 0 : i32
    %c0_i32_0 = arith.constant 0 : i32
    %c0_i32_1 = arith.constant 0 : i32
    return %c0_i32, %c0_i32_0 : i32, i32
  }
  func.func @transform_10(%arg0: i32) -> (i32, i32) {
    %c0_i32 = arith.constant 0 : i32
    %c0_i32_0 = arith.constant 0 : i32
    %c0_i32_1 = arith.constant 0 : i32
    return %c0_i32, %c0_i32_0 : i32, i32
  }
  func.func @transform_11(%arg0: i32) -> (i32, i32) {
    %c0_i32 = arith.constant 0 : i32
    %c0_i32_0 = arith.constant 0 : i32
    %c0_i32_1 = arith.constant 0 : i32
    return %c0_i32, %c0_i32_0 : i32, i32
  }
  func.func @transform_12(%arg0: i32) -> (i32, i32) {
    %c0_i32 = arith.constant 0 : i32
    %c0_i32_0 = arith.constant 0 : i32
    %c0_i32_1 = arith.constant 0 : i32
    return %c0_i32, %c0_i32_0 : i32, i32
  }
  func.func @transform_13(%arg0: i32) -> (i32, i32) {
    %c0_i32 = arith.constant 0 : i32
    %c0_i32_0 = arith.constant 0 : i32
    %c0_i32_1 = arith.constant 0 : i32
    return %c0_i32, %c0_i32_0 : i32, i32
  }
  func.func @transform_14(%arg0: i32) -> (i32, i32, i32) {
    %c0_i32 = arith.constant 0 : i32
    %c0_i32_0 = arith.constant 0 : i32
    %c0_i32_1 = arith.constant 0 : i32
    return %arg0, %c0_i32, %c0_i32_0 : i32, i32, i32
  }
}

</mosaic_0001>

<llo_original>
// kernel: transformer_forward.9
$region0: #{transformer_forward.9}
  #allocation0 [shape = 'u32[]', space=smem, size = 0x4, offset = 0x4, fixed_abs, tag = 'smem constant byte address 0x4 - core index']
  #allocation1 [shape = 'u32[72,128]{1,0:T(1,128)}', space=vmem, size = 0x9000, scoped, tag = 'internal scratch']
  %s0 = inlined_call_operand.vmem [shape: f32[16,32], index: 0, kind: input, shape index: {}]
  %s1 = inlined_call_operand.vmem [shape: f32[32,16], index: 1, kind: input, shape index: {}]
  %s2 = inlined_call_operand.vmem [shape: f32[1,16], index: 2, kind: input, shape index: {}]
  %s3 = inlined_call_operand.hbm [shape: f32[16,16], index: 3, kind: output, shape index: {}]
  %s4 = sld [smem:[#allocation0]]
  $region22: #{transformer_forward.9} parent=0
    _
  %s6 = ssub.s32 1, %s4
  %s7 = scalar_select 0, %s6, %s4
  $region1: #{transformer_forward.9} parent=0
    #allocation2 [shape = 'u8[8192]{0}', space=vmem, size = 0x2000, scoped, tag = 'output window, operand 0, single buffered']
    #allocation3 [shape = 's32[1]{0}', space=sflag, size = 0x4, scoped, tag = 'scoped memory for transformer_forward.9']
    %8 = vsyncpa [#allocation3], 0
    // Predicated region
    $region2: #{transformer_forward.9} parent=1 // pred_check
      _
    $region3: #{transformer_forward.9} parent=1 // pred_check_branch
      %10 = sbr.rel (0) target = $region5
    $region4: #{transformer_forward.9} parent=1 // pred_region
      _
    $region5: #{transformer_forward.9} parent=1 // pred_fallthru
      _
    // Predicated region
    $region6: #{transformer_forward.9} parent=1 // pred_check
      _
    $region7: #{transformer_forward.9} parent=1 // pred_check_branch
      %12 = sbr.rel (0) target = $region9
    $region8: #{transformer_forward.9} parent=1 // pred_region
      _
    $region9: #{transformer_forward.9} parent=1 // pred_fallthru
      _
    // Predicated region
    $region10: #{transformer_forward.9} parent=1 // pred_check
      _
    $region11: #{transformer_forward.9} parent=1 // pred_check_branch
      %14 = sbr.rel (0) target = $region13
    $region12: #{transformer_forward.9} parent=1 // pred_region
      _
    $region13: #{transformer_forward.9} parent=1 // pred_fallthru
      _
    %v15 = vld [vmem:[%s0] sm:$0xff]
    %v16 = vld [vmem:[%s0 + $0x8] sm:$0xff]
    %v17 = vld [vmem:[%s1] sm:$0xff]
    %v18 = vld [vmem:[%s1 + $0x8] sm:$0xff]
    %v19 = vld [vmem:[%s1 + $0x10] sm:$0xff]
    %v20 = vld [vmem:[%s1 + $0x18] sm:$0xff]
    %v21 = vld [vmem:[%s2] sm:$0x1]
    %v23 = vperm.slane %v21, 0
    %vm25 = vcmask 261120
    %v27 = vsel %vm25, %v15, 0
    %v30 = vsel %vm25, %v16, 0
    %32 = vmatpush.msra.mxu0 0.0
    %33 = vmatpush.msra.mxu0 0.0
    %34 = vmatpush.msra.mxu0 0.0
    %35 = vmatpush.msra.mxu0 0.0
    %36 = vmatpush.msra.mxu0 0.0
    %37 = vmatpush.msra.mxu0 0.0
    %38 = vmatpush.msra.mxu0 0.0
    %39 = vmatpush.msra.mxu0 0.0
    %40 = vmatpush.msra.mxu0 0.0
    %41 = vmatpush.msra.mxu0 0.0
    %42 = vmatpush.msra.mxu0 0.0
    %43 = vmatpush.msra.mxu0 0.0
    %44 = vmatpush.msra.mxu0 %v20
    %45 = vmatpush.msra.mxu0 %v19
    %46 = vmatpush.msra.mxu0 %v18
    %47 = vmatpush.msra.mxu0 %v17
    %48 = vmatmul.f32.gmra.mxu0 %v27
    %v49 = vpop.f32.mrf.mxu0
    %v50 = vadd.f32 %v23, %v49
    %51 = vmatmul.f32.gmra.mxu0 %v30
    %v52 = vpop.f32.mrf.mxu0
    %v53 = vadd.f32 %v23, %v52
    %54 = vdwg.mxu0
    %vm55 = vcmask 130048
    %56 = vst.msk [vmem:[#allocation2] sm:$0xff] %vm55, %v50
    %57 = vst.msk [vmem:[#allocation2 + $0x8] sm:$0xff] %vm55, %v53
    // Predicated region
    $region14: #{transformer_forward.9} parent=1 // pred_check
      _
    $region15: #{transformer_forward.9} parent=1 // pred_check_branch
      %59 = sbr.rel (0) target = $region17
    $region16: #{transformer_forward.9} parent=1 // pred_region
      %61 = vsyncadd [#allocation3], 0
      %s62 = sshll.u32 [#allocation2], 4
      %s63 = int_to_ptr.vmem [resolvable:$true] %s62
      %s64 = sshll.u32 %s3, 4
      %s65 = int_to_ptr.hbm [resolvable:$true] %s64
      %70 = dma.vmem_to_hbm [thread:$0]  %s63, 256, %s65, [#allocation3], 128, 128, 8
    $region17: #{transformer_forward.9} parent=1 // pred_fallthru
      _
    // Predicated region
    $region18: #{transformer_forward.9} parent=1 // pred_check
      _
    $region19: #{transformer_forward.9} parent=1 // pred_check_branch
      %72 = sbr.rel (0) target = $region21
    $region20: #{transformer_forward.9} parent=1 // pred_region
      %74 = dma.done [#allocation3], 256
    $region21: #{transformer_forward.9} parent=1 // pred_fallthru
      _
    %75 = vsyncpa [#allocation3], 1

// kernel: transformer_forward.5
$region0: #{transformer_forward.5}
  #allocation0 [shape = 'u32[]', space=smem, size = 0x4, offset = 0x4, fixed_abs, tag = 'smem constant byte address 0x4 - core index']
  #allocation1 [shape = 'u32[72,128]{1,0:T(1,128)}', space=vmem, size = 0x9000, scoped, tag = 'internal scratch']
  %s0 = inlined_call_operand.vmem [shape: f32[2,8,32], index: 0, kind: input, shape index: {}]
  %s1 = inlined_call_operand.vmem [shape: f32[2,1,8], index: 1, kind: input, shape index: {}]
  %s2 = inlined_call_operand.vmem [shape: f32[32,96], index: 2, kind: input, shape index: {}]
  %s3 = inlined_call_operand.vmem [shape: f32[1,96], index: 3, kind: input, shape index: {}]
  %s4 = inlined_call_operand.vmem [shape: f32[32,32], index: 4, kind: input, shape index: {}]
  %s5 = inlined_call_operand.vmem [shape: f32[1,32], index: 5, kind: input, shape index: {}]
  %s6 = inlined_call_operand.vmem [shape: f32[1,32], index: 6, kind: input, shape index: {}]
  %s7 = inlined_call_operand.vmem [shape: f32[1,32], index: 7, kind: input, shape index: {}]
  %s8 = inlined_call_operand.vmem [shape: f32[32,64], index: 8, kind: input, shape index: {}]
  %s9 = inlined_call_operand.vmem [shape: f32[1,64], index: 9, kind: input, shape index: {}]
  %s10 = inlined_call_operand.vmem [shape: f32[64,32], index: 10, kind: input, shape index: {}]
  %s11 = inlined_call_operand.vmem [shape: f32[1,32], index: 11, kind: input, shape index: {}]
  %s12 = inlined_call_operand.vmem [shape: f32[1,32], index: 12, kind: input, shape index: {}]
  %s13 = inlined_call_operand.vmem [shape: f32[1,32], index: 13, kind: input, shape index: {}]
  %s14 = inlined_call_operand.vmem [shape: f32[2,8,32], index: 14, kind: output, shape index: {}]
  %s15 = sld [smem:[#allocation0]]
  $region89: #{transformer_forward.5} parent=0
    _
  %s17 = ssub.s32 1, %s15
  %s18 = scalar_select 0, %s17, %s15
  loop: start=0, step=1, limit=4
  $region2: #{transformer_forward.5} parent=0 // loop_pre_header
    _
  $region3: #{transformer_forward.5} parent=0 // loop_header
    %s20 = sphi 0, %s24
    %p21 = scmp.ge.s32.totalorder %s20, 4
    %s30 = sphi 0, %s32
    %s33 = sphi 0, %s30
    %s34 = sphi 0, %s33
    %s50 = sphi 0, %s34
    %s56 = sphi 0, %s58
    %s59 = sphi 0, %s56
    %s60 = sphi 0, %s59
    %s76 = sphi 0, %s60
    %s80 = sphi 0, %s80
    %s82 = sphi 0, %s80
    %s83 = sphi 0, %s82
    %s97 = sphi 0, %s83
    %s101 = sphi 0, %s101
    %s103 = sphi 0, %s101
    %s104 = sphi 0, %s103
    %s118 = sphi 0, %s104
    %s122 = sphi 0, %s122
    %s124 = sphi 0, %s122
    %s125 = sphi 0, %s124
    %s139 = sphi 0, %s125
    %s143 = sphi 0, %s143
    %s145 = sphi 0, %s143
    %s146 = sphi 0, %s145
    %s160 = sphi 0, %s146
    %s164 = sphi 0, %s164
    %s166 = sphi 0, %s164
    %s167 = sphi 0, %s166
    %s181 = sphi 0, %s167
    %s185 = sphi 0, %s185
    %s187 = sphi 0, %s185
    %s188 = sphi 0, %s187
    %s202 = sphi 0, %s188
    %s206 = sphi 0, %s206
    %s208 = sphi 0, %s206
    %s209 = sphi 0, %s208
    %s223 = sphi 0, %s209
    %s227 = sphi 0, %s227
    %s229 = sphi 0, %s227
    %s230 = sphi 0, %s229
    %s244 = sphi 0, %s230
    %s248 = sphi 0, %s248
    %s250 = sphi 0, %s248
    %s251 = sphi 0, %s250
    %s265 = sphi 0, %s251
    %s269 = sphi 0, %s269
    %s271 = sphi 0, %s269
    %s272 = sphi 0, %s271
    %s286 = sphi 0, %s272
    %s290 = sphi 0, %s290
    %s292 = sphi 0, %s290
    %s293 = sphi 0, %s292
    %s307 = sphi 0, %s293
    %s311 = sphi 0, %s311
    %s313 = sphi 0, %s311
    %s314 = sphi 0, %s313
    %s328 = sphi 0, %s314
    %s334 = sphi 0, %s336
    %s337 = sphi 0, %s334
    %s338 = sphi 0, %s337
    %s354 = sphi 0, %s338
  $region4: #{transformer_forward.5} parent=0 // loop_header_branch
    %23 = sbr.rel (%p21) target = $region8
  $region5: #{transformer_forward.5} parent=0 // loop_body
    %s25 = ssub.s32 %s20, 1
    %s26 = ssub.s32 %s20, 2
    %s27 = sadd.s32 %s20, 1
    %s28 = ssub.s32 %s20, %s27
    %p29 = scmp.eq.s32.totalorder %s28, 0
    %s31 = sadd.s32 %s30, 1
    %s32 = scalar_select %p29, %s30, %s31
    %p35 = pneg %p29
    %p36 = scmp.eq.s32.totalorder %s20, 1
    %p37 = por %p35, %p36
    %p38 = scmp.ne.s32.totalorder %s30, %s33
    %p39 = scmp.eq.s32.totalorder %s20, 0
    %p40 = por %p38, %p39
    %p41 = scmp.ne.s32.totalorder %s30, %s33
    %p42 = scmp.eq.s32.totalorder %s25, 1
    %p43 = por %p41, %p42
    %p44 = scmp.ne.s32.totalorder %s33, %s34
    %p45 = scmp.eq.s32.totalorder %s25, 0
    %p46 = por %p44, %p45
    %p47 = scmp.ne.s32.totalorder %s33, %s34
    %p48 = scmp.eq.s32.totalorder %s26, 1
    %p49 = por %p47, %p48
    %p51 = scmp.ne.s32.totalorder %s34, %s50
    %p52 = scmp.eq.s32.totalorder %s26, 0
    %p53 = por %p51, %p52
    %s54 = ssub.s32 %s20, %s27
    %p55 = scmp.eq.s32.totalorder %s54, 0
    %s57 = sadd.s32 %s56, 1
    %s58 = scalar_select %p55, %s56, %s57
    %p61 = pneg %p55
    %p62 = scmp.eq.s32.totalorder %s20, 1
    %p63 = por %p61, %p62
    %p64 = scmp.ne.s32.totalorder %s56, %s59
    %p65 = scmp.eq.s32.totalorder %s20, 0
    %p66 = por %p64, %p65
    %p67 = scmp.ne.s32.totalorder %s56, %s59
    %p68 = scmp.eq.s32.totalorder %s25, 1
    %p69 = por %p67, %p68
    %p70 = scmp.ne.s32.totalorder %s59, %s60
    %p71 = scmp.eq.s32.totalorder %s25, 0
    %p72 = por %p70, %p71
    %p73 = scmp.ne.s32.totalorder %s59, %s60
    %p74 = scmp.eq.s32.totalorder %s26, 1
    %p75 = por %p73, %p74
    %p77 = scmp.ne.s32.totalorder %s60, %s76
    %p78 = scmp.eq.s32.totalorder %s26, 0
    %p79 = por %p77, %p78
    %s81 = sadd.s32 %s80, 1
    %p84 = scmp.eq.s32.totalorder %s20, 1
    %p85 = scmp.ne.s32.totalorder %s80, %s82
    %p86 = scmp.eq.s32.totalorder %s20, 0
    %p87 = por %p85, %p86
    %p88 = scmp.ne.s32.totalorder %s80, %s82
    %p89 = scmp.eq.s32.totalorder %s25, 1
    %p90 = por %p88, %p89
    %p91 = scmp.ne.s32.totalorder %s82, %s83
    %p92 = scmp.eq.s32.totalorder %s25, 0
    %p93 = por %p91, %p92
    %p94 = scmp.ne.s32.totalorder %s82, %s83
    %p95 = scmp.eq.s32.totalorder %s26, 1
    %p96 = por %p94, %p95
    %p98 = scmp.ne.s32.totalorder %s83, %s97
    %p99 = scmp.eq.s32.totalorder %s26, 0
    %p100 = por %p98, %p99
    %s102 = sadd.s32 %s101, 1
    %p105 = scmp.eq.s32.totalorder %s20, 1
    %p106 = scmp.ne.s32.totalorder %s101, %s103
    %p107 = scmp.eq.s32.totalorder %s20, 0
    %p108 = por %p106, %p107
    %p109 = scmp.ne.s32.totalorder %s101, %s103
    %p110 = scmp.eq.s32.totalorder %s25, 1
    %p111 = por %p109, %p110
    %p112 = scmp.ne.s32.totalorder %s103, %s104
    %p113 = scmp.eq.s32.totalorder %s25, 0
    %p114 = por %p112, %p113
    %p115 = scmp.ne.s32.totalorder %s103, %s104
    %p116 = scmp.eq.s32.totalorder %s26, 1
    %p117 = por %p115, %p116
    %p119 = scmp.ne.s32.totalorder %s104, %s118
    %p120 = scmp.eq.s32.totalorder %s26, 0
    %p121 = por %p119, %p120
    %s123 = sadd.s32 %s122, 1
    %p126 = scmp.eq.s32.totalorder %s20, 1
    %p127 = scmp.ne.s32.totalorder %s122, %s124
    %p128 = scmp.eq.s32.totalorder %s20, 0
    %p129 = por %p127, %p128
    %p130 = scmp.ne.s32.totalorder %s122, %s124
    %p131 = scmp.eq.s32.totalorder %s25, 1
    %p132 = por %p130, %p131
    %p133 = scmp.ne.s32.totalorder %s124, %s125
    %p134 = scmp.eq.s32.totalorder %s25, 0
    %p135 = por %p133, %p134
    %p136 = scmp.ne.s32.totalorder %s124, %s125
    %p137 = scmp.eq.s32.totalorder %s26, 1
    %p138 = por %p136, %p137
    %p140 = scmp.ne.s32.totalorder %s125, %s139
    %p141 = scmp.eq.s32.totalorder %s26, 0
    %p142 = por %p140, %p141
    %s144 = sadd.s32 %s143, 1
    %p147 = scmp.eq.s32.totalorder %s20, 1
    %p148 = scmp.ne.s32.totalorder %s143, %s145
    %p149 = scmp.eq.s32.totalorder %s20, 0
    %p150 = por %p148, %p149
    %p151 = scmp.ne.s32.totalorder %s143, %s145
    %p152 = scmp.eq.s32.totalorder %s25, 1
    %p153 = por %p151, %p152
    %p154 = scmp.ne.s32.totalorder %s145, %s146
    %p155 = scmp.eq.s32.totalorder %s25, 0
    %p156 = por %p154, %p155
    %p157 = scmp.ne.s32.totalorder %s145, %s146
    %p158 = scmp.eq.s32.totalorder %s26, 1
    %p159 = por %p157, %p158
    %p161 = scmp.ne.s32.totalorder %s146, %s160
    %p162 = scmp.eq.s32.totalorder %s26, 0
    %p163 = por %p161, %p162
    %s165 = sadd.s32 %s164, 1
    %p168 = scmp.eq.s32.totalorder %s20, 1
    %p169 = scmp.ne.s32.totalorder %s164, %s166
    %p170 = scmp.eq.s32.totalorder %s20, 0
    %p171 = por %p169, %p170
    %p172 = scmp.ne.s32.totalorder %s164, %s166
    %p173 = scmp.eq.s32.totalorder %s25, 1
    %p174 = por %p172, %p173
    %p175 = scmp.ne.s32.totalorder %s166, %s167
    %p176 = scmp.eq.s32.totalorder %s25, 0
    %p177 = por %p175, %p176
    %p178 = scmp.ne.s32.totalorder %s166, %s167
    %p179 = scmp.eq.s32.totalorder %s26, 1
    %p180 = por %p178, %p179
    %p182 = scmp.ne.s32.totalorder %s167, %s181
    %p183 = scmp.eq.s32.totalorder %s26, 0
    %p184 = por %p182, %p183
    %s186 = sadd.s32 %s185, 1
    %p189 = scmp.eq.s32.totalorder %s20, 1
    %p190 = scmp.ne.s32.totalorder %s185, %s187
    %p191 = scmp.eq.s32.totalorder %s20, 0
    %p192 = por %p190, %p191
    %p193 = scmp.ne.s32.totalorder %s185, %s187
    %p194 = scmp.eq.s32.totalorder %s25, 1
    %p195 = por %p193, %p194
    %p196 = scmp.ne.s32.totalorder %s187, %s188
    %p197 = scmp.eq.s32.totalorder %s25, 0
    %p198 = por %p196, %p197
    %p199 = scmp.ne.s32.totalorder %s187, %s188
    %p200 = scmp.eq.s32.totalorder %s26, 1
    %p201 = por %p199, %p200
    %p203 = scmp.ne.s32.totalorder %s188, %s202
    %p204 = scmp.eq.s32.totalorder %s26, 0
    %p205 = por %p203, %p204
    %s207 = sadd.s32 %s206, 1
    %p210 = scmp.eq.s32.totalorder %s20, 1
    %p211 = scmp.ne.s32.totalorder %s206, %s208
    %p212 = scmp.eq.s32.totalorder %s20, 0
    %p213 = por %p211, %p212
    %p214 = scmp.ne.s32.totalorder %s206, %s208
    %p215 = scmp.eq.s32.totalorder %s25, 1
    %p216 = por %p214, %p215
    %p217 = scmp.ne.s32.totalorder %s208, %s209
    %p218 = scmp.eq.s32.totalorder %s25, 0
    %p219 = por %p217, %p218
    %p220 = scmp.ne.s32.totalorder %s208, %s209
    %p221 = scmp.eq.s32.totalorder %s26, 1
    %p222 = por %p220, %p221
    %p224 = scmp.ne.s32.totalorder %s209, %s223
    %p225 = scmp.eq.s32.totalorder %s26, 0
    %p226 = por %p224, %p225
    %s228 = sadd.s32 %s227, 1
    %p231 = scmp.eq.s32.totalorder %s20, 1
    %p232 = scmp.ne.s32.totalorder %s227, %s229
    %p233 = scmp.eq.s32.totalorder %s20, 0
    %p234 = por %p232, %p233
    %p235 = scmp.ne.s32.totalorder %s227, %s229
    %p236 = scmp.eq.s32.totalorder %s25, 1
    %p237 = por %p235, %p236
    %p238 = scmp.ne.s32.totalorder %s229, %s230
    %p239 = scmp.eq.s32.totalorder %s25, 0
    %p240 = por %p238, %p239
    %p241 = scmp.ne.s32.totalorder %s229, %s230
    %p242 = scmp.eq.s32.totalorder %s26, 1
    %p243 = por %p241, %p242
    %p245 = scmp.ne.s32.totalorder %s230, %s244
    %p246 = scmp.eq.s32.totalorder %s26, 0
    %p247 = por %p245, %p246
    %s249 = sadd.s32 %s248, 1
    %p252 = scmp.eq.s32.totalorder %s20, 1
    %p253 = scmp.ne.s32.totalorder %s248, %s250
    %p254 = scmp.eq.s32.totalorder %s20, 0
    %p255 = por %p253, %p254
    %p256 = scmp.ne.s32.totalorder %s248, %s250
    %p257 = scmp.eq.s32.totalorder %s25, 1
    %p258 = por %p256, %p257
    %p259 = scmp.ne.s32.totalorder %s250, %s251
    %p260 = scmp.eq.s32.totalorder %s25, 0
    %p261 = por %p259, %p260
    %p262 = scmp.ne.s32.totalorder %s250, %s251
    %p263 = scmp.eq.s32.totalorder %s26, 1
    %p264 = por %p262, %p263
    %p266 = scmp.ne.s32.totalorder %s251, %s265
    %p267 = scmp.eq.s32.totalorder %s26, 0
    %p268 = por %p266, %p267
    %s270 = sadd.s32 %s269, 1
    %p273 = scmp.eq.s32.totalorder %s20, 1
    %p274 = scmp.ne.s32.totalorder %s269, %s271
    %p275 = scmp.eq.s32.totalorder %s20, 0
    %p276 = por %p274, %p275
    %p277 = scmp.ne.s32.totalorder %s269, %s271
    %p278 = scmp.eq.s32.totalorder %s25, 1
    %p279 = por %p277, %p278
    %p280 = scmp.ne.s32.totalorder %s271, %s272
    %p281 = scmp.eq.s32.totalorder %s25, 0
    %p282 = por %p280, %p281
    %p283 = scmp.ne.s32.totalorder %s271, %s272
    %p284 = scmp.eq.s32.totalorder %s26, 1
    %p285 = por %p283, %p284
    %p287 = scmp.ne.s32.totalorder %s272, %s286
    %p288 = scmp.eq.s32.totalorder %s26, 0
    %p289 = por %p287, %p288
    %s291 = sadd.s32 %s290, 1
    %p294 = scmp.eq.s32.totalorder %s20, 1
    %p295 = scmp.ne.s32.totalorder %s290, %s292
    %p296 = scmp.eq.s32.totalorder %s20, 0
    %p297 = por %p295, %p296
    %p298 = scmp.ne.s32.totalorder %s290, %s292
    %p299 = scmp.eq.s32.totalorder %s25, 1
    %p300 = por %p298, %p299
    %p301 = scmp.ne.s32.totalorder %s292, %s293
    %p302 = scmp.eq.s32.totalorder %s25, 0
    %p303 = por %p301, %p302
    %p304 = scmp.ne.s32.totalorder %s292, %s293
    %p305 = scmp.eq.s32.totalorder %s26, 1
    %p306 = por %p304, %p305
    %p308 = scmp.ne.s32.totalorder %s293, %s307
    %p309 = scmp.eq.s32.totalorder %s26, 0
    %p310 = por %p308, %p309
    %s312 = sadd.s32 %s311, 1
    %p315 = scmp.eq.s32.totalorder %s20, 1
    %p316 = scmp.ne.s32.totalorder %s311, %s313
    %p317 = scmp.eq.s32.totalorder %s20, 0
    %p318 = por %p316, %p317
    %p319 = scmp.ne.s32.totalorder %s311, %s313
    %p320 = scmp.eq.s32.totalorder %s25, 1
    %p321 = por %p319, %p320
    %p322 = scmp.ne.s32.totalorder %s313, %s314
    %p323 = scmp.eq.s32.totalorder %s25, 0
    %p324 = por %p322, %p323
    %p325 = scmp.ne.s32.totalorder %s313, %s314
    %p326 = scmp.eq.s32.totalorder %s26, 1
    %p327 = por %p325, %p326
    %p329 = scmp.ne.s32.totalorder %s314, %s328
    %p330 = scmp.eq.s32.totalorder %s26, 0
    %p331 = por %p329, %p330
    %s332 = ssub.s32 %s20, %s27
    %p333 = scmp.eq.s32.totalorder %s332, 0
    %s335 = sadd.s32 %s334, 1
    %s336 = scalar_select %p333, %s334, %s335
    %p339 = pneg %p333
    %p340 = scmp.eq.s32.totalorder %s20, 1
    %p341 = por %p339, %p340
    %p342 = scmp.ne.s32.totalorder %s334, %s337
    %p343 = scmp.eq.s32.totalorder %s20, 0
    %p344 = por %p342, %p343
    %p345 = scmp.ne.s32.totalorder %s334, %s337
    %p346 = scmp.eq.s32.totalorder %s25, 1
    %p347 = por %p345, %p346
    %p348 = scmp.ne.s32.totalorder %s337, %s338
    %p349 = scmp.eq.s32.totalorder %s25, 0
    %p350 = por %p348, %p349
    %p351 = scmp.ne.s32.totalorder %s337, %s338
    %p352 = scmp.eq.s32.totalorder %s26, 1
    %p353 = por %p351, %p352
    %p355 = scmp.ne.s32.totalorder %s338, %s354
    %p356 = scmp.eq.s32.totalorder %s26, 0
    %p357 = por %p355, %p356
    %p358 = scmp.le.s32.totalorder 1, %s20
    %p359 = scmp.lt.s32.totalorder %s20, 3
    %p360 = pnand %p358, %p359
    %p361 = pneg %p360
    // Predicated region
    $region9: #{transformer_forward.5} parent=5 // pred_check
      _
    $region10: #{transformer_forward.5} parent=5 // pred_check_branch
      %363 = sbr.rel (%p360) target = $region12
    $region11: #{transformer_forward.5} parent=5 // pred_region
      %s364 = ssub.s32 %s20, 1
      // Predicated region
      $region13: #{transformer_forward.5} parent=11 // pred_check
        %p365 = pneg %p93
      $region14: #{transformer_forward.5} parent=11 // pred_check_branch
        %367 = sbr.rel (%p365) target = $region16
      $region15: #{transformer_forward.5} parent=11 // pred_region
        _
      $region16: #{transformer_forward.5} parent=11 // pred_fallthru
        _
      // Predicated region
      $region17: #{transformer_forward.5} parent=11 // pred_check
        %p368 = pneg %p114
      $region18: #{transformer_forward.5} parent=11 // pred_check_branch
        %370 = sbr.rel (%p368) target = $region20
      $region19: #{transformer_forward.5} parent=11 // pred_region
        _
      $region20: #{transformer_forward.5} parent=11 // pred_fallthru
        _
      // Predicated region
      $region21: #{transformer_forward.5} parent=11 // pred_check
        %p371 = pneg %p135
      $region22: #{transformer_forward.5} parent=11 // pred_check_branch
        %373 = sbr.rel (%p371) target = $region24
      $region23: #{transformer_forward.5} parent=11 // pred_region
        _
      $region24: #{transformer_forward.5} parent=11 // pred_fallthru
        _
      // Predicated region
      $region25: #{transformer_forward.5} parent=11 // pred_check
        %p374 = pneg %p156
      $region26: #{transformer_forward.5} parent=11 // pred_check_branch
        %376 = sbr.rel (%p374) target = $region28
      $region27: #{transformer_forward.5} parent=11 // pred_region
        _
      $region28: #{transformer_forward.5} parent=11 // pred_fallthru
        _
      // Predicated region
      $region29: #{transformer_forward.5} parent=11 // pred_check
        %p377 = pneg %p177
      $region30: #{transformer_forward.5} parent=11 // pred_check_branch
        %379 = sbr.rel (%p377) target = $region32
      $region31: #{transformer_forward.5} parent=11 // pred_region
        _
      $region32: #{transformer_forward.5} parent=11 // pred_fallthru
        _
      // Predicated region
      $region33: #{transformer_forward.5} parent=11 // pred_check
        %p380 = pneg %p198
      $region34: #{transformer_forward.5} parent=11 // pred_check_branch
        %382 = sbr.rel (%p380) target = $region36
      $region35: #{transformer_forward.5} parent=11 // pred_region
        _
      $region36: #{transformer_forward.5} parent=11 // pred_fallthru
        _
      // Predicated region
      $region37: #{transformer_forward.5} parent=11 // pred_check
        %p383 = pneg %p219
      $region38: #{transformer_forward.5} parent=11 // pred_check_branch
        %385 = sbr.rel (%p383) target = $region40
      $region39: #{transformer_forward.5} parent=11 // pred_region
        _
      $region40: #{transformer_forward.5} parent=11 // pred_fallthru
        _
      // Predicated region
      $region41: #{transformer_forward.5} parent=11 // pred_check
        %p386 = pneg %p240
      $region42: #{transformer_forward.5} parent=11 // pred_check_branch
        %388 = sbr.rel (%p386) target = $region44
      $region43: #{transformer_forward.5} parent=11 // pred_region
        _
      $region44: #{transformer_forward.5} parent=11 // pred_fallthru
        _
      // Predicated region
      $region45: #{transformer_forward.5} parent=11 // pred_check
        %p389 = pneg %p261
      $region46: #{transformer_forward.5} parent=11 // pred_check_branch
        %391 = sbr.rel (%p389) target = $region48
      $region47: #{transformer_forward.5} parent=11 // pred_region
        _
      $region48: #{transformer_forward.5} parent=11 // pred_fallthru
        _
      // Predicated region
      $region49: #{transformer_forward.5} parent=11 // pred_check
        %p392 = pneg %p282
      $region50: #{transformer_forward.5} parent=11 // pred_check_branch
        %394 = sbr.rel (%p392) target = $region52
      $region51: #{transformer_forward.5} parent=11 // pred_region
        _
      $region52: #{transformer_forward.5} parent=11 // pred_fallthru
        _
      // Predicated region
      $region53: #{transformer_forward.5} parent=11 // pred_check
        %p395 = pneg %p303
      $region54: #{transformer_forward.5} parent=11 // pred_check_branch
        %397 = sbr.rel (%p395) target = $region56
      $region55: #{transformer_forward.5} parent=11 // pred_region
        _
      $region56: #{transformer_forward.5} parent=11 // pred_fallthru
        _
      // Predicated region
      $region57: #{transformer_forward.5} parent=11 // pred_check
        %p398 = pneg %p324
      $region58: #{transformer_forward.5} parent=11 // pred_check_branch
        %400 = sbr.rel (%p398) target = $region60
      $region59: #{transformer_forward.5} parent=11 // pred_region
        _
      $region60: #{transformer_forward.5} parent=11 // pred_fallthru
        _
    $region12: #{transformer_forward.5} parent=5 // pred_fallthru
      _
    %p401 = scmp.lt.s32.totalorder %s20, 2
    // Predicated region
    $region61: #{transformer_forward.5} parent=5 // pred_check
      %p402 = pneg %p401
    $region62: #{transformer_forward.5} parent=5 // pred_check_branch
      %404 = sbr.rel (%p402) target = $region64
    $region63: #{transformer_forward.5} parent=5 // pred_region
      // Predicated region
      $region65: #{transformer_forward.5} parent=63 // pred_check
        %p405 = pneg %p40
      $region66: #{transformer_forward.5} parent=63 // pred_check_branch
        %407 = sbr.rel (%p405) target = $region68
      $region67: #{transformer_forward.5} parent=63 // pred_region
        %p408 = scmp.lt.s32.totalorder %s20, 1
        %s409 = scalar_select %p408, %s20, 1
        %s410 = smul.addr %s409, 8
        %s411 = scalar_lea.vmem %s0, %s410
      $region68: #{transformer_forward.5} parent=63 // pred_fallthru
        _
      // Predicated region
      $region69: #{transformer_forward.5} parent=63 // pred_check
        %p412 = pneg %p66
      $region70: #{transformer_forward.5} parent=63 // pred_check_branch
        %414 = sbr.rel (%p412) target = $region72
      $region71: #{transformer_forward.5} parent=63 // pred_region
        %p415 = scmp.lt.s32.totalorder %s20, 1
        %s416 = scalar_select %p415, %s20, 1
        %s417 = scalar_lea.vmem %s1, %s416
      $region72: #{transformer_forward.5} parent=63 // pred_fallthru
        _
    $region64: #{transformer_forward.5} parent=5 // pred_fallthru
      _
    %p418 = scmp.le.s32.totalorder 1, %s20
    %p419 = scmp.lt.s32.totalorder %s20, 3
    %p420 = pnand %p418, %p419
    %p421 = pneg %p420
    // Predicated region
    $region73: #{transformer_forward.5} parent=5 // pred_check
      _
    $region74: #{transformer_forward.5} parent=5 // pred_check_branch
      %423 = sbr.rel (%p420) target = $region76
    $region75: #{transformer_forward.5} parent=5 // pred_region
      %s424 = ssub.s32 %s20, 1
      %p425 = scmp.lt.s32.totalorder %s25, 1
      %s426 = scalar_select %p425, %s25, 1
      %s427 = smul.addr %s426, 8
      %s428 = scalar_lea.vmem %s0, %s427
      %p429 = pneg %p46
      %p430 = pneg %p43
      %p431 = scmp.lt.s32.totalorder %s25, 1
      %s432 = scalar_select %p431, %s25, 1
      %s433 = scalar_lea.vmem %s1, %s432
      %p434 = pneg %p72
      %p435 = pneg %p69
      %p436 = pneg %p93
      %p437 = pneg %p90
      %p438 = pneg %p114
      %p439 = pneg %p111
      %p440 = pneg %p135
      %p441 = pneg %p132
      %p442 = pneg %p156
      %p443 = pneg %p153
      %p444 = pneg %p177
      %p445 = pneg %p174
      %p446 = pneg %p198
      %p447 = pneg %p195
      %p448 = pneg %p219
      %p449 = pneg %p216
      %p450 = pneg %p240
      %p451 = pneg %p237
      %p452 = pneg %p261
      %p453 = pneg %p258
      %p454 = pneg %p282
      %p455 = pneg %p279
      %p456 = pneg %p303
      %p457 = pneg %p300
      %p458 = pneg %p324
      %p459 = pneg %p321
      %p460 = pneg %p350
      %p461 = pneg %p347
      %p462 = scmp.lt.s32.totalorder %s25, 1
      %s463 = scalar_select %p462, %s25, 1
      %s464 = smul.addr %s463, 8
      %s465 = scalar_lea.vmem %s14, %s464
      %p466 = scmp.lt.s32.totalorder %s25, 1
      %s467 = scalar_select %p466, %s25, 1
      %s468 = smul.addr %s467, 8
      %s469 = scalar_lea.vmem %s0, %s468
      %p470 = scmp.lt.s32.totalorder %s25, 1
      %s471 = scalar_select %p470, %s25, 1
      %s472 = scalar_lea.vmem %s1, %s471
      %p473 = scmp.lt.s32.totalorder %s25, 1
      %s474 = scalar_select %p473, %s25, 1
      %s475 = smul.addr %s474, 8
      %s476 = scalar_lea.vmem %s14, %s475
      %v477 = vld [vmem:[%s469] sm:$0xff]
      %v478 = vld [vmem:[%s472] sm:$0x1]
      %v479 = vld [vmem:[%s2] sm:$0xff]
      %v480 = vld [vmem:[%s2 + $0x8] sm:$0xff]
      %v481 = vld [vmem:[%s2 + $0x10] sm:$0xff]
      %v482 = vld [vmem:[%s2 + $0x18] sm:$0xff]
      %v483 = vld [vmem:[%s3] sm:$0x1]
      %v485 = vperm.slane %v483, 0
      %vm487 = vcmask 261120
      %v489 = vsel %vm487, %v477, 0
      %491 = vmatpush.msra.mxu0 0.0
      %492 = vmatpush.msra.mxu0 0.0
      %493 = vmatpush.msra.mxu0 0.0
      %494 = vmatpush.msra.mxu0 0.0
      %495 = vmatpush.msra.mxu0 0.0
      %496 = vmatpush.msra.mxu0 0.0
      %497 = vmatpush.msra.mxu0 0.0
      %498 = vmatpush.msra.mxu0 0.0
      %499 = vmatpush.msra.mxu0 0.0
      %500 = vmatpush.msra.mxu0 0.0
      %501 = vmatpush.msra.mxu0 0.0
      %502 = vmatpush.msra.mxu0 0.0
      %503 = vmatpush.msra.mxu0 %v482
      %504 = vmatpush.msra.mxu0 %v481
      %505 = vmatpush.msra.mxu0 %v480
      %506 = vmatpush.msra.mxu0 %v479
      %507 = vmatmul.f32.gmra.mxu0 %v489
      %v508 = vpop.f32.mrf.mxu0
      %v509 = vadd.f32 %v485, %v508
      %510 = vdwg.mxu0
      %v511 = vld [vmem:[%s4] sm:$0xff]
      %v512 = vld [vmem:[%s4 + $0x8] sm:$0xff]
      %v513 = vld [vmem:[%s4 + $0x10] sm:$0xff]
      %v514 = vld [vmem:[%s4 + $0x18] sm:$0xff]
      %v515 = vld [vmem:[%s5] sm:$0x1]
      %517 = vrot.lane.b32.xlu0 %v509, 96
      %v518 = vpop.permute.xlu0 %517
      %vm519 = vcmask 64512
      %v520 = vsel %vm519, %v509, 0
      %v522 = vsel %vm519, %v518, 0
      %524 = vmatpush.xpose.msra.mxu0 0.0
      %525 = vmatpush.xpose.msra.mxu0 0.0
      %526 = vmatpush.xpose.msra.mxu0 0.0
      %527 = vmatpush.xpose.msra.mxu0 0.0
      %528 = vmatpush.xpose.msra.mxu0 0.0
      %529 = vmatpush.xpose.msra.mxu0 0.0
      %530 = vmatpush.xpose.msra.mxu0 0.0
      %531 = vmatpush.xpose.msra.mxu0 0.0
      %532 = vmatpush.xpose.msra.mxu0 0.0
      %533 = vmatpush.xpose.msra.mxu0 0.0
      %534 = vmatpush.xpose.msra.mxu0 0.0
      %535 = vmatpush.xpose.msra.mxu0 0.0
      %536 = vmatpush.xpose.msra.mxu0 0.0
      %537 = vmatpush.xpose.msra.mxu0 0.0
      %538 = vmatpush.xpose.msra.mxu0 0.0
      %539 = vmatpush.xpose.msra.mxu0 %v522
      %540 = vmatmul.f32.gmra.mxu0 %v520
      %v541 = vpop.f32.mrf.mxu0
      %v542 = vadd.f32 0.0, %v541
      %543 = vdwg.mxu0
      %v544 = vmul.f32 %v542, 0.35355338
      %vm545 = vcmp.gt.f32.partialorder %v478, 0.0
      %v546 = vsel %vm545, 1, 0
      %v547 = vperm.slane %v546, 0
      %vm548 = vcmp.eq.s32.totalorder %v547, 1
      %v549 = vsel %vm548, %v544, -1e+09
      %v550 = vsel %vm519, %v549, -inf
      %551 = vmax.xlane.f32.xlu0 %v550
      %v552 = vpop.xlane.xlu0 %551
      %v553 = vsub.f32 %v549, %v552
      %v554 = vmul.f32 %v553, 1.442695
      %v555 = vpow.pop %v554
      %v556 = vsel %vm519, %v555, 0.0
      %557 = vadd.xlane.f32.xlu0 %v556
      %v558 = vpop.xlane.xlu0 %557
      %v559 = vrcp.pop %v558
      %v560 = vmul.f32 %v555, %v559
      %561 = vrot.lane.b32.xlu0 %v509, 64
      %v562 = vpop.permute.xlu0 %561
      %v565 = vsel %vm519, %v560, 0
      %567 = vmatpush.msra.mxu0 0.0
      %568 = vmatpush.msra.mxu0 0.0
      %569 = vmatpush.msra.mxu0 0.0
      %570 = vmatpush.msra.mxu0 0.0
      %571 = vmatpush.msra.mxu0 0.0
      %572 = vmatpush.msra.mxu0 0.0
      %573 = vmatpush.msra.mxu0 0.0
      %574 = vmatpush.msra.mxu0 0.0
      %575 = vmatpush.msra.mxu0 0.0
      %576 = vmatpush.msra.mxu0 0.0
      %577 = vmatpush.msra.mxu0 0.0
      %578 = vmatpush.msra.mxu0 0.0
      %579 = vmatpush.msra.mxu0 0.0
      %580 = vmatpush.msra.mxu0 0.0
      %581 = vmatpush.msra.mxu0 0.0
      %582 = vmatpush.msra.mxu0 %v562
      %583 = vmatmul.f32.gmra.mxu0 %v565
      %v584 = vpop.f32.mrf.mxu0
      %v585 = vadd.f32 0.0, %v584
      %586 = vdwg.mxu0
      %587 = vrot.lane.b32.xlu0 %v509, 120
      %v588 = vpop.permute.xlu0 %587
      %589 = vrot.lane.b32.xlu0 %v509, 88
      %v590 = vpop.permute.xlu0 %589
      %v591 = vsel %vm519, %v588, 0
      %v593 = vsel %vm519, %v590, 0
      %595 = vmatpush.xpose.msra.mxu0 0.0
      %596 = vmatpush.xpose.msra.mxu0 0.0
      %597 = vmatpush.xpose.msra.mxu0 0.0
      %598 = vmatpush.xpose.msra.mxu0 0.0
      %599 = vmatpush.xpose.msra.mxu0 0.0
      %600 = vmatpush.xpose.msra.mxu0 0.0
      %601 = vmatpush.xpose.msra.mxu0 0.0
      %602 = vmatpush.xpose.msra.mxu0 0.0
      %603 = vmatpush.xpose.msra.mxu0 0.0
      %604 = vmatpush.xpose.msra.mxu0 0.0
      %605 = vmatpush.xpose.msra.mxu0 0.0
      %606 = vmatpush.xpose.msra.mxu0 0.0
      %607 = vmatpush.xpose.msra.mxu0 0.0
      %608 = vmatpush.xpose.msra.mxu0 0.0
      %609 = vmatpush.xpose.msra.mxu0 0.0
      %610 = vmatpush.xpose.msra.mxu0 %v593
      %611 = vmatmul.f32.gmra.mxu0 %v591
      %v612 = vpop.f32.mrf.mxu0
      %v613 = vadd.f32 0.0, %v612
      %614 = vdwg.mxu0
      %v615 = vmul.f32 %v613, 0.35355338
      %v616 = vsel %vm548, %v615, -1e+09
      %v617 = vsel %vm519, %v616, -inf
      %618 = vmax.xlane.f32.xlu0 %v617
      %v619 = vpop.xlane.xlu0 %618
      %v620 = vsub.f32 %v616, %v619
      %v621 = vmul.f32 %v620, 1.442695
      %v622 = vpow.pop %v621
      %v623 = vsel %vm519, %v622, 0.0
      %624 = vadd.xlane.f32.xlu0 %v623
      %v625 = vpop.xlane.xlu0 %624
      %v626 = vrcp.pop %v625
      %v627 = vmul.f32 %v622, %v626
      %628 = vrot.lane.b32.xlu0 %v509, 56
      %v629 = vpop.permute.xlu0 %628
      %v632 = vsel %vm519, %v627, 0
      %634 = vmatpush.msra.mxu0 0.0
      %635 = vmatpush.msra.mxu0 0.0
      %636 = vmatpush.msra.mxu0 0.0
      %637 = vmatpush.msra.mxu0 0.0
      %638 = vmatpush.msra.mxu0 0.0
      %639 = vmatpush.msra.mxu0 0.0
      %640 = vmatpush.msra.mxu0 0.0
      %641 = vmatpush.msra.mxu0 0.0
      %642 = vmatpush.msra.mxu0 0.0
      %643 = vmatpush.msra.mxu0 0.0
      %644 = vmatpush.msra.mxu0 0.0
      %645 = vmatpush.msra.mxu0 0.0
      %646 = vmatpush.msra.mxu0 0.0
      %647 = vmatpush.msra.mxu0 0.0
      %648 = vmatpush.msra.mxu0 0.0
      %649 = vmatpush.msra.mxu0 %v629
      %650 = vmatmul.f32.gmra.mxu0 %v632
      %v651 = vpop.f32.mrf.mxu0
      %v652 = vadd.f32 0.0, %v651
      %653 = vdwg.mxu0
      %v655 = vsel %vm519, %v652, 0
      %657 = vmatpush.msra.mxu0 0.0
      %658 = vmatpush.msra.mxu0 0.0
      %659 = vmatpush.msra.mxu0 0.0
      %660 = vmatpush.msra.mxu0 0.0
      %661 = vmatpush.msra.mxu0 0.0
      %662 = vmatpush.msra.mxu0 0.0
      %663 = vmatpush.msra.mxu0 0.0
      %664 = vmatpush.msra.mxu0 0.0
      %665 = vmatpush.msra.mxu0 0.0
      %666 = vmatpush.msra.mxu0 0.0
      %667 = vmatpush.msra.mxu0 0.0
      %668 = vmatpush.msra.mxu0 0.0
      %669 = vmatpush.msra.mxu0 0.0
      %670 = vmatpush.msra.mxu0 0.0
      %671 = vmatpush.msra.mxu0 0.0
      %672 = vmatpush.msra.mxu0 %v512
      %673 = vmatmul.f32.gmra.mxu0 %v655
      %v674 = vpop.f32.mrf.mxu0
      %v675 = vadd.f32 0.0, %v674
      %676 = vdwg.mxu0
      %v678 = vsel %vm519, %v585, 0
      %680 = vmatpush.msra.mxu0 0.0
      %681 = vmatpush.msra.mxu0 0.0
      %682 = vmatpush.msra.mxu0 0.0
      %683 = vmatpush.msra.mxu0 0.0
      %684 = vmatpush.msra.mxu0 0.0
      %685 = vmatpush.msra.mxu0 0.0
      %686 = vmatpush.msra.mxu0 0.0
      %687 = vmatpush.msra.mxu0 0.0
      %688 = vmatpush.msra.mxu0 0.0
      %689 = vmatpush.msra.mxu0 0.0
      %690 = vmatpush.msra.mxu0 0.0
      %691 = vmatpush.msra.mxu0 0.0
      %692 = vmatpush.msra.mxu0 0.0
      %693 = vmatpush.msra.mxu0 0.0
      %694 = vmatpush.msra.mxu0 0.0
      %695 = vmatpush.msra.mxu0 %v511
      %696 = vmatmul.f32.gmra.mxu0 %v678
      %v697 = vpop.f32.mrf.mxu0
      %v698 = vadd.f32 %v675, %v697
      %699 = vdwg.mxu0
      %700 = vrot.lane.b32.xlu0 %v509, 112
      %v701 = vpop.permute.xlu0 %700
      %702 = vrot.lane.b32.xlu0 %v509, 80
      %v703 = vpop.permute.xlu0 %702
      %v704 = vsel %vm519, %v701, 0
      %v706 = vsel %vm519, %v703, 0
      %708 = vmatpush.xpose.msra.mxu0 0.0
      %709 = vmatpush.xpose.msra.mxu0 0.0
      %710 = vmatpush.xpose.msra.mxu0 0.0
      %711 = vmatpush.xpose.msra.mxu0 0.0
      %712 = vmatpush.xpose.msra.mxu0 0.0
      %713 = vmatpush.xpose.msra.mxu0 0.0
      %714 = vmatpush.xpose.msra.mxu0 0.0
      %715 = vmatpush.xpose.msra.mxu0 0.0
      %716 = vmatpush.xpose.msra.mxu0 0.0
      %717 = vmatpush.xpose.msra.mxu0 0.0
      %718 = vmatpush.xpose.msra.mxu0 0.0
      %719 = vmatpush.xpose.msra.mxu0 0.0
      %720 = vmatpush.xpose.msra.mxu0 0.0
      %721 = vmatpush.xpose.msra.mxu0 0.0
      %722 = vmatpush.xpose.msra.mxu0 0.0
      %723 = vmatpush.xpose.msra.mxu0 %v706
      %724 = vmatmul.f32.gmra.mxu0 %v704
      %v725 = vpop.f32.mrf.mxu0
      %v726 = vadd.f32 0.0, %v725
      %727 = vdwg.mxu0
      %v728 = vmul.f32 %v726, 0.35355338
      %v729 = vsel %vm548, %v728, -1e+09
      %v730 = vsel %vm519, %v729, -inf
      %731 = vmax.xlane.f32.xlu0 %v730
      %v732 = vpop.xlane.xlu0 %731
      %v733 = vsub.f32 %v729, %v732
      %v734 = vmul.f32 %v733, 1.442695
      %v735 = vpow.pop %v734
      %v736 = vsel %vm519, %v735, 0.0
      %737 = vadd.xlane.f32.xlu0 %v736
      %v738 = vpop.xlane.xlu0 %737
      %v739 = vrcp.pop %v738
      %v740 = vmul.f32 %v735, %v739
      %741 = vrot.lane.b32.xlu0 %v509, 48
      %v742 = vpop.permute.xlu0 %741
      %v745 = vsel %vm519, %v740, 0
      %747 = vmatpush.msra.mxu0 0.0
      %748 = vmatpush.msra.mxu0 0.0
      %749 = vmatpush.msra.mxu0 0.0
      %750 = vmatpush.msra.mxu0 0.0
      %751 = vmatpush.msra.mxu0 0.0
      %752 = vmatpush.msra.mxu0 0.0
      %753 = vmatpush.msra.mxu0 0.0
      %754 = vmatpush.msra.mxu0 0.0
      %755 = vmatpush.msra.mxu0 0.0
      %756 = vmatpush.msra.mxu0 0.0
      %757 = vmatpush.msra.mxu0 0.0
      %758 = vmatpush.msra.mxu0 0.0
      %759 = vmatpush.msra.mxu0 0.0
      %760 = vmatpush.msra.mxu0 0.0
      %761 = vmatpush.msra.mxu0 0.0
      %762 = vmatpush.msra.mxu0 %v742
      %763 = vmatmul.f32.gmra.mxu0 %v745
      %v764 = vpop.f32.mrf.mxu0
      %v765 = vadd.f32 0.0, %v764
      %766 = vdwg.mxu0
      %v768 = vsel %vm519, %v765, 0
      %770 = vmatpush.msra.mxu0 0.0
      %771 = vmatpush.msra.mxu0 0.0
      %772 = vmatpush.msra.mxu0 0.0
      %773 = vmatpush.msra.mxu0 0.0
      %774 = vmatpush.msra.mxu0 0.0
      %775 = vmatpush.msra.mxu0 0.0
      %776 = vmatpush.msra.mxu0 0.0
      %777 = vmatpush.msra.mxu0 0.0
      %778 = vmatpush.msra.mxu0 0.0
      %779 = vmatpush.msra.mxu0 0.0
      %780 = vmatpush.msra.mxu0 0.0
      %781 = vmatpush.msra.mxu0 0.0
      %782 = vmatpush.msra.mxu0 0.0
      %783 = vmatpush.msra.mxu0 0.0
      %784 = vmatpush.msra.mxu0 0.0
      %785 = vmatpush.msra.mxu0 %v513
      %786 = vmatmul.f32.gmra.mxu0 %v768
      %v787 = vpop.f32.mrf.mxu0
      %v788 = vadd.f32 0.0, %v787
      %789 = vdwg.mxu0
      %v790 = vadd.f32 %v698, %v788
      %791 = vrot.lane.b32.xlu0 %v509, 104
      %v792 = vpop.permute.xlu0 %791
      %793 = vrot.lane.b32.xlu0 %v509, 72
      %v794 = vpop.permute.xlu0 %793
      %v795 = vsel %vm519, %v792, 0
      %v797 = vsel %vm519, %v794, 0
      %799 = vmatpush.xpose.msra.mxu0 0.0
      %800 = vmatpush.xpose.msra.mxu0 0.0
      %801 = vmatpush.xpose.msra.mxu0 0.0
      %802 = vmatpush.xpose.msra.mxu0 0.0
      %803 = vmatpush.xpose.msra.mxu0 0.0
      %804 = vmatpush.xpose.msra.mxu0 0.0
      %805 = vmatpush.xpose.msra.mxu0 0.0
      %806 = vmatpush.xpose.msra.mxu0 0.0
      %807 = vmatpush.xpose.msra.mxu0 0.0
      %808 = vmatpush.xpose.msra.mxu0 0.0
      %809 = vmatpush.xpose.msra.mxu0 0.0
      %810 = vmatpush.xpose.msra.mxu0 0.0
      %811 = vmatpush.xpose.msra.mxu0 0.0
      %812 = vmatpush.xpose.msra.mxu0 0.0
      %813 = vmatpush.xpose.msra.mxu0 0.0
      %814 = vmatpush.xpose.msra.mxu0 %v797
      %815 = vmatmul.f32.gmra.mxu0 %v795
      %v816 = vpop.f32.mrf.mxu0
      %v817 = vadd.f32 0.0, %v816
      %818 = vdwg.mxu0
      %v819 = vmul.f32 %v817, 0.35355338
      %v820 = vsel %vm548, %v819, -1e+09
      %v821 = vsel %vm519, %v820, -inf
      %822 = vmax.xlane.f32.xlu0 %v821
      %v823 = vpop.xlane.xlu0 %822
      %v824 = vsub.f32 %v820, %v823
      %v825 = vmul.f32 %v824, 1.442695
      %v826 = vpow.pop %v825
      %v827 = vsel %vm519, %v826, 0.0
      %828 = vadd.xlane.f32.xlu0 %v827
      %v829 = vpop.xlane.xlu0 %828
      %v830 = vrcp.pop %v829
      %v831 = vmul.f32 %v826, %v830
      %832 = vrot.lane.b32.xlu0 %v509, 40
      %v833 = vpop.permute.xlu0 %832
      %v836 = vsel %vm519, %v831, 0
      %838 = vmatpush.msra.mxu0 0.0
      %839 = vmatpush.msra.mxu0 0.0
      %840 = vmatpush.msra.mxu0 0.0
      %841 = vmatpush.msra.mxu0 0.0
      %842 = vmatpush.msra.mxu0 0.0
      %843 = vmatpush.msra.mxu0 0.0
      %844 = vmatpush.msra.mxu0 0.0
      %845 = vmatpush.msra.mxu0 0.0
      %846 = vmatpush.msra.mxu0 0.0
      %847 = vmatpush.msra.mxu0 0.0
      %848 = vmatpush.msra.mxu0 0.0
      %849 = vmatpush.msra.mxu0 0.0
      %850 = vmatpush.msra.mxu0 0.0
      %851 = vmatpush.msra.mxu0 0.0
      %852 = vmatpush.msra.mxu0 0.0
      %853 = vmatpush.msra.mxu0 %v833
      %854 = vmatmul.f32.gmra.mxu0 %v836
      %v855 = vpop.f32.mrf.mxu0
      %v856 = vadd.f32 0.0, %v855
      %857 = vdwg.mxu0
      %v859 = vsel %vm519, %v856, 0
      %861 = vmatpush.msra.mxu0 0.0
      %862 = vmatpush.msra.mxu0 0.0
      %863 = vmatpush.msra.mxu0 0.0
      %864 = vmatpush.msra.mxu0 0.0
      %865 = vmatpush.msra.mxu0 0.0
      %866 = vmatpush.msra.mxu0 0.0
      %867 = vmatpush.msra.mxu0 0.0
      %868 = vmatpush.msra.mxu0 0.0
      %869 = vmatpush.msra.mxu0 0.0
      %870 = vmatpush.msra.mxu0 0.0
      %871 = vmatpush.msra.mxu0 0.0
      %872 = vmatpush.msra.mxu0 0.0
      %873 = vmatpush.msra.mxu0 0.0
      %874 = vmatpush.msra.mxu0 0.0
      %875 = vmatpush.msra.mxu0 0.0
      %876 = vmatpush.msra.mxu0 %v514
      %877 = vmatmul.f32.gmra.mxu0 %v859
      %v878 = vpop.f32.mrf.mxu0
      %v879 = vadd.f32 0.0, %v878
      %880 = vdwg.mxu0
      %v881 = vadd.f32 %v790, %v879
      %v883 = vperm.slane %v515, 0
      %v885 = vadd.f32 %v881, %v883
      %v886 = vadd.f32 %v477, %v885
      %v887 = vld [vmem:[%s6] sm:$0x1]
      %v888 = vld [vmem:[%s7] sm:$0x1]
      %v889 = vsel %vm487, %v886, 0.0
      %890 = vadd.xlane.f32.xlu0 %v889
      %v891 = vpop.xlane.xlu0 %890
      %v892 = vrcp.pop 32.0
      %v893 = vmul.f32 32.0, %v892
      %v894 = vsub.f32 1.0, %v893
      %v895 = vmul.f32 %v892, %v894
      %v896 = vadd.f32 %v892, %v895
      %vm897 = vweird.f32 %v892
      %v898 = vsel %vm897, %v892, %v896
      %v899 = vmul.f32 %v891, %v898
      %v900 = vsub.f32 %v886, %v899
      %v901 = vmul.f32 %v900, %v900
      %v902 = vsel %vm487, %v901, 0.0
      %903 = vadd.xlane.f32.xlu0 %v902
      %v904 = vpop.xlane.xlu0 %903
      %v905 = vmul.f32 %v904, %v898
      %v906 = vadd.f32 %v905, 1e-05
      %v907 = vrsqrt.pop %v906
      %v908 = vmul.f32 %v907, %v906
      %v909 = vmul.f32 %v908, %v907
      %v910 = vmul.f32 0.5, %v909
      %v911 = vsub.f32 1.5, %v910
      %v912 = vmul.f32 %v907, %v911
      %vm913 = vweird.f32 %v906
      %vm914 = vweird.f32 %v907
      %vm915 = vmor %vm913, %vm914
      %v916 = vsel %vm915, %v907, %v912
      %v917 = vmul.f32 %v900, %v916
      %v919 = vperm.slane %v887, 0
      %v921 = vmul.f32 %v917, %v919
      %v923 = vperm.slane %v888, 0
      %v925 = vadd.f32 %v921, %v923
      %v926 = vld [vmem:[%s8] sm:$0xff]
      %v927 = vld [vmem:[%s8 + $0x8] sm:$0xff]
      %v928 = vld [vmem:[%s8 + $0x10] sm:$0xff]
      %v929 = vld [vmem:[%s8 + $0x18] sm:$0xff]
      %v930 = vld [vmem:[%s9] sm:$0x1]
      %v932 = vperm.slane %v930, 0
      %v935 = vsel %vm487, %v925, 0
      %937 = vmatpush.msra.mxu0 0.0
      %938 = vmatpush.msra.mxu0 0.0
      %939 = vmatpush.msra.mxu0 0.0
      %940 = vmatpush.msra.mxu0 0.0
      %941 = vmatpush.msra.mxu0 0.0
      %942 = vmatpush.msra.mxu0 0.0
      %943 = vmatpush.msra.mxu0 0.0
      %944 = vmatpush.msra.mxu0 0.0
      %945 = vmatpush.msra.mxu0 0.0
      %946 = vmatpush.msra.mxu0 0.0
      %947 = vmatpush.msra.mxu0 0.0
      %948 = vmatpush.msra.mxu0 0.0
      %949 = vmatpush.msra.mxu0 %v929
      %950 = vmatpush.msra.mxu0 %v928
      %951 = vmatpush.msra.mxu0 %v927
      %952 = vmatpush.msra.mxu0 %v926
      %953 = vmatmul.f32.gmra.mxu0 %v935
      %v954 = vpop.f32.mrf.mxu0
      %v955 = vadd.f32 %v932, %v954
      %956 = vdwg.mxu0
      %v957 = vmax.f32 %v955, 0.0
      %v958 = vld [vmem:[%s10] sm:$0xff]
      %v959 = vld [vmem:[%s10 + $0x8] sm:$0xff]
      %v960 = vld [vmem:[%s10 + $0x10] sm:$0xff]
      %v961 = vld [vmem:[%s10 + $0x18] sm:$0xff]
      %v962 = vld [vmem:[%s10 + $0x20] sm:$0xff]
      %v963 = vld [vmem:[%s10 + $0x28] sm:$0xff]
      %v964 = vld [vmem:[%s10 + $0x30] sm:$0xff]
      %v965 = vld [vmem:[%s10 + $0x38] sm:$0xff]
      %v966 = vld [vmem:[%s11] sm:$0x1]
      %v968 = vperm.slane %v966, 0
      %vm970 = vcmask 523264
      %v972 = vsel %vm970, %v957, 0
      %974 = vmatpush.msra.mxu0 0.0
      %975 = vmatpush.msra.mxu0 0.0
      %976 = vmatpush.msra.mxu0 0.0
      %977 = vmatpush.msra.mxu0 0.0
      %978 = vmatpush.msra.mxu0 0.0
      %979 = vmatpush.msra.mxu0 0.0
      %980 = vmatpush.msra.mxu0 0.0
      %981 = vmatpush.msra.mxu0 0.0
      %982 = vmatpush.msra.mxu0 %v965
      %983 = vmatpush.msra.mxu0 %v964
      %984 = vmatpush.msra.mxu0 %v963
      %985 = vmatpush.msra.mxu0 %v962
      %986 = vmatpush.msra.mxu0 %v961
      %987 = vmatpush.msra.mxu0 %v960
      %988 = vmatpush.msra.mxu0 %v959
      %989 = vmatpush.msra.mxu0 %v958
      %990 = vmatmul.f32.gmra.mxu0 %v972
      %v991 = vpop.f32.mrf.mxu0
      %v992 = vadd.f32 %v968, %v991
      %993 = vdwg.mxu0
      %v994 = vadd.f32 %v925, %v992
      %v995 = vld [vmem:[%s12] sm:$0x1]
      %v996 = vld [vmem:[%s13] sm:$0x1]
      %v997 = vsel %vm487, %v994, 0.0
      %998 = vadd.xlane.f32.xlu0 %v997
      %v999 = vpop.xlane.xlu0 %998
      %v1000 = vmul.f32 %v999, %v898
      %v1001 = vsub.f32 %v994, %v1000
      %v1002 = vmul.f32 %v1001, %v1001
      %v1003 = vsel %vm487, %v1002, 0.0
      %1004 = vadd.xlane.f32.xlu0 %v1003
      %v1005 = vpop.xlane.xlu0 %1004
      %v1006 = vmul.f32 %v1005, %v898
      %v1007 = vadd.f32 %v1006, 1e-05
      %v1008 = vrsqrt.pop %v1007
      %v1009 = vmul.f32 %v1008, %v1007
      %v1010 = vmul.f32 %v1009, %v1008
      %v1011 = vmul.f32 0.5, %v1010
      %v1012 = vsub.f32 1.5, %v1011
      %v1013 = vmul.f32 %v1008, %v1012
      %vm1014 = vweird.f32 %v1007
      %vm1015 = vweird.f32 %v1008
      %vm1016 = vmor %vm1014, %vm1015
      %v1017 = vsel %vm1016, %v1008, %v1013
      %v1018 = vmul.f32 %v1001, %v1017
      %v1020 = vperm.slane %v995, 0
      %v1022 = vmul.f32 %v1018, %v1020
      %v1024 = vperm.slane %v996, 0
      %v1026 = vadd.f32 %v1022, %v1024
      %1027 = vst.msk [vmem:[%s476] sm:$0xff] %vm487, %v1026
      %p1028 = scmp.lt.s32.totalorder %s25, 1
      %s1029 = scalar_select %p1028, %s25, 1
      %s1030 = smul.addr %s1029, 8
      %s1031 = scalar_lea.vmem %s14, %s1030
      // Predicated region
      $region77: #{transformer_forward.5} parent=75 // pred_check
        %p1032 = pneg %p347
      $region78: #{transformer_forward.5} parent=75 // pred_check_branch
        %1034 = sbr.rel (%p1032) target = $region80
      $region79: #{transformer_forward.5} parent=75 // pred_region
        _
      $region80: #{transformer_forward.5} parent=75 // pred_fallthru
        _
    $region76: #{transformer_forward.5} parent=5 // pred_fallthru
      _
    %p1035 = scmp.le.s32.totalorder 2, %s20
    // Predicated region
    $region81: #{transformer_forward.5} parent=5 // pred_check
      %p1036 = pneg %p1035
    $region82: #{transformer_forward.5} parent=5 // pred_check_branch
      %1038 = sbr.rel (%p1036) target = $region84
    $region83: #{transformer_forward.5} parent=5 // pred_region
      %s1039 = ssub.s32 %s20, 2
      // Predicated region
      $region85: #{transformer_forward.5} parent=83 // pred_check
        %p1040 = pneg %p353
      $region86: #{transformer_forward.5} parent=83 // pred_check_branch
        %1042 = sbr.rel (%p1040) target = $region88
      $region87: #{transformer_forward.5} parent=83 // pred_region
        %p1043 = scmp.lt.s32.totalorder %s26, 1
        %s1044 = scalar_select %p1043, %s26, 1
        %s1045 = smul.addr %s1044, 8
        %s1046 = scalar_lea.vmem %s14, %s1045
      $region88: #{transformer_forward.5} parent=83 // pred_fallthru
        _
    $region84: #{transformer_forward.5} parent=5 // pred_fallthru
      _
  $region6: #{transformer_forward.5} parent=0 // loop_footer
    %s24 = sadd.s32 1, %s20
  $region7: #{transformer_forward.5} parent=0 // loop_footer_branch
    %19 = sbr.rel target = $region3
  $region8: #{transformer_forward.5} parent=0 // loop_exit
    _

// kernel: transformer_forward.7
$region0: #{transformer_forward.7}
  #allocation0 [shape = 'u32[]', space=smem, size = 0x4, offset = 0x4, fixed_abs, tag = 'smem constant byte address 0x4 - core index']
  #allocation1 [shape = 'u32[72,128]{1,0:T(1,128)}', space=vmem, size = 0x9000, scoped, tag = 'internal scratch']
  %s0 = inlined_call_operand.vmem [shape: f32[2,8,32], index: 0, kind: input, shape index: {}]
  %s1 = inlined_call_operand.vmem [shape: f32[2,8,32], index: 1, kind: input, shape index: {}]
  %s2 = inlined_call_operand.vmem [shape: f32[2,8,8], index: 2, kind: input, shape index: {}]
  %s3 = inlined_call_operand.vmem [shape: f32[2,1,8], index: 3, kind: input, shape index: {}]
  %s4 = inlined_call_operand.vmem [shape: f32[32,96], index: 4, kind: input, shape index: {}]
  %s5 = inlined_call_operand.vmem [shape: f32[1,96], index: 5, kind: input, shape index: {}]
  %s6 = inlined_call_operand.vmem [shape: f32[32,32], index: 6, kind: input, shape index: {}]
  %s7 = inlined_call_operand.vmem [shape: f32[1,32], index: 7, kind: input, shape index: {}]
  %s8 = inlined_call_operand.vmem [shape: f32[1,32], index: 8, kind: input, shape index: {}]
  %s9 = inlined_call_operand.vmem [shape: f32[1,32], index: 9, kind: input, shape index: {}]
  %s10 = inlined_call_operand.vmem [shape: f32[32,32], index: 10, kind: input, shape index: {}]
  %s11 = inlined_call_operand.vmem [shape: f32[1,32], index: 11, kind: input, shape index: {}]
  %s12 = inlined_call_operand.vmem [shape: f32[32,64], index: 12, kind: input, shape index: {}]
  %s13 = inlined_call_operand.vmem [shape: f32[1,64], index: 13, kind: input, shape index: {}]
  %s14 = inlined_call_operand.vmem [shape: f32[32,32], index: 14, kind: input, shape index: {}]
  %s15 = inlined_call_operand.vmem [shape: f32[1,32], index: 15, kind: input, shape index: {}]
  %s16 = inlined_call_operand.vmem [shape: f32[1,32], index: 16, kind: input, shape index: {}]
  %s17 = inlined_call_operand.vmem [shape: f32[1,32], index: 17, kind: input, shape index: {}]
  %s18 = inlined_call_operand.vmem [shape: f32[32,64], index: 18, kind: input, shape index: {}]
  %s19 = inlined_call_operand.vmem [shape: f32[1,64], index: 19, kind: input, shape index: {}]
  %s20 = inlined_call_operand.vmem [shape: f32[64,32], index: 20, kind: input, shape index: {}]
  %s21 = inlined_call_operand.vmem [shape: f32[1,32], index: 21, kind: input, shape index: {}]
  %s22 = inlined_call_operand.vmem [shape: f32[1,32], index: 22, kind: input, shape index: {}]
  %s23 = inlined_call_operand.vmem [shape: f32[1,32], index: 23, kind: input, shape index: {}]
  %s24 = inlined_call_operand.vmem [shape: f32[2,8,32], index: 24, kind: output, shape index: {}]
  %s25 = sld [smem:[#allocation0]]
  $region129: #{transformer_forward.7} parent=0
    _
  %s27 = ssub.s32 1, %s25
  %s28 = scalar_select 0, %s27, %s25
  loop: start=0, step=1, limit=4
  $region2: #{transformer_forward.7} parent=0 // loop_pre_header
    _
  $region3: #{transformer_forward.7} parent=0 // loop_header
    %s30 = sphi 0, %s34
    %p31 = scmp.ge.s32.totalorder %s30, 4
    %s40 = sphi 0, %s42
    %s43 = sphi 0, %s40
    %s44 = sphi 0, %s43
    %s60 = sphi 0, %s44
    %s66 = sphi 0, %s68
    %s69 = sphi 0, %s66
    %s70 = sphi 0, %s69
    %s86 = sphi 0, %s70
    %s92 = sphi 0, %s94
    %s95 = sphi 0, %s92
    %s96 = sphi 0, %s95
    %s112 = sphi 0, %s96
    %s118 = sphi 0, %s120
    %s121 = sphi 0, %s118
    %s122 = sphi 0, %s121
    %s138 = sphi 0, %s122
    %s142 = sphi 0, %s142
    %s144 = sphi 0, %s142
    %s145 = sphi 0, %s144
    %s159 = sphi 0, %s145
    %s163 = sphi 0, %s163
    %s165 = sphi 0, %s163
    %s166 = sphi 0, %s165
    %s180 = sphi 0, %s166
    %s184 = sphi 0, %s184
    %s186 = sphi 0, %s184
    %s187 = sphi 0, %s186
    %s201 = sphi 0, %s187
    %s205 = sphi 0, %s205
    %s207 = sphi 0, %s205
    %s208 = sphi 0, %s207
    %s222 = sphi 0, %s208
    %s226 = sphi 0, %s226
    %s228 = sphi 0, %s226
    %s229 = sphi 0, %s228
    %s243 = sphi 0, %s229
    %s247 = sphi 0, %s247
    %s249 = sphi 0, %s247
    %s250 = sphi 0, %s249
    %s264 = sphi 0, %s250
    %s268 = sphi 0, %s268
    %s270 = sphi 0, %s268
    %s271 = sphi 0, %s270
    %s285 = sphi 0, %s271
    %s289 = sphi 0, %s289
    %s291 = sphi 0, %s289
    %s292 = sphi 0, %s291
    %s306 = sphi 0, %s292
    %s310 = sphi 0, %s310
    %s312 = sphi 0, %s310
    %s313 = sphi 0, %s312
    %s327 = sphi 0, %s313
    %s331 = sphi 0, %s331
    %s333 = sphi 0, %s331
    %s334 = sphi 0, %s333
    %s348 = sphi 0, %s334
    %s352 = sphi 0, %s352
    %s354 = sphi 0, %s352
    %s355 = sphi 0, %s354
    %s369 = sphi 0, %s355
    %s373 = sphi 0, %s373
    %s375 = sphi 0, %s373
    %s376 = sphi 0, %s375
    %s390 = sphi 0, %s376
    %s394 = sphi 0, %s394
    %s396 = sphi 0, %s394
    %s397 = sphi 0, %s396
    %s411 = sphi 0, %s397
    %s415 = sphi 0, %s415
    %s417 = sphi 0, %s415
    %s418 = sphi 0, %s417
    %s432 = sphi 0, %s418
    %s436 = sphi 0, %s436
    %s438 = sphi 0, %s436
    %s439 = sphi 0, %s438
    %s453 = sphi 0, %s439
    %s457 = sphi 0, %s457
    %s459 = sphi 0, %s457
    %s460 = sphi 0, %s459
    %s474 = sphi 0, %s460
    %s478 = sphi 0, %s478
    %s480 = sphi 0, %s478
    %s481 = sphi 0, %s480
    %s495 = sphi 0, %s481
    %s499 = sphi 0, %s499
    %s501 = sphi 0, %s499
    %s502 = sphi 0, %s501
    %s516 = sphi 0, %s502
    %s520 = sphi 0, %s520
    %s522 = sphi 0, %s520
    %s523 = sphi 0, %s522
    %s537 = sphi 0, %s523
    %s541 = sphi 0, %s541
    %s543 = sphi 0, %s541
    %s544 = sphi 0, %s543
    %s558 = sphi 0, %s544
    %s564 = sphi 0, %s566
    %s567 = sphi 0, %s564
    %s568 = sphi 0, %s567
    %s584 = sphi 0, %s568
  $region4: #{transformer_forward.7} parent=0 // loop_header_branch
    %33 = sbr.rel (%p31) target = $region8
  $region5: #{transformer_forward.7} parent=0 // loop_body
    %s35 = ssub.s32 %s30, 1
    %s36 = ssub.s32 %s30, 2
    %s37 = sadd.s32 %s30, 1
    %s38 = ssub.s32 %s30, %s37
    %p39 = scmp.eq.s32.totalorder %s38, 0
    %s41 = sadd.s32 %s40, 1
    %s42 = scalar_select %p39, %s40, %s41
    %p45 = pneg %p39
    %p46 = scmp.eq.s32.totalorder %s30, 1
    %p47 = por %p45, %p46
    %p48 = scmp.ne.s32.totalorder %s40, %s43
    %p49 = scmp.eq.s32.totalorder %s30, 0
    %p50 = por %p48, %p49
    %p51 = scmp.ne.s32.totalorder %s40, %s43
    %p52 = scmp.eq.s32.totalorder %s35, 1
    %p53 = por %p51, %p52
    %p54 = scmp.ne.s32.totalorder %s43, %s44
    %p55 = scmp.eq.s32.totalorder %s35, 0
    %p56 = por %p54, %p55
    %p57 = scmp.ne.s32.totalorder %s43, %s44
    %p58 = scmp.eq.s32.totalorder %s36, 1
    %p59 = por %p57, %p58
    %p61 = scmp.ne.s32.totalorder %s44, %s60
    %p62 = scmp.eq.s32.totalorder %s36, 0
    %p63 = por %p61, %p62
    %s64 = ssub.s32 %s30, %s37
    %p65 = scmp.eq.s32.totalorder %s64, 0
    %s67 = sadd.s32 %s66, 1
    %s68 = scalar_select %p65, %s66, %s67
    %p71 = pneg %p65
    %p72 = scmp.eq.s32.totalorder %s30, 1
    %p73 = por %p71, %p72
    %p74 = scmp.ne.s32.totalorder %s66, %s69
    %p75 = scmp.eq.s32.totalorder %s30, 0
    %p76 = por %p74, %p75
    %p77 = scmp.ne.s32.totalorder %s66, %s69
    %p78 = scmp.eq.s32.totalorder %s35, 1
    %p79 = por %p77, %p78
    %p80 = scmp.ne.s32.totalorder %s69, %s70
    %p81 = scmp.eq.s32.totalorder %s35, 0
    %p82 = por %p80, %p81
    %p83 = scmp.ne.s32.totalorder %s69, %s70
    %p84 = scmp.eq.s32.totalorder %s36, 1
    %p85 = por %p83, %p84
    %p87 = scmp.ne.s32.totalorder %s70, %s86
    %p88 = scmp.eq.s32.totalorder %s36, 0
    %p89 = por %p87, %p88
    %s90 = ssub.s32 %s30, %s37
    %p91 = scmp.eq.s32.totalorder %s90, 0
    %s93 = sadd.s32 %s92, 1
    %s94 = scalar_select %p91, %s92, %s93
    %p97 = pneg %p91
    %p98 = scmp.eq.s32.totalorder %s30, 1
    %p99 = por %p97, %p98
    %p100 = scmp.ne.s32.totalorder %s92, %s95
    %p101 = scmp.eq.s32.totalorder %s30, 0
    %p102 = por %p100, %p101
    %p103 = scmp.ne.s32.totalorder %s92, %s95
    %p104 = scmp.eq.s32.totalorder %s35, 1
    %p105 = por %p103, %p104
    %p106 = scmp.ne.s32.totalorder %s95, %s96
    %p107 = scmp.eq.s32.totalorder %s35, 0
    %p108 = por %p106, %p107
    %p109 = scmp.ne.s32.totalorder %s95, %s96
    %p110 = scmp.eq.s32.totalorder %s36, 1
    %p111 = por %p109, %p110
    %p113 = scmp.ne.s32.totalorder %s96, %s112
    %p114 = scmp.eq.s32.totalorder %s36, 0
    %p115 = por %p113, %p114
    %s116 = ssub.s32 %s30, %s37
    %p117 = scmp.eq.s32.totalorder %s116, 0
    %s119 = sadd.s32 %s118, 1
    %s120 = scalar_select %p117, %s118, %s119
    %p123 = pneg %p117
    %p124 = scmp.eq.s32.totalorder %s30, 1
    %p125 = por %p123, %p124
    %p126 = scmp.ne.s32.totalorder %s118, %s121
    %p127 = scmp.eq.s32.totalorder %s30, 0
    %p128 = por %p126, %p127
    %p129 = scmp.ne.s32.totalorder %s118, %s121
    %p130 = scmp.eq.s32.totalorder %s35, 1
    %p131 = por %p129, %p130
    %p132 = scmp.ne.s32.totalorder %s121, %s122
    %p133 = scmp.eq.s32.totalorder %s35, 0
    %p134 = por %p132, %p133
    %p135 = scmp.ne.s32.totalorder %s121, %s122
    %p136 = scmp.eq.s32.totalorder %s36, 1
    %p137 = por %p135, %p136
    %p139 = scmp.ne.s32.totalorder %s122, %s138
    %p140 = scmp.eq.s32.totalorder %s36, 0
    %p141 = por %p139, %p140
    %s143 = sadd.s32 %s142, 1
    %p146 = scmp.eq.s32.totalorder %s30, 1
    %p147 = scmp.ne.s32.totalorder %s142, %s144
    %p148 = scmp.eq.s32.totalorder %s30, 0
    %p149 = por %p147, %p148
    %p150 = scmp.ne.s32.totalorder %s142, %s144
    %p151 = scmp.eq.s32.totalorder %s35, 1
    %p152 = por %p150, %p151
    %p153 = scmp.ne.s32.totalorder %s144, %s145
    %p154 = scmp.eq.s32.totalorder %s35, 0
    %p155 = por %p153, %p154
    %p156 = scmp.ne.s32.totalorder %s144, %s145
    %p157 = scmp.eq.s32.totalorder %s36, 1
    %p158 = por %p156, %p157
    %p160 = scmp.ne.s32.totalorder %s145, %s159
    %p161 = scmp.eq.s32.totalorder %s36, 0
    %p162 = por %p160, %p161
    %s164 = sadd.s32 %s163, 1
    %p167 = scmp.eq.s32.totalorder %s30, 1
    %p168 = scmp.ne.s32.totalorder %s163, %s165
    %p169 = scmp.eq.s32.totalorder %s30, 0
    %p170 = por %p168, %p169
    %p171 = scmp.ne.s32.totalorder %s163, %s165
    %p172 = scmp.eq.s32.totalorder %s35, 1
    %p173 = por %p171, %p172
    %p174 = scmp.ne.s32.totalorder %s165, %s166
    %p175 = scmp.eq.s32.totalorder %s35, 0
    %p176 = por %p174, %p175
    %p177 = scmp.ne.s32.totalorder %s165, %s166
    %p178 = scmp.eq.s32.totalorder %s36, 1
    %p179 = por %p177, %p178
    %p181 = scmp.ne.s32.totalorder %s166, %s180
    %p182 = scmp.eq.s32.totalorder %s36, 0
    %p183 = por %p181, %p182
    %s185 = sadd.s32 %s184, 1
    %p188 = scmp.eq.s32.totalorder %s30, 1
    %p189 = scmp.ne.s32.totalorder %s184, %s186
    %p190 = scmp.eq.s32.totalorder %s30, 0
    %p191 = por %p189, %p190
    %p192 = scmp.ne.s32.totalorder %s184, %s186
    %p193 = scmp.eq.s32.totalorder %s35, 1
    %p194 = por %p192, %p193
    %p195 = scmp.ne.s32.totalorder %s186, %s187
    %p196 = scmp.eq.s32.totalorder %s35, 0
    %p197 = por %p195, %p196
    %p198 = scmp.ne.s32.totalorder %s186, %s187
    %p199 = scmp.eq.s32.totalorder %s36, 1
    %p200 = por %p198, %p199
    %p202 = scmp.ne.s32.totalorder %s187, %s201
    %p203 = scmp.eq.s32.totalorder %s36, 0
    %p204 = por %p202, %p203
    %s206 = sadd.s32 %s205, 1
    %p209 = scmp.eq.s32.totalorder %s30, 1
    %p210 = scmp.ne.s32.totalorder %s205, %s207
    %p211 = scmp.eq.s32.totalorder %s30, 0
    %p212 = por %p210, %p211
    %p213 = scmp.ne.s32.totalorder %s205, %s207
    %p214 = scmp.eq.s32.totalorder %s35, 1
    %p215 = por %p213, %p214
    %p216 = scmp.ne.s32.totalorder %s207, %s208
    %p217 = scmp.eq.s32.totalorder %s35, 0
    %p218 = por %p216, %p217
    %p219 = scmp.ne.s32.totalorder %s207, %s208
    %p220 = scmp.eq.s32.totalorder %s36, 1
    %p221 = por %p219, %p220
    %p223 = scmp.ne.s32.totalorder %s208, %s222
    %p224 = scmp.eq.s32.totalorder %s36, 0
    %p225 = por %p223, %p224
    %s227 = sadd.s32 %s226, 1
    %p230 = scmp.eq.s32.totalorder %s30, 1
    %p231 = scmp.ne.s32.totalorder %s226, %s228
    %p232 = scmp.eq.s32.totalorder %s30, 0
    %p233 = por %p231, %p232
    %p234 = scmp.ne.s32.totalorder %s226, %s228
    %p235 = scmp.eq.s32.totalorder %s35, 1
    %p236 = por %p234, %p235
    %p237 = scmp.ne.s32.totalorder %s228, %s229
    %p238 = scmp.eq.s32.totalorder %s35, 0
    %p239 = por %p237, %p238
    %p240 = scmp.ne.s32.totalorder %s228, %s229
    %p241 = scmp.eq.s32.totalorder %s36, 1
    %p242 = por %p240, %p241
    %p244 = scmp.ne.s32.totalorder %s229, %s243
    %p245 = scmp.eq.s32.totalorder %s36, 0
    %p246 = por %p244, %p245
    %s248 = sadd.s32 %s247, 1
    %p251 = scmp.eq.s32.totalorder %s30, 1
    %p252 = scmp.ne.s32.totalorder %s247, %s249
    %p253 = scmp.eq.s32.totalorder %s30, 0
    %p254 = por %p252, %p253
    %p255 = scmp.ne.s32.totalorder %s247, %s249
    %p256 = scmp.eq.s32.totalorder %s35, 1
    %p257 = por %p255, %p256
    %p258 = scmp.ne.s32.totalorder %s249, %s250
    %p259 = scmp.eq.s32.totalorder %s35, 0
    %p260 = por %p258, %p259
    %p261 = scmp.ne.s32.totalorder %s249, %s250
    %p262 = scmp.eq.s32.totalorder %s36, 1
    %p263 = por %p261, %p262
    %p265 = scmp.ne.s32.totalorder %s250, %s264
    %p266 = scmp.eq.s32.totalorder %s36, 0
    %p267 = por %p265, %p266
    %s269 = sadd.s32 %s268, 1
    %p272 = scmp.eq.s32.totalorder %s30, 1
    %p273 = scmp.ne.s32.totalorder %s268, %s270
    %p274 = scmp.eq.s32.totalorder %s30, 0
    %p275 = por %p273, %p274
    %p276 = scmp.ne.s32.totalorder %s268, %s270
    %p277 = scmp.eq.s32.totalorder %s35, 1
    %p278 = por %p276, %p277
    %p279 = scmp.ne.s32.totalorder %s270, %s271
    %p280 = scmp.eq.s32.totalorder %s35, 0
    %p281 = por %p279, %p280
    %p282 = scmp.ne.s32.totalorder %s270, %s271
    %p283 = scmp.eq.s32.totalorder %s36, 1
    %p284 = por %p282, %p283
    %p286 = scmp.ne.s32.totalorder %s271, %s285
    %p287 = scmp.eq.s32.totalorder %s36, 0
    %p288 = por %p286, %p287
    %s290 = sadd.s32 %s289, 1
    %p293 = scmp.eq.s32.totalorder %s30, 1
    %p294 = scmp.ne.s32.totalorder %s289, %s291
    %p295 = scmp.eq.s32.totalorder %s30, 0
    %p296 = por %p294, %p295
    %p297 = scmp.ne.s32.totalorder %s289, %s291
    %p298 = scmp.eq.s32.totalorder %s35, 1
    %p299 = por %p297, %p298
    %p300 = scmp.ne.s32.totalorder %s291, %s292
    %p301 = scmp.eq.s32.totalorder %s35, 0
    %p302 = por %p300, %p301
    %p303 = scmp.ne.s32.totalorder %s291, %s292
    %p304 = scmp.eq.s32.totalorder %s36, 1
    %p305 = por %p303, %p304
    %p307 = scmp.ne.s32.totalorder %s292, %s306
    %p308 = scmp.eq.s32.totalorder %s36, 0
    %p309 = por %p307, %p308
    %s311 = sadd.s32 %s310, 1
    %p314 = scmp.eq.s32.totalorder %s30, 1
    %p315 = scmp.ne.s32.totalorder %s310, %s312
    %p316 = scmp.eq.s32.totalorder %s30, 0
    %p317 = por %p315, %p316
    %p318 = scmp.ne.s32.totalorder %s310, %s312
    %p319 = scmp.eq.s32.totalorder %s35, 1
    %p320 = por %p318, %p319
    %p321 = scmp.ne.s32.totalorder %s312, %s313
    %p322 = scmp.eq.s32.totalorder %s35, 0
    %p323 = por %p321, %p322
    %p324 = scmp.ne.s32.totalorder %s312, %s313
    %p325 = scmp.eq.s32.totalorder %s36, 1
    %p326 = por %p324, %p325
    %p328 = scmp.ne.s32.totalorder %s313, %s327
    %p329 = scmp.eq.s32.totalorder %s36, 0
    %p330 = por %p328, %p329
    %s332 = sadd.s32 %s331, 1
    %p335 = scmp.eq.s32.totalorder %s30, 1
    %p336 = scmp.ne.s32.totalorder %s331, %s333
    %p337 = scmp.eq.s32.totalorder %s30, 0
    %p338 = por %p336, %p337
    %p339 = scmp.ne.s32.totalorder %s331, %s333
    %p340 = scmp.eq.s32.totalorder %s35, 1
    %p341 = por %p339, %p340
    %p342 = scmp.ne.s32.totalorder %s333, %s334
    %p343 = scmp.eq.s32.totalorder %s35, 0
    %p344 = por %p342, %p343
    %p345 = scmp.ne.s32.totalorder %s333, %s334
    %p346 = scmp.eq.s32.totalorder %s36, 1
    %p347 = por %p345, %p346
    %p349 = scmp.ne.s32.totalorder %s334, %s348
    %p350 = scmp.eq.s32.totalorder %s36, 0
    %p351 = por %p349, %p350
    %s353 = sadd.s32 %s352, 1
    %p356 = scmp.eq.s32.totalorder %s30, 1
    %p357 = scmp.ne.s32.totalorder %s352, %s354
    %p358 = scmp.eq.s32.totalorder %s30, 0
    %p359 = por %p357, %p358
    %p360 = scmp.ne.s32.totalorder %s352, %s354
    %p361 = scmp.eq.s32.totalorder %s35, 1
    %p362 = por %p360, %p361
    %p363 = scmp.ne.s32.totalorder %s354, %s355
    %p364 = scmp.eq.s32.totalorder %s35, 0
    %p365 = por %p363, %p364
    %p366 = scmp.ne.s32.totalorder %s354, %s355
    %p367 = scmp.eq.s32.totalorder %s36, 1
    %p368 = por %p366, %p367
    %p370 = scmp.ne.s32.totalorder %s355, %s369
    %p371 = scmp.eq.s32.totalorder %s36, 0
    %p372 = por %p370, %p371
    %s374 = sadd.s32 %s373, 1
    %p377 = scmp.eq.s32.totalorder %s30, 1
    %p378 = scmp.ne.s32.totalorder %s373, %s375
    %p379 = scmp.eq.s32.totalorder %s30, 0
    %p380 = por %p378, %p379
    %p381 = scmp.ne.s32.totalorder %s373, %s375
    %p382 = scmp.eq.s32.totalorder %s35, 1
    %p383 = por %p381, %p382
    %p384 = scmp.ne.s32.totalorder %s375, %s376
    %p385 = scmp.eq.s32.totalorder %s35, 0
    %p386 = por %p384, %p385
    %p387 = scmp.ne.s32.totalorder %s375, %s376
    %p388 = scmp.eq.s32.totalorder %s36, 1
    %p389 = por %p387, %p388
    %p391 = scmp.ne.s32.totalorder %s376, %s390
    %p392 = scmp.eq.s32.totalorder %s36, 0
    %p393 = por %p391, %p392
    %s395 = sadd.s32 %s394, 1
    %p398 = scmp.eq.s32.totalorder %s30, 1
    %p399 = scmp.ne.s32.totalorder %s394, %s396
    %p400 = scmp.eq.s32.totalorder %s30, 0
    %p401 = por %p399, %p400
    %p402 = scmp.ne.s32.totalorder %s394, %s396
    %p403 = scmp.eq.s32.totalorder %s35, 1
    %p404 = por %p402, %p403
    %p405 = scmp.ne.s32.totalorder %s396, %s397
    %p406 = scmp.eq.s32.totalorder %s35, 0
    %p407 = por %p405, %p406
    %p408 = scmp.ne.s32.totalorder %s396, %s397
    %p409 = scmp.eq.s32.totalorder %s36, 1
    %p410 = por %p408, %p409
    %p412 = scmp.ne.s32.totalorder %s397, %s411
    %p413 = scmp.eq.s32.totalorder %s36, 0
    %p414 = por %p412, %p413
    %s416 = sadd.s32 %s415, 1
    %p419 = scmp.eq.s32.totalorder %s30, 1
    %p420 = scmp.ne.s32.totalorder %s415, %s417
    %p421 = scmp.eq.s32.totalorder %s30, 0
    %p422 = por %p420, %p421
    %p423 = scmp.ne.s32.totalorder %s415, %s417
    %p424 = scmp.eq.s32.totalorder %s35, 1
    %p425 = por %p423, %p424
    %p426 = scmp.ne.s32.totalorder %s417, %s418
    %p427 = scmp.eq.s32.totalorder %s35, 0
    %p428 = por %p426, %p427
    %p429 = scmp.ne.s32.totalorder %s417, %s418
    %p430 = scmp.eq.s32.totalorder %s36, 1
    %p431 = por %p429, %p430
    %p433 = scmp.ne.s32.totalorder %s418, %s432
    %p434 = scmp.eq.s32.totalorder %s36, 0
    %p435 = por %p433, %p434
    %s437 = sadd.s32 %s436, 1
    %p440 = scmp.eq.s32.totalorder %s30, 1
    %p441 = scmp.ne.s32.totalorder %s436, %s438
    %p442 = scmp.eq.s32.totalorder %s30, 0
    %p443 = por %p441, %p442
    %p444 = scmp.ne.s32.totalorder %s436, %s438
    %p445 = scmp.eq.s32.totalorder %s35, 1
    %p446 = por %p444, %p445
    %p447 = scmp.ne.s32.totalorder %s438, %s439
    %p448 = scmp.eq.s32.totalorder %s35, 0
    %p449 = por %p447, %p448
    %p450 = scmp.ne.s32.totalorder %s438, %s439
    %p451 = scmp.eq.s32.totalorder %s36, 1
    %p452 = por %p450, %p451
    %p454 = scmp.ne.s32.totalorder %s439, %s453
    %p455 = scmp.eq.s32.totalorder %s36, 0
    %p456 = por %p454, %p455
    %s458 = sadd.s32 %s457, 1
    %p461 = scmp.eq.s32.totalorder %s30, 1
    %p462 = scmp.ne.s32.totalorder %s457, %s459
    %p463 = scmp.eq.s32.totalorder %s30, 0
    %p464 = por %p462, %p463
    %p465 = scmp.ne.s32.totalorder %s457, %s459
    %p466 = scmp.eq.s32.totalorder %s35, 1
    %p467 = por %p465, %p466
    %p468 = scmp.ne.s32.totalorder %s459, %s460
    %p469 = scmp.eq.s32.totalorder %s35, 0
    %p470 = por %p468, %p469
    %p471 = scmp.ne.s32.totalorder %s459, %s460
    %p472 = scmp.eq.s32.totalorder %s36, 1
    %p473 = por %p471, %p472
    %p475 = scmp.ne.s32.totalorder %s460, %s474
    %p476 = scmp.eq.s32.totalorder %s36, 0
    %p477 = por %p475, %p476
    %s479 = sadd.s32 %s478, 1
    %p482 = scmp.eq.s32.totalorder %s30, 1
    %p483 = scmp.ne.s32.totalorder %s478, %s480
    %p484 = scmp.eq.s32.totalorder %s30, 0
    %p485 = por %p483, %p484
    %p486 = scmp.ne.s32.totalorder %s478, %s480
    %p487 = scmp.eq.s32.totalorder %s35, 1
    %p488 = por %p486, %p487
    %p489 = scmp.ne.s32.totalorder %s480, %s481
    %p490 = scmp.eq.s32.totalorder %s35, 0
    %p491 = por %p489, %p490
    %p492 = scmp.ne.s32.totalorder %s480, %s481
    %p493 = scmp.eq.s32.totalorder %s36, 1
    %p494 = por %p492, %p493
    %p496 = scmp.ne.s32.totalorder %s481, %s495
    %p497 = scmp.eq.s32.totalorder %s36, 0
    %p498 = por %p496, %p497
    %s500 = sadd.s32 %s499, 1
    %p503 = scmp.eq.s32.totalorder %s30, 1
    %p504 = scmp.ne.s32.totalorder %s499, %s501
    %p505 = scmp.eq.s32.totalorder %s30, 0
    %p506 = por %p504, %p505
    %p507 = scmp.ne.s32.totalorder %s499, %s501
    %p508 = scmp.eq.s32.totalorder %s35, 1
    %p509 = por %p507, %p508
    %p510 = scmp.ne.s32.totalorder %s501, %s502
    %p511 = scmp.eq.s32.totalorder %s35, 0
    %p512 = por %p510, %p511
    %p513 = scmp.ne.s32.totalorder %s501, %s502
    %p514 = scmp.eq.s32.totalorder %s36, 1
    %p515 = por %p513, %p514
    %p517 = scmp.ne.s32.totalorder %s502, %s516
    %p518 = scmp.eq.s32.totalorder %s36, 0
    %p519 = por %p517, %p518
    %s521 = sadd.s32 %s520, 1
    %p524 = scmp.eq.s32.totalorder %s30, 1
    %p525 = scmp.ne.s32.totalorder %s520, %s522
    %p526 = scmp.eq.s32.totalorder %s30, 0
    %p527 = por %p525, %p526
    %p528 = scmp.ne.s32.totalorder %s520, %s522
    %p529 = scmp.eq.s32.totalorder %s35, 1
    %p530 = por %p528, %p529
    %p531 = scmp.ne.s32.totalorder %s522, %s523
    %p532 = scmp.eq.s32.totalorder %s35, 0
    %p533 = por %p531, %p532
    %p534 = scmp.ne.s32.totalorder %s522, %s523
    %p535 = scmp.eq.s32.totalorder %s36, 1
    %p536 = por %p534, %p535
    %p538 = scmp.ne.s32.totalorder %s523, %s537
    %p539 = scmp.eq.s32.totalorder %s36, 0
    %p540 = por %p538, %p539
    %s542 = sadd.s32 %s541, 1
    %p545 = scmp.eq.s32.totalorder %s30, 1
    %p546 = scmp.ne.s32.totalorder %s541, %s543
    %p547 = scmp.eq.s32.totalorder %s30, 0
    %p548 = por %p546, %p547
    %p549 = scmp.ne.s32.totalorder %s541, %s543
    %p550 = scmp.eq.s32.totalorder %s35, 1
    %p551 = por %p549, %p550
    %p552 = scmp.ne.s32.totalorder %s543, %s544
    %p553 = scmp.eq.s32.totalorder %s35, 0
    %p554 = por %p552, %p553
    %p555 = scmp.ne.s32.totalorder %s543, %s544
    %p556 = scmp.eq.s32.totalorder %s36, 1
    %p557 = por %p555, %p556
    %p559 = scmp.ne.s32.totalorder %s544, %s558
    %p560 = scmp.eq.s32.totalorder %s36, 0
    %p561 = por %p559, %p560
    %s562 = ssub.s32 %s30, %s37
    %p563 = scmp.eq.s32.totalorder %s562, 0
    %s565 = sadd.s32 %s564, 1
    %s566 = scalar_select %p563, %s564, %s565
    %p569 = pneg %p563
    %p570 = scmp.eq.s32.totalorder %s30, 1
    %p571 = por %p569, %p570
    %p572 = scmp.ne.s32.totalorder %s564, %s567
    %p573 = scmp.eq.s32.totalorder %s30, 0
    %p574 = por %p572, %p573
    %p575 = scmp.ne.s32.totalorder %s564, %s567
    %p576 = scmp.eq.s32.totalorder %s35, 1
    %p577 = por %p575, %p576
    %p578 = scmp.ne.s32.totalorder %s567, %s568
    %p579 = scmp.eq.s32.totalorder %s35, 0
    %p580 = por %p578, %p579
    %p581 = scmp.ne.s32.totalorder %s567, %s568
    %p582 = scmp.eq.s32.totalorder %s36, 1
    %p583 = por %p581, %p582
    %p585 = scmp.ne.s32.totalorder %s568, %s584
    %p586 = scmp.eq.s32.totalorder %s36, 0
    %p587 = por %p585, %p586
    %p588 = scmp.le.s32.totalorder 1, %s30
    %p589 = scmp.lt.s32.totalorder %s30, 3
    %p590 = pnand %p588, %p589
    %p591 = pneg %p590
    // Predicated region
    $region9: #{transformer_forward.7} parent=5 // pred_check
      _
    $region10: #{transformer_forward.7} parent=5 // pred_check_branch
      %593 = sbr.rel (%p590) target = $region12
    $region11: #{transformer_forward.7} parent=5 // pred_region
      %s594 = ssub.s32 %s30, 1
      // Predicated region
      $region13: #{transformer_forward.7} parent=11 // pred_check
        %p595 = pneg %p155
      $region14: #{transformer_forward.7} parent=11 // pred_check_branch
        %597 = sbr.rel (%p595) target = $region16
      $region15: #{transformer_forward.7} parent=11 // pred_region
        _
      $region16: #{transformer_forward.7} parent=11 // pred_fallthru
        _
      // Predicated region
      $region17: #{transformer_forward.7} parent=11 // pred_check
        %p598 = pneg %p176
      $region18: #{transformer_forward.7} parent=11 // pred_check_branch
        %600 = sbr.rel (%p598) target = $region20
      $region19: #{transformer_forward.7} parent=11 // pred_region
        _
      $region20: #{transformer_forward.7} parent=11 // pred_fallthru
        _
      // Predicated region
      $region21: #{transformer_forward.7} parent=11 // pred_check
        %p601 = pneg %p197
      $region22: #{transformer_forward.7} parent=11 // pred_check_branch
        %603 = sbr.rel (%p601) target = $region24
      $region23: #{transformer_forward.7} parent=11 // pred_region
        _
      $region24: #{transformer_forward.7} parent=11 // pred_fallthru
        _
      // Predicated region
      $region25: #{transformer_forward.7} parent=11 // pred_check
        %p604 = pneg %p218
      $region26: #{transformer_forward.7} parent=11 // pred_check_branch
        %606 = sbr.rel (%p604) target = $region28
      $region27: #{transformer_forward.7} parent=11 // pred_region
        _
      $region28: #{transformer_forward.7} parent=11 // pred_fallthru
        _
      // Predicated region
      $region29: #{transformer_forward.7} parent=11 // pred_check
        %p607 = pneg %p239
      $region30: #{transformer_forward.7} parent=11 // pred_check_branch
        %609 = sbr.rel (%p607) target = $region32
      $region31: #{transformer_forward.7} parent=11 // pred_region
        _
      $region32: #{transformer_forward.7} parent=11 // pred_fallthru
        _
      // Predicated region
      $region33: #{transformer_forward.7} parent=11 // pred_check
        %p610 = pneg %p260
      $region34: #{transformer_forward.7} parent=11 // pred_check_branch
        %612 = sbr.rel (%p610) target = $region36
      $region35: #{transformer_forward.7} parent=11 // pred_region
        _
      $region36: #{transformer_forward.7} parent=11 // pred_fallthru
        _
      // Predicated region
      $region37: #{transformer_forward.7} parent=11 // pred_check
        %p613 = pneg %p281
      $region38: #{transformer_forward.7} parent=11 // pred_check_branch
        %615 = sbr.rel (%p613) target = $region40
      $region39: #{transformer_forward.7} parent=11 // pred_region
        _
      $region40: #{transformer_forward.7} parent=11 // pred_fallthru
        _
      // Predicated region
      $region41: #{transformer_forward.7} parent=11 // pred_check
        %p616 = pneg %p302
      $region42: #{transformer_forward.7} parent=11 // pred_check_branch
        %618 = sbr.rel (%p616) target = $region44
      $region43: #{transformer_forward.7} parent=11 // pred_region
        _
      $region44: #{transformer_forward.7} parent=11 // pred_fallthru
        _
      // Predicated region
      $region45: #{transformer_forward.7} parent=11 // pred_check
        %p619 = pneg %p323
      $region46: #{transformer_forward.7} parent=11 // pred_check_branch
        %621 = sbr.rel (%p619) target = $region48
      $region47: #{transformer_forward.7} parent=11 // pred_region
        _
      $region48: #{transformer_forward.7} parent=11 // pred_fallthru
        _
      // Predicated region
      $region49: #{transformer_forward.7} parent=11 // pred_check
        %p622 = pneg %p344
      $region50: #{transformer_forward.7} parent=11 // pred_check_branch
        %624 = sbr.rel (%p622) target = $region52
      $region51: #{transformer_forward.7} parent=11 // pred_region
        _
      $region52: #{transformer_forward.7} parent=11 // pred_fallthru
        _
      // Predicated region
      $region53: #{transformer_forward.7} parent=11 // pred_check
        %p625 = pneg %p365
      $region54: #{transformer_forward.7} parent=11 // pred_check_branch
        %627 = sbr.rel (%p625) target = $region56
      $region55: #{transformer_forward.7} parent=11 // pred_region
        _
      $region56: #{transformer_forward.7} parent=11 // pred_fallthru
        _
      // Predicated region
      $region57: #{transformer_forward.7} parent=11 // pred_check
        %p628 = pneg %p386
      $region58: #{transformer_forward.7} parent=11 // pred_check_branch
        %630 = sbr.rel (%p628) target = $region60
      $region59: #{transformer_forward.7} parent=11 // pred_region
        _
      $region60: #{transformer_forward.7} parent=11 // pred_fallthru
        _
      // Predicated region
      $region61: #{transformer_forward.7} parent=11 // pred_check
        %p631 = pneg %p407
      $region62: #{transformer_forward.7} parent=11 // pred_check_branch
        %633 = sbr.rel (%p631) target = $region64
      $region63: #{transformer_forward.7} parent=11 // pred_region
        _
      $region64: #{transformer_forward.7} parent=11 // pred_fallthru
        _
      // Predicated region
      $region65: #{transformer_forward.7} parent=11 // pred_check
        %p634 = pneg %p428
      $region66: #{transformer_forward.7} parent=11 // pred_check_branch
        %636 = sbr.rel (%p634) target = $region68
      $region67: #{transformer_forward.7} parent=11 // pred_region
        _
      $region68: #{transformer_forward.7} parent=11 // pred_fallthru
        _
      // Predicated region
      $region69: #{transformer_forward.7} parent=11 // pred_check
        %p637 = pneg %p449
      $region70: #{transformer_forward.7} parent=11 // pred_check_branch
        %639 = sbr.rel (%p637) target = $region72
      $region71: #{transformer_forward.7} parent=11 // pred_region
        _
      $region72: #{transformer_forward.7} parent=11 // pred_fallthru
        _
      // Predicated region
      $region73: #{transformer_forward.7} parent=11 // pred_check
        %p640 = pneg %p470
      $region74: #{transformer_forward.7} parent=11 // pred_check_branch
        %642 = sbr.rel (%p640) target = $region76
      $region75: #{transformer_forward.7} parent=11 // pred_region
        _
      $region76: #{transformer_forward.7} parent=11 // pred_fallthru
        _
      // Predicated region
      $region77: #{transformer_forward.7} parent=11 // pred_check
        %p643 = pneg %p491
      $region78: #{transformer_forward.7} parent=11 // pred_check_branch
        %645 = sbr.rel (%p643) target = $region80
      $region79: #{transformer_forward.7} parent=11 // pred_region
        _
      $region80: #{transformer_forward.7} parent=11 // pred_fallthru
        _
      // Predicated region
      $region81: #{transformer_forward.7} parent=11 // pred_check
        %p646 = pneg %p512
      $region82: #{transformer_forward.7} parent=11 // pred_check_branch
        %648 = sbr.rel (%p646) target = $region84
      $region83: #{transformer_forward.7} parent=11 // pred_region
        _
      $region84: #{transformer_forward.7} parent=11 // pred_fallthru
        _
      // Predicated region
      $region85: #{transformer_forward.7} parent=11 // pred_check
        %p649 = pneg %p533
      $region86: #{transformer_forward.7} parent=11 // pred_check_branch
        %651 = sbr.rel (%p649) target = $region88
      $region87: #{transformer_forward.7} parent=11 // pred_region
        _
      $region88: #{transformer_forward.7} parent=11 // pred_fallthru
        _
      // Predicated region
      $region89: #{transformer_forward.7} parent=11 // pred_check
        %p652 = pneg %p554
      $region90: #{transformer_forward.7} parent=11 // pred_check_branch
        %654 = sbr.rel (%p652) target = $region92
      $region91: #{transformer_forward.7} parent=11 // pred_region
        _
      $region92: #{transformer_forward.7} parent=11 // pred_fallthru
        _
    $region12: #{transformer_forward.7} parent=5 // pred_fallthru
      _
    %p655 = scmp.lt.s32.totalorder %s30, 2
    // Predicated region
    $region93: #{transformer_forward.7} parent=5 // pred_check
      %p656 = pneg %p655
    $region94: #{transformer_forward.7} parent=5 // pred_check_branch
      %658 = sbr.rel (%p656) target = $region96
    $region95: #{transformer_forward.7} parent=5 // pred_region
      // Predicated region
      $region97: #{transformer_forward.7} parent=95 // pred_check
        %p659 = pneg %p50
      $region98: #{transformer_forward.7} parent=95 // pred_check_branch
        %661 = sbr.rel (%p659) target = $region100
      $region99: #{transformer_forward.7} parent=95 // pred_region
        %p662 = scmp.lt.s32.totalorder %s30, 1
        %s663 = scalar_select %p662, %s30, 1
        %s664 = smul.addr %s663, 8
        %s665 = scalar_lea.vmem %s0, %s664
      $region100: #{transformer_forward.7} parent=95 // pred_fallthru
        _
      // Predicated region
      $region101: #{transformer_forward.7} parent=95 // pred_check
        %p666 = pneg %p76
      $region102: #{transformer_forward.7} parent=95 // pred_check_branch
        %668 = sbr.rel (%p666) target = $region104
      $region103: #{transformer_forward.7} parent=95 // pred_region
        %p669 = scmp.lt.s32.totalorder %s30, 1
        %s670 = scalar_select %p669, %s30, 1
        %s671 = smul.addr %s670, 8
        %s672 = scalar_lea.vmem %s1, %s671
      $region104: #{transformer_forward.7} parent=95 // pred_fallthru
        _
      // Predicated region
      $region105: #{transformer_forward.7} parent=95 // pred_check
        %p673 = pneg %p102
      $region106: #{transformer_forward.7} parent=95 // pred_check_branch
        %675 = sbr.rel (%p673) target = $region108
      $region107: #{transformer_forward.7} parent=95 // pred_region
        %p676 = scmp.lt.s32.totalorder %s30, 1
        %s677 = scalar_select %p676, %s30, 1
        %s678 = smul.addr %s677, 8
        %s679 = scalar_lea.vmem %s2, %s678
      $region108: #{transformer_forward.7} parent=95 // pred_fallthru
        _
      // Predicated region
      $region109: #{transformer_forward.7} parent=95 // pred_check
        %p680 = pneg %p128
      $region110: #{transformer_forward.7} parent=95 // pred_check_branch
        %682 = sbr.rel (%p680) target = $region112
      $region111: #{transformer_forward.7} parent=95 // pred_region
        %p683 = scmp.lt.s32.totalorder %s30, 1
        %s684 = scalar_select %p683, %s30, 1
        %s685 = scalar_lea.vmem %s3, %s684
      $region112: #{transformer_forward.7} parent=95 // pred_fallthru
        _
    $region96: #{transformer_forward.7} parent=5 // pred_fallthru
      _
    %p686 = scmp.le.s32.totalorder 1, %s30
    %p687 = scmp.lt.s32.totalorder %s30, 3
    %p688 = pnand %p686, %p687
    %p689 = pneg %p688
    // Predicated region
    $region113: #{transformer_forward.7} parent=5 // pred_check
      _
    $region114: #{transformer_forward.7} parent=5 // pred_check_branch
      %691 = sbr.rel (%p688) target = $region116
    $region115: #{transformer_forward.7} parent=5 // pred_region
      %s692 = ssub.s32 %s30, 1
      %p693 = scmp.lt.s32.totalorder %s35, 1
      %s694 = scalar_select %p693, %s35, 1
      %s695 = smul.addr %s694, 8
      %s696 = scalar_lea.vmem %s0, %s695
      %p697 = pneg %p56
      %p698 = pneg %p53
      %p699 = scmp.lt.s32.totalorder %s35, 1
      %s700 = scalar_select %p699, %s35, 1
      %s701 = smul.addr %s700, 8
      %s702 = scalar_lea.vmem %s1, %s701
      %p703 = pneg %p82
      %p704 = pneg %p79
      %p705 = scmp.lt.s32.totalorder %s35, 1
      %s706 = scalar_select %p705, %s35, 1
      %s707 = smul.addr %s706, 8
      %s708 = scalar_lea.vmem %s2, %s707
      %p709 = pneg %p108
      %p710 = pneg %p105
      %p711 = scmp.lt.s32.totalorder %s35, 1
      %s712 = scalar_select %p711, %s35, 1
      %s713 = scalar_lea.vmem %s3, %s712
      %p714 = pneg %p134
      %p715 = pneg %p131
      %p716 = pneg %p155
      %p717 = pneg %p152
      %p718 = pneg %p176
      %p719 = pneg %p173
      %p720 = pneg %p197
      %p721 = pneg %p194
      %p722 = pneg %p218
      %p723 = pneg %p215
      %p724 = pneg %p239
      %p725 = pneg %p236
      %p726 = pneg %p260
      %p727 = pneg %p257
      %p728 = pneg %p281
      %p729 = pneg %p278
      %p730 = pneg %p302
      %p731 = pneg %p299
      %p732 = pneg %p323
      %p733 = pneg %p320
      %p734 = pneg %p344
      %p735 = pneg %p341
      %p736 = pneg %p365
      %p737 = pneg %p362
      %p738 = pneg %p386
      %p739 = pneg %p383
      %p740 = pneg %p407
      %p741 = pneg %p404
      %p742 = pneg %p428
      %p743 = pneg %p425
      %p744 = pneg %p449
      %p745 = pneg %p446
      %p746 = pneg %p470
      %p747 = pneg %p467
      %p748 = pneg %p491
      %p749 = pneg %p488
      %p750 = pneg %p512
      %p751 = pneg %p509
      %p752 = pneg %p533
      %p753 = pneg %p530
      %p754 = pneg %p554
      %p755 = pneg %p551
      %p756 = pneg %p580
      %p757 = pneg %p577
      %p758 = scmp.lt.s32.totalorder %s35, 1
      %s759 = scalar_select %p758, %s35, 1
      %s760 = smul.addr %s759, 8
      %s761 = scalar_lea.vmem %s24, %s760
      %p762 = scmp.lt.s32.totalorder %s35, 1
      %s763 = scalar_select %p762, %s35, 1
      %s764 = smul.addr %s763, 8
      %s765 = scalar_lea.vmem %s0, %s764
      %p766 = scmp.lt.s32.totalorder %s35, 1
      %s767 = scalar_select %p766, %s35, 1
      %s768 = smul.addr %s767, 8
      %s769 = scalar_lea.vmem %s1, %s768
      %p770 = scmp.lt.s32.totalorder %s35, 1
      %s771 = scalar_select %p770, %s35, 1
      %s772 = smul.addr %s771, 8
      %s773 = scalar_lea.vmem %s2, %s772
      %p774 = scmp.lt.s32.totalorder %s35, 1
      %s775 = scalar_select %p774, %s35, 1
      %s776 = scalar_lea.vmem %s3, %s775
      %p777 = scmp.lt.s32.totalorder %s35, 1
      %s778 = scalar_select %p777, %s35, 1
      %s779 = smul.addr %s778, 8
      %s780 = scalar_lea.vmem %s24, %s779
      %v781 = vld [vmem:[%s765] sm:$0xff]
      %v782 = vld [vmem:[%s769] sm:$0xff]
      %v783 = vld [vmem:[%s4] sm:$0xff]
      %v784 = vld [vmem:[%s4 + $0x8] sm:$0xff]
      %v785 = vld [vmem:[%s4 + $0x10] sm:$0xff]
      %v786 = vld [vmem:[%s4 + $0x18] sm:$0xff]
      %v787 = vld [vmem:[%s5] sm:$0x1]
      %v789 = vperm.slane %v787, 0
      %vm791 = vcmask 261120
      %v793 = vsel %vm791, %v781, 0
      %795 = vmatpush.msra.mxu0 0.0
      %796 = vmatpush.msra.mxu0 0.0
      %797 = vmatpush.msra.mxu0 0.0
      %798 = vmatpush.msra.mxu0 0.0
      %799 = vmatpush.msra.mxu0 0.0
      %800 = vmatpush.msra.mxu0 0.0
      %801 = vmatpush.msra.mxu0 0.0
      %802 = vmatpush.msra.mxu0 0.0
      %803 = vmatpush.msra.mxu0 0.0
      %804 = vmatpush.msra.mxu0 0.0
      %805 = vmatpush.msra.mxu0 0.0
      %806 = vmatpush.msra.mxu0 0.0
      %807 = vmatpush.msra.mxu0 %v786
      %808 = vmatpush.msra.mxu0 %v785
      %809 = vmatpush.msra.mxu0 %v784
      %810 = vmatpush.msra.mxu0 %v783
      %811 = vmatmul.f32.gmra.mxu0 %v793
      %v812 = vpop.f32.mrf.mxu0
      %v813 = vadd.f32 %v789, %v812
      %814 = vdwg.mxu0
      %v815 = vld [vmem:[%s773] sm:$0xff]
      %v816 = vld [vmem:[%s6] sm:$0xff]
      %v817 = vld [vmem:[%s6 + $0x8] sm:$0xff]
      %v818 = vld [vmem:[%s6 + $0x10] sm:$0xff]
      %v819 = vld [vmem:[%s6 + $0x18] sm:$0xff]
      %v820 = vld [vmem:[%s7] sm:$0x1]
      %822 = vrot.lane.b32.xlu0 %v813, 96
      %v823 = vpop.permute.xlu0 %822
      %vm824 = vcmask 64512
      %v825 = vsel %vm824, %v813, 0
      %v827 = vsel %vm824, %v823, 0
      %829 = vmatpush.xpose.msra.mxu0 0.0
      %830 = vmatpush.xpose.msra.mxu0 0.0
      %831 = vmatpush.xpose.msra.mxu0 0.0
      %832 = vmatpush.xpose.msra.mxu0 0.0
      %833 = vmatpush.xpose.msra.mxu0 0.0
      %834 = vmatpush.xpose.msra.mxu0 0.0
      %835 = vmatpush.xpose.msra.mxu0 0.0
      %836 = vmatpush.xpose.msra.mxu0 0.0
      %837 = vmatpush.xpose.msra.mxu0 0.0
      %838 = vmatpush.xpose.msra.mxu0 0.0
      %839 = vmatpush.xpose.msra.mxu0 0.0
      %840 = vmatpush.xpose.msra.mxu0 0.0
      %841 = vmatpush.xpose.msra.mxu0 0.0
      %842 = vmatpush.xpose.msra.mxu0 0.0
      %843 = vmatpush.xpose.msra.mxu0 0.0
      %844 = vmatpush.xpose.msra.mxu0 %v827
      %845 = vmatmul.f32.gmra.mxu0 %v825
      %v846 = vpop.f32.mrf.mxu0
      %v847 = vadd.f32 0.0, %v846
      %848 = vdwg.mxu0
      %v849 = vmul.f32 %v847, 0.35355338
      %vm850 = vcmp.gt.f32.partialorder %v815, 0.0
      %v851 = vsel %vm850, %v849, -1e+09
      %v852 = vsel %vm824, %v851, -inf
      %853 = vmax.xlane.f32.xlu0 %v852
      %v854 = vpop.xlane.xlu0 %853
      %v855 = vsub.f32 %v851, %v854
      %v856 = vmul.f32 %v855, 1.442695
      %v857 = vpow.pop %v856
      %v858 = vsel %vm824, %v857, 0.0
      %859 = vadd.xlane.f32.xlu0 %v858
      %v860 = vpop.xlane.xlu0 %859
      %v861 = vrcp.pop %v860
      %v862 = vmul.f32 %v857, %v861
      %863 = vrot.lane.b32.xlu0 %v813, 64
      %v864 = vpop.permute.xlu0 %863
      %v867 = vsel %vm824, %v862, 0
      %869 = vmatpush.msra.mxu0 0.0
      %870 = vmatpush.msra.mxu0 0.0
      %871 = vmatpush.msra.mxu0 0.0
      %872 = vmatpush.msra.mxu0 0.0
      %873 = vmatpush.msra.mxu0 0.0
      %874 = vmatpush.msra.mxu0 0.0
      %875 = vmatpush.msra.mxu0 0.0
      %876 = vmatpush.msra.mxu0 0.0
      %877 = vmatpush.msra.mxu0 0.0
      %878 = vmatpush.msra.mxu0 0.0
      %879 = vmatpush.msra.mxu0 0.0
      %880 = vmatpush.msra.mxu0 0.0
      %881 = vmatpush.msra.mxu0 0.0
      %882 = vmatpush.msra.mxu0 0.0
      %883 = vmatpush.msra.mxu0 0.0
      %884 = vmatpush.msra.mxu0 %v864
      %885 = vmatmul.f32.gmra.mxu0 %v867
      %v886 = vpop.f32.mrf.mxu0
      %v887 = vadd.f32 0.0, %v886
      %888 = vdwg.mxu0
      %889 = vrot.lane.b32.xlu0 %v813, 120
      %v890 = vpop.permute.xlu0 %889
      %891 = vrot.lane.b32.xlu0 %v813, 88
      %v892 = vpop.permute.xlu0 %891
      %v893 = vsel %vm824, %v890, 0
      %v895 = vsel %vm824, %v892, 0
      %897 = vmatpush.xpose.msra.mxu0 0.0
      %898 = vmatpush.xpose.msra.mxu0 0.0
      %899 = vmatpush.xpose.msra.mxu0 0.0
      %900 = vmatpush.xpose.msra.mxu0 0.0
      %901 = vmatpush.xpose.msra.mxu0 0.0
      %902 = vmatpush.xpose.msra.mxu0 0.0
      %903 = vmatpush.xpose.msra.mxu0 0.0
      %904 = vmatpush.xpose.msra.mxu0 0.0
      %905 = vmatpush.xpose.msra.mxu0 0.0
      %906 = vmatpush.xpose.msra.mxu0 0.0
      %907 = vmatpush.xpose.msra.mxu0 0.0
      %908 = vmatpush.xpose.msra.mxu0 0.0
      %909 = vmatpush.xpose.msra.mxu0 0.0
      %910 = vmatpush.xpose.msra.mxu0 0.0
      %911 = vmatpush.xpose.msra.mxu0 0.0
      %912 = vmatpush.xpose.msra.mxu0 %v895
      %913 = vmatmul.f32.gmra.mxu0 %v893
      %v914 = vpop.f32.mrf.mxu0
      %v915 = vadd.f32 0.0, %v914
      %916 = vdwg.mxu0
      %v917 = vmul.f32 %v915, 0.35355338
      %v918 = vsel %vm850, %v917, -1e+09
      %v919 = vsel %vm824, %v918, -inf
      %920 = vmax.xlane.f32.xlu0 %v919
      %v921 = vpop.xlane.xlu0 %920
      %v922 = vsub.f32 %v918, %v921
      %v923 = vmul.f32 %v922, 1.442695
      %v924 = vpow.pop %v923
      %v925 = vsel %vm824, %v924, 0.0
      %926 = vadd.xlane.f32.xlu0 %v925
      %v927 = vpop.xlane.xlu0 %926
      %v928 = vrcp.pop %v927
      %v929 = vmul.f32 %v924, %v928
      %930 = vrot.lane.b32.xlu0 %v813, 56
      %v931 = vpop.permute.xlu0 %930
      %v934 = vsel %vm824, %v929, 0
      %936 = vmatpush.msra.mxu0 0.0
      %937 = vmatpush.msra.mxu0 0.0
      %938 = vmatpush.msra.mxu0 0.0
      %939 = vmatpush.msra.mxu0 0.0
      %940 = vmatpush.msra.mxu0 0.0
      %941 = vmatpush.msra.mxu0 0.0
      %942 = vmatpush.msra.mxu0 0.0
      %943 = vmatpush.msra.mxu0 0.0
      %944 = vmatpush.msra.mxu0 0.0
      %945 = vmatpush.msra.mxu0 0.0
      %946 = vmatpush.msra.mxu0 0.0
      %947 = vmatpush.msra.mxu0 0.0
      %948 = vmatpush.msra.mxu0 0.0
      %949 = vmatpush.msra.mxu0 0.0
      %950 = vmatpush.msra.mxu0 0.0
      %951 = vmatpush.msra.mxu0 %v931
      %952 = vmatmul.f32.gmra.mxu0 %v934
      %v953 = vpop.f32.mrf.mxu0
      %v954 = vadd.f32 0.0, %v953
      %955 = vdwg.mxu0
      %v957 = vsel %vm824, %v954, 0
      %959 = vmatpush.msra.mxu0 0.0
      %960 = vmatpush.msra.mxu0 0.0
      %961 = vmatpush.msra.mxu0 0.0
      %962 = vmatpush.msra.mxu0 0.0
      %963 = vmatpush.msra.mxu0 0.0
      %964 = vmatpush.msra.mxu0 0.0
      %965 = vmatpush.msra.mxu0 0.0
      %966 = vmatpush.msra.mxu0 0.0
      %967 = vmatpush.msra.mxu0 0.0
      %968 = vmatpush.msra.mxu0 0.0
      %969 = vmatpush.msra.mxu0 0.0
      %970 = vmatpush.msra.mxu0 0.0
      %971 = vmatpush.msra.mxu0 0.0
      %972 = vmatpush.msra.mxu0 0.0
      %973 = vmatpush.msra.mxu0 0.0
      %974 = vmatpush.msra.mxu0 %v817
      %975 = vmatmul.f32.gmra.mxu0 %v957
      %v976 = vpop.f32.mrf.mxu0
      %v977 = vadd.f32 0.0, %v976
      %978 = vdwg.mxu0
      %v980 = vsel %vm824, %v887, 0
      %982 = vmatpush.msra.mxu0 0.0
      %983 = vmatpush.msra.mxu0 0.0
      %984 = vmatpush.msra.mxu0 0.0
      %985 = vmatpush.msra.mxu0 0.0
      %986 = vmatpush.msra.mxu0 0.0
      %987 = vmatpush.msra.mxu0 0.0
      %988 = vmatpush.msra.mxu0 0.0
      %989 = vmatpush.msra.mxu0 0.0
      %990 = vmatpush.msra.mxu0 0.0
      %991 = vmatpush.msra.mxu0 0.0
      %992 = vmatpush.msra.mxu0 0.0
      %993 = vmatpush.msra.mxu0 0.0
      %994 = vmatpush.msra.mxu0 0.0
      %995 = vmatpush.msra.mxu0 0.0
      %996 = vmatpush.msra.mxu0 0.0
      %997 = vmatpush.msra.mxu0 %v816
      %998 = vmatmul.f32.gmra.mxu0 %v980
      %v999 = vpop.f32.mrf.mxu0
      %v1000 = vadd.f32 %v977, %v999
      %1001 = vdwg.mxu0
      %1002 = vrot.lane.b32.xlu0 %v813, 112
      %v1003 = vpop.permute.xlu0 %1002
      %1004 = vrot.lane.b32.xlu0 %v813, 80
      %v1005 = vpop.permute.xlu0 %1004
      %v1006 = vsel %vm824, %v1003, 0
      %v1008 = vsel %vm824, %v1005, 0
      %1010 = vmatpush.xpose.msra.mxu0 0.0
      %1011 = vmatpush.xpose.msra.mxu0 0.0
      %1012 = vmatpush.xpose.msra.mxu0 0.0
      %1013 = vmatpush.xpose.msra.mxu0 0.0
      %1014 = vmatpush.xpose.msra.mxu0 0.0
      %1015 = vmatpush.xpose.msra.mxu0 0.0
      %1016 = vmatpush.xpose.msra.mxu0 0.0
      %1017 = vmatpush.xpose.msra.mxu0 0.0
      %1018 = vmatpush.xpose.msra.mxu0 0.0
      %1019 = vmatpush.xpose.msra.mxu0 0.0
      %1020 = vmatpush.xpose.msra.mxu0 0.0
      %1021 = vmatpush.xpose.msra.mxu0 0.0
      %1022 = vmatpush.xpose.msra.mxu0 0.0
      %1023 = vmatpush.xpose.msra.mxu0 0.0
      %1024 = vmatpush.xpose.msra.mxu0 0.0
      %1025 = vmatpush.xpose.msra.mxu0 %v1008
      %1026 = vmatmul.f32.gmra.mxu0 %v1006
      %v1027 = vpop.f32.mrf.mxu0
      %v1028 = vadd.f32 0.0, %v1027
      %1029 = vdwg.mxu0
      %v1030 = vmul.f32 %v1028, 0.35355338
      %v1031 = vsel %vm850, %v1030, -1e+09
      %v1032 = vsel %vm824, %v1031, -inf
      %1033 = vmax.xlane.f32.xlu0 %v1032
      %v1034 = vpop.xlane.xlu0 %1033
      %v1035 = vsub.f32 %v1031, %v1034
      %v1036 = vmul.f32 %v1035, 1.442695
      %v1037 = vpow.pop %v1036
      %v1038 = vsel %vm824, %v1037, 0.0
      %1039 = vadd.xlane.f32.xlu0 %v1038
      %v1040 = vpop.xlane.xlu0 %1039
      %v1041 = vrcp.pop %v1040
      %v1042 = vmul.f32 %v1037, %v1041
      %1043 = vrot.lane.b32.xlu0 %v813, 48
      %v1044 = vpop.permute.xlu0 %1043
      %v1047 = vsel %vm824, %v1042, 0
      %1049 = vmatpush.msra.mxu0 0.0
      %1050 = vmatpush.msra.mxu0 0.0
      %1051 = vmatpush.msra.mxu0 0.0
      %1052 = vmatpush.msra.mxu0 0.0
      %1053 = vmatpush.msra.mxu0 0.0
      %1054 = vmatpush.msra.mxu0 0.0
      %1055 = vmatpush.msra.mxu0 0.0
      %1056 = vmatpush.msra.mxu0 0.0
      %1057 = vmatpush.msra.mxu0 0.0
      %1058 = vmatpush.msra.mxu0 0.0
      %1059 = vmatpush.msra.mxu0 0.0
      %1060 = vmatpush.msra.mxu0 0.0
      %1061 = vmatpush.msra.mxu0 0.0
      %1062 = vmatpush.msra.mxu0 0.0
      %1063 = vmatpush.msra.mxu0 0.0
      %1064 = vmatpush.msra.mxu0 %v1044
      %1065 = vmatmul.f32.gmra.mxu0 %v1047
      %v1066 = vpop.f32.mrf.mxu0
      %v1067 = vadd.f32 0.0, %v1066
      %1068 = vdwg.mxu0
      %v1070 = vsel %vm824, %v1067, 0
      %1072 = vmatpush.msra.mxu0 0.0
      %1073 = vmatpush.msra.mxu0 0.0
      %1074 = vmatpush.msra.mxu0 0.0
      %1075 = vmatpush.msra.mxu0 0.0
      %1076 = vmatpush.msra.mxu0 0.0
      %1077 = vmatpush.msra.mxu0 0.0
      %1078 = vmatpush.msra.mxu0 0.0
      %1079 = vmatpush.msra.mxu0 0.0
      %1080 = vmatpush.msra.mxu0 0.0
      %1081 = vmatpush.msra.mxu0 0.0
      %1082 = vmatpush.msra.mxu0 0.0
      %1083 = vmatpush.msra.mxu0 0.0
      %1084 = vmatpush.msra.mxu0 0.0
      %1085 = vmatpush.msra.mxu0 0.0
      %1086 = vmatpush.msra.mxu0 0.0
      %1087 = vmatpush.msra.mxu0 %v818
      %1088 = vmatmul.f32.gmra.mxu0 %v1070
      %v1089 = vpop.f32.mrf.mxu0
      %v1090 = vadd.f32 0.0, %v1089
      %1091 = vdwg.mxu0
      %v1092 = vadd.f32 %v1000, %v1090
      %1093 = vrot.lane.b32.xlu0 %v813, 104
      %v1094 = vpop.permute.xlu0 %1093
      %1095 = vrot.lane.b32.xlu0 %v813, 72
      %v1096 = vpop.permute.xlu0 %1095
      %v1097 = vsel %vm824, %v1094, 0
      %v1099 = vsel %vm824, %v1096, 0
      %1101 = vmatpush.xpose.msra.mxu0 0.0
      %1102 = vmatpush.xpose.msra.mxu0 0.0
      %1103 = vmatpush.xpose.msra.mxu0 0.0
      %1104 = vmatpush.xpose.msra.mxu0 0.0
      %1105 = vmatpush.xpose.msra.mxu0 0.0
      %1106 = vmatpush.xpose.msra.mxu0 0.0
      %1107 = vmatpush.xpose.msra.mxu0 0.0
      %1108 = vmatpush.xpose.msra.mxu0 0.0
      %1109 = vmatpush.xpose.msra.mxu0 0.0
      %1110 = vmatpush.xpose.msra.mxu0 0.0
      %1111 = vmatpush.xpose.msra.mxu0 0.0
      %1112 = vmatpush.xpose.msra.mxu0 0.0
      %1113 = vmatpush.xpose.msra.mxu0 0.0
      %1114 = vmatpush.xpose.msra.mxu0 0.0
      %1115 = vmatpush.xpose.msra.mxu0 0.0
      %1116 = vmatpush.xpose.msra.mxu0 %v1099
      %1117 = vmatmul.f32.gmra.mxu0 %v1097
      %v1118 = vpop.f32.mrf.mxu0
      %v1119 = vadd.f32 0.0, %v1118
      %1120 = vdwg.mxu0
      %v1121 = vmul.f32 %v1119, 0.35355338
      %v1122 = vsel %vm850, %v1121, -1e+09
      %v1123 = vsel %vm824, %v1122, -inf
      %1124 = vmax.xlane.f32.xlu0 %v1123
      %v1125 = vpop.xlane.xlu0 %1124
      %v1126 = vsub.f32 %v1122, %v1125
      %v1127 = vmul.f32 %v1126, 1.442695
      %v1128 = vpow.pop %v1127
      %v1129 = vsel %vm824, %v1128, 0.0
      %1130 = vadd.xlane.f32.xlu0 %v1129
      %v1131 = vpop.xlane.xlu0 %1130
      %v1132 = vrcp.pop %v1131
      %v1133 = vmul.f32 %v1128, %v1132
      %1134 = vrot.lane.b32.xlu0 %v813, 40
      %v1135 = vpop.permute.xlu0 %1134
      %v1138 = vsel %vm824, %v1133, 0
      %1140 = vmatpush.msra.mxu0 0.0
      %1141 = vmatpush.msra.mxu0 0.0
      %1142 = vmatpush.msra.mxu0 0.0
      %1143 = vmatpush.msra.mxu0 0.0
      %1144 = vmatpush.msra.mxu0 0.0
      %1145 = vmatpush.msra.mxu0 0.0
      %1146 = vmatpush.msra.mxu0 0.0
      %1147 = vmatpush.msra.mxu0 0.0
      %1148 = vmatpush.msra.mxu0 0.0
      %1149 = vmatpush.msra.mxu0 0.0
      %1150 = vmatpush.msra.mxu0 0.0
      %1151 = vmatpush.msra.mxu0 0.0
      %1152 = vmatpush.msra.mxu0 0.0
      %1153 = vmatpush.msra.mxu0 0.0
      %1154 = vmatpush.msra.mxu0 0.0
      %1155 = vmatpush.msra.mxu0 %v1135
      %1156 = vmatmul.f32.gmra.mxu0 %v1138
      %v1157 = vpop.f32.mrf.mxu0
      %v1158 = vadd.f32 0.0, %v1157
      %1159 = vdwg.mxu0
      %v1161 = vsel %vm824, %v1158, 0
      %1163 = vmatpush.msra.mxu0 0.0
      %1164 = vmatpush.msra.mxu0 0.0
      %1165 = vmatpush.msra.mxu0 0.0
      %1166 = vmatpush.msra.mxu0 0.0
      %1167 = vmatpush.msra.mxu0 0.0
      %1168 = vmatpush.msra.mxu0 0.0
      %1169 = vmatpush.msra.mxu0 0.0
      %1170 = vmatpush.msra.mxu0 0.0
      %1171 = vmatpush.msra.mxu0 0.0
      %1172 = vmatpush.msra.mxu0 0.0
      %1173 = vmatpush.msra.mxu0 0.0
      %1174 = vmatpush.msra.mxu0 0.0
      %1175 = vmatpush.msra.mxu0 0.0
      %1176 = vmatpush.msra.mxu0 0.0
      %1177 = vmatpush.msra.mxu0 0.0
      %1178 = vmatpush.msra.mxu0 %v819
      %1179 = vmatmul.f32.gmra.mxu0 %v1161
      %v1180 = vpop.f32.mrf.mxu0
      %v1181 = vadd.f32 0.0, %v1180
      %1182 = vdwg.mxu0
      %v1183 = vadd.f32 %v1092, %v1181
      %v1185 = vperm.slane %v820, 0
      %v1187 = vadd.f32 %v1183, %v1185
      %v1188 = vadd.f32 %v781, %v1187
      %v1189 = vld [vmem:[%s8] sm:$0x1]
      %v1190 = vld [vmem:[%s9] sm:$0x1]
      %v1191 = vsel %vm791, %v1188, 0.0
      %1192 = vadd.xlane.f32.xlu0 %v1191
      %v1193 = vpop.xlane.xlu0 %1192
      %v1194 = vrcp.pop 32.0
      %v1195 = vmul.f32 32.0, %v1194
      %v1196 = vsub.f32 1.0, %v1195
      %v1197 = vmul.f32 %v1194, %v1196
      %v1198 = vadd.f32 %v1194, %v1197
      %vm1199 = vweird.f32 %v1194
      %v1200 = vsel %vm1199, %v1194, %v1198
      %v1201 = vmul.f32 %v1193, %v1200
      %v1202 = vsub.f32 %v1188, %v1201
      %v1203 = vmul.f32 %v1202, %v1202
      %v1204 = vsel %vm791, %v1203, 0.0
      %1205 = vadd.xlane.f32.xlu0 %v1204
      %v1206 = vpop.xlane.xlu0 %1205
      %v1207 = vmul.f32 %v1206, %v1200
      %v1208 = vadd.f32 %v1207, 1e-05
      %v1209 = vrsqrt.pop %v1208
      %v1210 = vmul.f32 %v1209, %v1208
      %v1211 = vmul.f32 %v1210, %v1209
      %v1212 = vmul.f32 0.5, %v1211
      %v1213 = vsub.f32 1.5, %v1212
      %v1214 = vmul.f32 %v1209, %v1213
      %vm1215 = vweird.f32 %v1208
      %vm1216 = vweird.f32 %v1209
      %vm1217 = vmor %vm1215, %vm1216
      %v1218 = vsel %vm1217, %v1209, %v1214
      %v1219 = vmul.f32 %v1202, %v1218
      %v1221 = vperm.slane %v1189, 0
      %v1223 = vmul.f32 %v1219, %v1221
      %v1225 = vperm.slane %v1190, 0
      %v1227 = vadd.f32 %v1223, %v1225
      %v1228 = vld [vmem:[%s10] sm:$0xff]
      %v1229 = vld [vmem:[%s10 + $0x8] sm:$0xff]
      %v1230 = vld [vmem:[%s10 + $0x10] sm:$0xff]
      %v1231 = vld [vmem:[%s10 + $0x18] sm:$0xff]
      %v1232 = vld [vmem:[%s11] sm:$0x1]
      %v1234 = vperm.slane %v1232, 0
      %v1237 = vsel %vm791, %v1227, 0
      %1239 = vmatpush.msra.mxu0 0.0
      %1240 = vmatpush.msra.mxu0 0.0
      %1241 = vmatpush.msra.mxu0 0.0
      %1242 = vmatpush.msra.mxu0 0.0
      %1243 = vmatpush.msra.mxu0 0.0
      %1244 = vmatpush.msra.mxu0 0.0
      %1245 = vmatpush.msra.mxu0 0.0
      %1246 = vmatpush.msra.mxu0 0.0
      %1247 = vmatpush.msra.mxu0 0.0
      %1248 = vmatpush.msra.mxu0 0.0
      %1249 = vmatpush.msra.mxu0 0.0
      %1250 = vmatpush.msra.mxu0 0.0
      %1251 = vmatpush.msra.mxu0 %v1231
      %1252 = vmatpush.msra.mxu0 %v1230
      %1253 = vmatpush.msra.mxu0 %v1229
      %1254 = vmatpush.msra.mxu0 %v1228
      %1255 = vmatmul.f32.gmra.mxu0 %v1237
      %v1256 = vpop.f32.mrf.mxu0
      %v1257 = vadd.f32 %v1234, %v1256
      %1258 = vdwg.mxu0
      %v1259 = vld [vmem:[%s12] sm:$0xff]
      %v1260 = vld [vmem:[%s12 + $0x8] sm:$0xff]
      %v1261 = vld [vmem:[%s12 + $0x10] sm:$0xff]
      %v1262 = vld [vmem:[%s12 + $0x18] sm:$0xff]
      %v1263 = vld [vmem:[%s13] sm:$0x1]
      %v1265 = vperm.slane %v1263, 0
      %v1268 = vsel %vm791, %v782, 0
      %1270 = vmatpush.msra.mxu0 0.0
      %1271 = vmatpush.msra.mxu0 0.0
      %1272 = vmatpush.msra.mxu0 0.0
      %1273 = vmatpush.msra.mxu0 0.0
      %1274 = vmatpush.msra.mxu0 0.0
      %1275 = vmatpush.msra.mxu0 0.0
      %1276 = vmatpush.msra.mxu0 0.0
      %1277 = vmatpush.msra.mxu0 0.0
      %1278 = vmatpush.msra.mxu0 0.0
      %1279 = vmatpush.msra.mxu0 0.0
      %1280 = vmatpush.msra.mxu0 0.0
      %1281 = vmatpush.msra.mxu0 0.0
      %1282 = vmatpush.msra.mxu0 %v1262
      %1283 = vmatpush.msra.mxu0 %v1261
      %1284 = vmatpush.msra.mxu0 %v1260
      %1285 = vmatpush.msra.mxu0 %v1259
      %1286 = vmatmul.f32.gmra.mxu0 %v1268
      %v1287 = vpop.f32.mrf.mxu0
      %v1288 = vadd.f32 %v1265, %v1287
      %1289 = vdwg.mxu0
      %v1290 = vld [vmem:[%s776] sm:$0x1]
      %v1291 = vld [vmem:[%s14] sm:$0xff]
      %v1292 = vld [vmem:[%s14 + $0x8] sm:$0xff]
      %v1293 = vld [vmem:[%s14 + $0x10] sm:$0xff]
      %v1294 = vld [vmem:[%s14 + $0x18] sm:$0xff]
      %v1295 = vld [vmem:[%s15] sm:$0x1]
      %v1297 = vsel %vm824, %v1257, 0
      %v1300 = vsel %vm824, %v1288, 0
      %1302 = vmatpush.xpose.msra.mxu0 0.0
      %1303 = vmatpush.xpose.msra.mxu0 0.0
      %1304 = vmatpush.xpose.msra.mxu0 0.0
      %1305 = vmatpush.xpose.msra.mxu0 0.0
      %1306 = vmatpush.xpose.msra.mxu0 0.0
      %1307 = vmatpush.xpose.msra.mxu0 0.0
      %1308 = vmatpush.xpose.msra.mxu0 0.0
      %1309 = vmatpush.xpose.msra.mxu0 0.0
      %1310 = vmatpush.xpose.msra.mxu0 0.0
      %1311 = vmatpush.xpose.msra.mxu0 0.0
      %1312 = vmatpush.xpose.msra.mxu0 0.0
      %1313 = vmatpush.xpose.msra.mxu0 0.0
      %1314 = vmatpush.xpose.msra.mxu0 0.0
      %1315 = vmatpush.xpose.msra.mxu0 0.0
      %1316 = vmatpush.xpose.msra.mxu0 0.0
      %1317 = vmatpush.xpose.msra.mxu0 %v1300
      %1318 = vmatmul.f32.gmra.mxu0 %v1297
      %v1319 = vpop.f32.mrf.mxu0
      %v1320 = vadd.f32 0.0, %v1319
      %1321 = vdwg.mxu0
      %v1322 = vmul.f32 %v1320, 0.35355338
      %vm1323 = vcmp.gt.f32.partialorder %v1290, 0.0
      %v1324 = vsel %vm1323, 1, 0
      %v1325 = vperm.slane %v1324, 0
      %vm1326 = vcmp.eq.s32.totalorder %v1325, 1
      %v1327 = vsel %vm1326, %v1322, -1e+09
      %v1328 = vsel %vm824, %v1327, -inf
      %1329 = vmax.xlane.f32.xlu0 %v1328
      %v1330 = vpop.xlane.xlu0 %1329
      %v1331 = vsub.f32 %v1327, %v1330
      %v1332 = vmul.f32 %v1331, 1.442695
      %v1333 = vpow.pop %v1332
      %v1334 = vsel %vm824, %v1333, 0.0
      %1335 = vadd.xlane.f32.xlu0 %v1334
      %v1336 = vpop.xlane.xlu0 %1335
      %v1337 = vrcp.pop %v1336
      %v1338 = vmul.f32 %v1333, %v1337
      %1339 = vrot.lane.b32.xlu0 %v1288, 96
      %v1340 = vpop.permute.xlu0 %1339
      %v1343 = vsel %vm824, %v1338, 0
      %1345 = vmatpush.msra.mxu0 0.0
      %1346 = vmatpush.msra.mxu0 0.0
      %1347 = vmatpush.msra.mxu0 0.0
      %1348 = vmatpush.msra.mxu0 0.0
      %1349 = vmatpush.msra.mxu0 0.0
      %1350 = vmatpush.msra.mxu0 0.0
      %1351 = vmatpush.msra.mxu0 0.0
      %1352 = vmatpush.msra.mxu0 0.0
      %1353 = vmatpush.msra.mxu0 0.0
      %1354 = vmatpush.msra.mxu0 0.0
      %1355 = vmatpush.msra.mxu0 0.0
      %1356 = vmatpush.msra.mxu0 0.0
      %1357 = vmatpush.msra.mxu0 0.0
      %1358 = vmatpush.msra.mxu0 0.0
      %1359 = vmatpush.msra.mxu0 0.0
      %1360 = vmatpush.msra.mxu0 %v1340
      %1361 = vmatmul.f32.gmra.mxu0 %v1343
      %v1362 = vpop.f32.mrf.mxu0
      %v1363 = vadd.f32 0.0, %v1362
      %1364 = vdwg.mxu0
      %1365 = vrot.lane.b32.xlu0 %v1257, 120
      %v1366 = vpop.permute.xlu0 %1365
      %1367 = vrot.lane.b32.xlu0 %v1288, 120
      %v1368 = vpop.permute.xlu0 %1367
      %v1369 = vsel %vm824, %v1366, 0
      %v1371 = vsel %vm824, %v1368, 0
      %1373 = vmatpush.xpose.msra.mxu0 0.0
      %1374 = vmatpush.xpose.msra.mxu0 0.0
      %1375 = vmatpush.xpose.msra.mxu0 0.0
      %1376 = vmatpush.xpose.msra.mxu0 0.0
      %1377 = vmatpush.xpose.msra.mxu0 0.0
      %1378 = vmatpush.xpose.msra.mxu0 0.0
      %1379 = vmatpush.xpose.msra.mxu0 0.0
      %1380 = vmatpush.xpose.msra.mxu0 0.0
      %1381 = vmatpush.xpose.msra.mxu0 0.0
      %1382 = vmatpush.xpose.msra.mxu0 0.0
      %1383 = vmatpush.xpose.msra.mxu0 0.0
      %1384 = vmatpush.xpose.msra.mxu0 0.0
      %1385 = vmatpush.xpose.msra.mxu0 0.0
      %1386 = vmatpush.xpose.msra.mxu0 0.0
      %1387 = vmatpush.xpose.msra.mxu0 0.0
      %1388 = vmatpush.xpose.msra.mxu0 %v1371
      %1389 = vmatmul.f32.gmra.mxu0 %v1369
      %v1390 = vpop.f32.mrf.mxu0
      %v1391 = vadd.f32 0.0, %v1390
      %1392 = vdwg.mxu0
      %v1393 = vmul.f32 %v1391, 0.35355338
      %v1394 = vsel %vm1326, %v1393, -1e+09
      %v1395 = vsel %vm824, %v1394, -inf
      %1396 = vmax.xlane.f32.xlu0 %v1395
      %v1397 = vpop.xlane.xlu0 %1396
      %v1398 = vsub.f32 %v1394, %v1397
      %v1399 = vmul.f32 %v1398, 1.442695
      %v1400 = vpow.pop %v1399
      %v1401 = vsel %vm824, %v1400, 0.0
      %1402 = vadd.xlane.f32.xlu0 %v1401
      %v1403 = vpop.xlane.xlu0 %1402
      %v1404 = vrcp.pop %v1403
      %v1405 = vmul.f32 %v1400, %v1404
      %1406 = vrot.lane.b32.xlu0 %v1288, 88
      %v1407 = vpop.permute.xlu0 %1406
      %v1410 = vsel %vm824, %v1405, 0
      %1412 = vmatpush.msra.mxu0 0.0
      %1413 = vmatpush.msra.mxu0 0.0
      %1414 = vmatpush.msra.mxu0 0.0
      %1415 = vmatpush.msra.mxu0 0.0
      %1416 = vmatpush.msra.mxu0 0.0
      %1417 = vmatpush.msra.mxu0 0.0
      %1418 = vmatpush.msra.mxu0 0.0
      %1419 = vmatpush.msra.mxu0 0.0
      %1420 = vmatpush.msra.mxu0 0.0
      %1421 = vmatpush.msra.mxu0 0.0
      %1422 = vmatpush.msra.mxu0 0.0
      %1423 = vmatpush.msra.mxu0 0.0
      %1424 = vmatpush.msra.mxu0 0.0
      %1425 = vmatpush.msra.mxu0 0.0
      %1426 = vmatpush.msra.mxu0 0.0
      %1427 = vmatpush.msra.mxu0 %v1407
      %1428 = vmatmul.f32.gmra.mxu0 %v1410
      %v1429 = vpop.f32.mrf.mxu0
      %v1430 = vadd.f32 0.0, %v1429
      %1431 = vdwg.mxu0
      %v1433 = vsel %vm824, %v1430, 0
      %1435 = vmatpush.msra.mxu0 0.0
      %1436 = vmatpush.msra.mxu0 0.0
      %1437 = vmatpush.msra.mxu0 0.0
      %1438 = vmatpush.msra.mxu0 0.0
      %1439 = vmatpush.msra.mxu0 0.0
      %1440 = vmatpush.msra.mxu0 0.0
      %1441 = vmatpush.msra.mxu0 0.0
      %1442 = vmatpush.msra.mxu0 0.0
      %1443 = vmatpush.msra.mxu0 0.0
      %1444 = vmatpush.msra.mxu0 0.0
      %1445 = vmatpush.msra.mxu0 0.0
      %1446 = vmatpush.msra.mxu0 0.0
      %1447 = vmatpush.msra.mxu0 0.0
      %1448 = vmatpush.msra.mxu0 0.0
      %1449 = vmatpush.msra.mxu0 0.0
      %1450 = vmatpush.msra.mxu0 %v1292
      %1451 = vmatmul.f32.gmra.mxu0 %v1433
      %v1452 = vpop.f32.mrf.mxu0
      %v1453 = vadd.f32 0.0, %v1452
      %1454 = vdwg.mxu0
      %v1456 = vsel %vm824, %v1363, 0
      %1458 = vmatpush.msra.mxu0 0.0
      %1459 = vmatpush.msra.mxu0 0.0
      %1460 = vmatpush.msra.mxu0 0.0
      %1461 = vmatpush.msra.mxu0 0.0
      %1462 = vmatpush.msra.mxu0 0.0
      %1463 = vmatpush.msra.mxu0 0.0
      %1464 = vmatpush.msra.mxu0 0.0
      %1465 = vmatpush.msra.mxu0 0.0
      %1466 = vmatpush.msra.mxu0 0.0
      %1467 = vmatpush.msra.mxu0 0.0
      %1468 = vmatpush.msra.mxu0 0.0
      %1469 = vmatpush.msra.mxu0 0.0
      %1470 = vmatpush.msra.mxu0 0.0
      %1471 = vmatpush.msra.mxu0 0.0
      %1472 = vmatpush.msra.mxu0 0.0
      %1473 = vmatpush.msra.mxu0 %v1291
      %1474 = vmatmul.f32.gmra.mxu0 %v1456
      %v1475 = vpop.f32.mrf.mxu0
      %v1476 = vadd.f32 %v1453, %v1475
      %1477 = vdwg.mxu0
      %1478 = vrot.lane.b32.xlu0 %v1257, 112
      %v1479 = vpop.permute.xlu0 %1478
      %1480 = vrot.lane.b32.xlu0 %v1288, 112
      %v1481 = vpop.permute.xlu0 %1480
      %v1482 = vsel %vm824, %v1479, 0
      %v1484 = vsel %vm824, %v1481, 0
      %1486 = vmatpush.xpose.msra.mxu0 0.0
      %1487 = vmatpush.xpose.msra.mxu0 0.0
      %1488 = vmatpush.xpose.msra.mxu0 0.0
      %1489 = vmatpush.xpose.msra.mxu0 0.0
      %1490 = vmatpush.xpose.msra.mxu0 0.0
      %1491 = vmatpush.xpose.msra.mxu0 0.0
      %1492 = vmatpush.xpose.msra.mxu0 0.0
      %1493 = vmatpush.xpose.msra.mxu0 0.0
      %1494 = vmatpush.xpose.msra.mxu0 0.0
      %1495 = vmatpush.xpose.msra.mxu0 0.0
      %1496 = vmatpush.xpose.msra.mxu0 0.0
      %1497 = vmatpush.xpose.msra.mxu0 0.0
      %1498 = vmatpush.xpose.msra.mxu0 0.0
      %1499 = vmatpush.xpose.msra.mxu0 0.0
      %1500 = vmatpush.xpose.msra.mxu0 0.0
      %1501 = vmatpush.xpose.msra.mxu0 %v1484
      %1502 = vmatmul.f32.gmra.mxu0 %v1482
      %v1503 = vpop.f32.mrf.mxu0
      %v1504 = vadd.f32 0.0, %v1503
      %1505 = vdwg.mxu0
      %v1506 = vmul.f32 %v1504, 0.35355338
      %v1507 = vsel %vm1326, %v1506, -1e+09
      %v1508 = vsel %vm824, %v1507, -inf
      %1509 = vmax.xlane.f32.xlu0 %v1508
      %v1510 = vpop.xlane.xlu0 %1509
      %v1511 = vsub.f32 %v1507, %v1510
      %v1512 = vmul.f32 %v1511, 1.442695
      %v1513 = vpow.pop %v1512
      %v1514 = vsel %vm824, %v1513, 0.0
      %1515 = vadd.xlane.f32.xlu0 %v1514
      %v1516 = vpop.xlane.xlu0 %1515
      %v1517 = vrcp.pop %v1516
      %v1518 = vmul.f32 %v1513, %v1517
      %1519 = vrot.lane.b32.xlu0 %v1288, 80
      %v1520 = vpop.permute.xlu0 %1519
      %v1523 = vsel %vm824, %v1518, 0
      %1525 = vmatpush.msra.mxu0 0.0
      %1526 = vmatpush.msra.mxu0 0.0
      %1527 = vmatpush.msra.mxu0 0.0
      %1528 = vmatpush.msra.mxu0 0.0
      %1529 = vmatpush.msra.mxu0 0.0
      %1530 = vmatpush.msra.mxu0 0.0
      %1531 = vmatpush.msra.mxu0 0.0
      %1532 = vmatpush.msra.mxu0 0.0
      %1533 = vmatpush.msra.mxu0 0.0
      %1534 = vmatpush.msra.mxu0 0.0
      %1535 = vmatpush.msra.mxu0 0.0
      %1536 = vmatpush.msra.mxu0 0.0
      %1537 = vmatpush.msra.mxu0 0.0
      %1538 = vmatpush.msra.mxu0 0.0
      %1539 = vmatpush.msra.mxu0 0.0
      %1540 = vmatpush.msra.mxu0 %v1520
      %1541 = vmatmul.f32.gmra.mxu0 %v1523
      %v1542 = vpop.f32.mrf.mxu0
      %v1543 = vadd.f32 0.0, %v1542
      %1544 = vdwg.mxu0
      %v1546 = vsel %vm824, %v1543, 0
      %1548 = vmatpush.msra.mxu0 0.0
      %1549 = vmatpush.msra.mxu0 0.0
      %1550 = vmatpush.msra.mxu0 0.0
      %1551 = vmatpush.msra.mxu0 0.0
      %1552 = vmatpush.msra.mxu0 0.0
      %1553 = vmatpush.msra.mxu0 0.0
      %1554 = vmatpush.msra.mxu0 0.0
      %1555 = vmatpush.msra.mxu0 0.0
      %1556 = vmatpush.msra.mxu0 0.0
      %1557 = vmatpush.msra.mxu0 0.0
      %1558 = vmatpush.msra.mxu0 0.0
      %1559 = vmatpush.msra.mxu0 0.0
      %1560 = vmatpush.msra.mxu0 0.0
      %1561 = vmatpush.msra.mxu0 0.0
      %1562 = vmatpush.msra.mxu0 0.0
      %1563 = vmatpush.msra.mxu0 %v1293
      %1564 = vmatmul.f32.gmra.mxu0 %v1546
      %v1565 = vpop.f32.mrf.mxu0
      %v1566 = vadd.f32 0.0, %v1565
      %1567 = vdwg.mxu0
      %v1568 = vadd.f32 %v1476, %v1566
      %1569 = vrot.lane.b32.xlu0 %v1257, 104
      %v1570 = vpop.permute.xlu0 %1569
      %1571 = vrot.lane.b32.xlu0 %v1288, 104
      %v1572 = vpop.permute.xlu0 %1571
      %v1573 = vsel %vm824, %v1570, 0
      %v1575 = vsel %vm824, %v1572, 0
      %1577 = vmatpush.xpose.msra.mxu0 0.0
      %1578 = vmatpush.xpose.msra.mxu0 0.0
      %1579 = vmatpush.xpose.msra.mxu0 0.0
      %1580 = vmatpush.xpose.msra.mxu0 0.0
      %1581 = vmatpush.xpose.msra.mxu0 0.0
      %1582 = vmatpush.xpose.msra.mxu0 0.0
      %1583 = vmatpush.xpose.msra.mxu0 0.0
      %1584 = vmatpush.xpose.msra.mxu0 0.0
      %1585 = vmatpush.xpose.msra.mxu0 0.0
      %1586 = vmatpush.xpose.msra.mxu0 0.0
      %1587 = vmatpush.xpose.msra.mxu0 0.0
      %1588 = vmatpush.xpose.msra.mxu0 0.0
      %1589 = vmatpush.xpose.msra.mxu0 0.0
      %1590 = vmatpush.xpose.msra.mxu0 0.0
      %1591 = vmatpush.xpose.msra.mxu0 0.0
      %1592 = vmatpush.xpose.msra.mxu0 %v1575
      %1593 = vmatmul.f32.gmra.mxu0 %v1573
      %v1594 = vpop.f32.mrf.mxu0
      %v1595 = vadd.f32 0.0, %v1594
      %1596 = vdwg.mxu0
      %v1597 = vmul.f32 %v1595, 0.35355338
      %v1598 = vsel %vm1326, %v1597, -1e+09
      %v1599 = vsel %vm824, %v1598, -inf
      %1600 = vmax.xlane.f32.xlu0 %v1599
      %v1601 = vpop.xlane.xlu0 %1600
      %v1602 = vsub.f32 %v1598, %v1601
      %v1603 = vmul.f32 %v1602, 1.442695
      %v1604 = vpow.pop %v1603
      %v1605 = vsel %vm824, %v1604, 0.0
      %1606 = vadd.xlane.f32.xlu0 %v1605
      %v1607 = vpop.xlane.xlu0 %1606
      %v1608 = vrcp.pop %v1607
      %v1609 = vmul.f32 %v1604, %v1608
      %1610 = vrot.lane.b32.xlu0 %v1288, 72
      %v1611 = vpop.permute.xlu0 %1610
      %v1614 = vsel %vm824, %v1609, 0
      %1616 = vmatpush.msra.mxu0 0.0
      %1617 = vmatpush.msra.mxu0 0.0
      %1618 = vmatpush.msra.mxu0 0.0
      %1619 = vmatpush.msra.mxu0 0.0
      %1620 = vmatpush.msra.mxu0 0.0
      %1621 = vmatpush.msra.mxu0 0.0
      %1622 = vmatpush.msra.mxu0 0.0
      %1623 = vmatpush.msra.mxu0 0.0
      %1624 = vmatpush.msra.mxu0 0.0
      %1625 = vmatpush.msra.mxu0 0.0
      %1626 = vmatpush.msra.mxu0 0.0
      %1627 = vmatpush.msra.mxu0 0.0
      %1628 = vmatpush.msra.mxu0 0.0
      %1629 = vmatpush.msra.mxu0 0.0
      %1630 = vmatpush.msra.mxu0 0.0
      %1631 = vmatpush.msra.mxu0 %v1611
      %1632 = vmatmul.f32.gmra.mxu0 %v1614
      %v1633 = vpop.f32.mrf.mxu0
      %v1634 = vadd.f32 0.0, %v1633
      %1635 = vdwg.mxu0
      %v1637 = vsel %vm824, %v1634, 0
      %1639 = vmatpush.msra.mxu0 0.0
      %1640 = vmatpush.msra.mxu0 0.0
      %1641 = vmatpush.msra.mxu0 0.0
      %1642 = vmatpush.msra.mxu0 0.0
      %1643 = vmatpush.msra.mxu0 0.0
      %1644 = vmatpush.msra.mxu0 0.0
      %1645 = vmatpush.msra.mxu0 0.0
      %1646 = vmatpush.msra.mxu0 0.0
      %1647 = vmatpush.msra.mxu0 0.0
      %1648 = vmatpush.msra.mxu0 0.0
      %1649 = vmatpush.msra.mxu0 0.0
      %1650 = vmatpush.msra.mxu0 0.0
      %1651 = vmatpush.msra.mxu0 0.0
      %1652 = vmatpush.msra.mxu0 0.0
      %1653 = vmatpush.msra.mxu0 0.0
      %1654 = vmatpush.msra.mxu0 %v1294
      %1655 = vmatmul.f32.gmra.mxu0 %v1637
      %v1656 = vpop.f32.mrf.mxu0
      %v1657 = vadd.f32 0.0, %v1656
      %1658 = vdwg.mxu0
      %v1659 = vadd.f32 %v1568, %v1657
      %v1661 = vperm.slane %v1295, 0
      %v1663 = vadd.f32 %v1659, %v1661
      %v1664 = vadd.f32 %v1227, %v1663
      %v1665 = vld [vmem:[%s16] sm:$0x1]
      %v1666 = vld [vmem:[%s17] sm:$0x1]
      %v1667 = vsel %vm791, %v1664, 0.0
      %1668 = vadd.xlane.f32.xlu0 %v1667
      %v1669 = vpop.xlane.xlu0 %1668
      %v1670 = vmul.f32 %v1669, %v1200
      %v1671 = vsub.f32 %v1664, %v1670
      %v1672 = vmul.f32 %v1671, %v1671
      %v1673 = vsel %vm791, %v1672, 0.0
      %1674 = vadd.xlane.f32.xlu0 %v1673
      %v1675 = vpop.xlane.xlu0 %1674
      %v1676 = vmul.f32 %v1675, %v1200
      %v1677 = vadd.f32 %v1676, 1e-05
      %v1678 = vrsqrt.pop %v1677
      %v1679 = vmul.f32 %v1678, %v1677
      %v1680 = vmul.f32 %v1679, %v1678
      %v1681 = vmul.f32 0.5, %v1680
      %v1682 = vsub.f32 1.5, %v1681
      %v1683 = vmul.f32 %v1678, %v1682
      %vm1684 = vweird.f32 %v1677
      %vm1685 = vweird.f32 %v1678
      %vm1686 = vmor %vm1684, %vm1685
      %v1687 = vsel %vm1686, %v1678, %v1683
      %v1688 = vmul.f32 %v1671, %v1687
      %v1690 = vperm.slane %v1665, 0
      %v1692 = vmul.f32 %v1688, %v1690
      %v1694 = vperm.slane %v1666, 0
      %v1696 = vadd.f32 %v1692, %v1694
      %v1697 = vld [vmem:[%s18] sm:$0xff]
      %v1698 = vld [vmem:[%s18 + $0x8] sm:$0xff]
      %v1699 = vld [vmem:[%s18 + $0x10] sm:$0xff]
      %v1700 = vld [vmem:[%s18 + $0x18] sm:$0xff]
      %v1701 = vld [vmem:[%s19] sm:$0x1]
      %v1703 = vperm.slane %v1701, 0
      %v1706 = vsel %vm791, %v1696, 0
      %1708 = vmatpush.msra.mxu0 0.0
      %1709 = vmatpush.msra.mxu0 0.0
      %1710 = vmatpush.msra.mxu0 0.0
      %1711 = vmatpush.msra.mxu0 0.0
      %1712 = vmatpush.msra.mxu0 0.0
      %1713 = vmatpush.msra.mxu0 0.0
      %1714 = vmatpush.msra.mxu0 0.0
      %1715 = vmatpush.msra.mxu0 0.0
      %1716 = vmatpush.msra.mxu0 0.0
      %1717 = vmatpush.msra.mxu0 0.0
      %1718 = vmatpush.msra.mxu0 0.0
      %1719 = vmatpush.msra.mxu0 0.0
      %1720 = vmatpush.msra.mxu0 %v1700
      %1721 = vmatpush.msra.mxu0 %v1699
      %1722 = vmatpush.msra.mxu0 %v1698
      %1723 = vmatpush.msra.mxu0 %v1697
      %1724 = vmatmul.f32.gmra.mxu0 %v1706
      %v1725 = vpop.f32.mrf.mxu0
      %v1726 = vadd.f32 %v1703, %v1725
      %1727 = vdwg.mxu0
      %v1728 = vmax.f32 %v1726, 0.0
      %v1729 = vld [vmem:[%s20] sm:$0xff]
      %v1730 = vld [vmem:[%s20 + $0x8] sm:$0xff]
      %v1731 = vld [vmem:[%s20 + $0x10] sm:$0xff]
      %v1732 = vld [vmem:[%s20 + $0x18] sm:$0xff]
      %v1733 = vld [vmem:[%s20 + $0x20] sm:$0xff]
      %v1734 = vld [vmem:[%s20 + $0x28] sm:$0xff]
      %v1735 = vld [vmem:[%s20 + $0x30] sm:$0xff]
      %v1736 = vld [vmem:[%s20 + $0x38] sm:$0xff]
      %v1737 = vld [vmem:[%s21] sm:$0x1]
      %v1739 = vperm.slane %v1737, 0
      %vm1741 = vcmask 523264
      %v1743 = vsel %vm1741, %v1728, 0
      %1745 = vmatpush.msra.mxu0 0.0
      %1746 = vmatpush.msra.mxu0 0.0
      %1747 = vmatpush.msra.mxu0 0.0
      %1748 = vmatpush.msra.mxu0 0.0
      %1749 = vmatpush.msra.mxu0 0.0
      %1750 = vmatpush.msra.mxu0 0.0
      %1751 = vmatpush.msra.mxu0 0.0
      %1752 = vmatpush.msra.mxu0 0.0
      %1753 = vmatpush.msra.mxu0 %v1736
      %1754 = vmatpush.msra.mxu0 %v1735
      %1755 = vmatpush.msra.mxu0 %v1734
      %1756 = vmatpush.msra.mxu0 %v1733
      %1757 = vmatpush.msra.mxu0 %v1732
      %1758 = vmatpush.msra.mxu0 %v1731
      %1759 = vmatpush.msra.mxu0 %v1730
      %1760 = vmatpush.msra.mxu0 %v1729
      %1761 = vmatmul.f32.gmra.mxu0 %v1743
      %v1762 = vpop.f32.mrf.mxu0
      %v1763 = vadd.f32 %v1739, %v1762
      %1764 = vdwg.mxu0
      %v1765 = vadd.f32 %v1696, %v1763
      %v1766 = vld [vmem:[%s22] sm:$0x1]
      %v1767 = vld [vmem:[%s23] sm:$0x1]
      %v1768 = vsel %vm791, %v1765, 0.0
      %1769 = vadd.xlane.f32.xlu0 %v1768
      %v1770 = vpop.xlane.xlu0 %1769
      %v1771 = vmul.f32 %v1770, %v1200
      %v1772 = vsub.f32 %v1765, %v1771
      %v1773 = vmul.f32 %v1772, %v1772
      %v1774 = vsel %vm791, %v1773, 0.0
      %1775 = vadd.xlane.f32.xlu0 %v1774
      %v1776 = vpop.xlane.xlu0 %1775
      %v1777 = vmul.f32 %v1776, %v1200
      %v1778 = vadd.f32 %v1777, 1e-05
      %v1779 = vrsqrt.pop %v1778
      %v1780 = vmul.f32 %v1779, %v1778
      %v1781 = vmul.f32 %v1780, %v1779
      %v1782 = vmul.f32 0.5, %v1781
      %v1783 = vsub.f32 1.5, %v1782
      %v1784 = vmul.f32 %v1779, %v1783
      %vm1785 = vweird.f32 %v1778
      %vm1786 = vweird.f32 %v1779
      %vm1787 = vmor %vm1785, %vm1786
      %v1788 = vsel %vm1787, %v1779, %v1784
      %v1789 = vmul.f32 %v1772, %v1788
      %v1791 = vperm.slane %v1766, 0
      %v1793 = vmul.f32 %v1789, %v1791
      %v1795 = vperm.slane %v1767, 0
      %v1797 = vadd.f32 %v1793, %v1795
      %1798 = vst.msk [vmem:[%s780] sm:$0xff] %vm791, %v1797
      %p1799 = scmp.lt.s32.totalorder %s35, 1
      %s1800 = scalar_select %p1799, %s35, 1
      %s1801 = smul.addr %s1800, 8
      %s1802 = scalar_lea.vmem %s24, %s1801
      // Predicated region
      $region117: #{transformer_forward.7} parent=115 // pred_check
        %p1803 = pneg %p577
      $region118: #{transformer_forward.7} parent=115 // pred_check_branch
        %1805 = sbr.rel (%p1803) target = $region120
      $region119: #{transformer_forward.7} parent=115 // pred_region
        _
      $region120: #{transformer_forward.7} parent=115 // pred_fallthru
        _
    $region116: #{transformer_forward.7} parent=5 // pred_fallthru
      _
    %p1806 = scmp.le.s32.totalorder 2, %s30
    // Predicated region
    $region121: #{transformer_forward.7} parent=5 // pred_check
      %p1807 = pneg %p1806
    $region122: #{transformer_forward.7} parent=5 // pred_check_branch
      %1809 = sbr.rel (%p1807) target = $region124
    $region123: #{transformer_forward.7} parent=5 // pred_region
      %s1810 = ssub.s32 %s30, 2
      // Predicated region
      $region125: #{transformer_forward.7} parent=123 // pred_check
        %p1811 = pneg %p583
      $region126: #{transformer_forward.7} parent=123 // pred_check_branch
        %1813 = sbr.rel (%p1811) target = $region128
      $region127: #{transformer_forward.7} parent=123 // pred_region
        %p1814 = scmp.lt.s32.totalorder %s36, 1
        %s1815 = scalar_select %p1814, %s36, 1
        %s1816 = smul.addr %s1815, 8
        %s1817 = scalar_lea.vmem %s24, %s1816
      $region128: #{transformer_forward.7} parent=123 // pred_fallthru
        _
    $region124: #{transformer_forward.7} parent=5 // pred_fallthru
      _
  $region6: #{transformer_forward.7} parent=0 // loop_footer
    %s34 = sadd.s32 1, %s30
  $region7: #{transformer_forward.7} parent=0 // loop_footer_branch
    %29 = sbr.rel target = $region3
  $region8: #{transformer_forward.7} parent=0 // loop_exit
    _

</llo_original>
